<compile_context>
chip_gen: v7x
topology: tpu7x:2x2x1
jax: 0.10.0
libtpu: 0.0.40
codegen_flags: <defaults>
</compile_context>

<pallas_src>
import functools
import math

import jax
import jax.numpy as jnp
from jax import lax
from jax.experimental import pallas as pl
from jax.experimental.pallas import tpu as pltpu

# dtype fed to the MXU (accumulation is always f32 via preferred_element_type).
MXU_DTYPE = jnp.bfloat16


# ----------------------------- in-kernel helpers ----------------------------

def _layernorm(x, g, b):
    # x: (M, D) f32; g/b: (1, D) f32; eps=1e-5, biased variance (matches PyTorch).
    mu = jnp.mean(x, axis=-1, keepdims=True)
    var = jnp.mean((x - mu) ** 2, axis=-1, keepdims=True)
    return (x - mu) * lax.rsqrt(var + 1e-5) * g + b


def _matmul_t(a, w, bias):
    # a: (M, K) f32; w: (N, K) bf16 (PyTorch nn.Linear layout); bias: (1, N) f32 -> (M, N) f32.
    y = lax.dot_general(a.astype(MXU_DTYPE), w, (((1,), (1,)), ((), ())),
                        preferred_element_type=jnp.float32)
    return y + bias


def _mha(q, k, v, wo, bo, nhead):
    """Multi-head attention on VMEM-resident values.

    q: (Sq, D) f32 with the 1/sqrt(Dh) scale already folded into its projection.
    k, v: (Sk, D) f32.  wo: (D, D) bf16 (out = ctx @ wo.T).  bo: (1, D) f32.
    Each head's context is folded straight into the output projection (no lane-axis
    concatenate; only one (Sq, D) f32 accumulator stays live across heads).
    """
    Sq, D = q.shape
    Dh = D // nhead
    acc = jnp.zeros((Sq, D), jnp.float32)
    for h in range(nhead):
        sl = slice(h * Dh, (h + 1) * Dh)
        qh = q[:, sl].astype(MXU_DTYPE)
        kh = k[:, sl].astype(MXU_DTYPE)
        vh = v[:, sl].astype(MXU_DTYPE)
        s = lax.dot_general(qh, kh, (((1,), (1,)), ((), ())),
                            preferred_element_type=jnp.float32)          # (Sq, Sk)
        m = jnp.max(s, axis=-1, keepdims=True)
        e = jnp.exp(s - m)
        inv = pl.reciprocal(jnp.sum(e, axis=-1, keepdims=True), approx=True)
        p = (e * inv).astype(MXU_DTYPE)
        ctx = lax.dot_general(p, vh, (((1,), (0,)), ((), ())),
                              preferred_element_type=jnp.float32)         # (Sq, Dh)
        # This head's contribution to the output projection: ctx @ wo[:, sl].T
        acc = acc + lax.dot_general(ctx.astype(MXU_DTYPE), wo[:, sl],
                                    (((1,), (1,)), ((), ())),
                                    preferred_element_type=jnp.float32)
    return acc + bo


# ------------------------------- fused decoder kernel ------------------------------

def _decoder_kernel(x_ref, mem_ref,
                    ln1g_ref, ln1b_ref, wqkv_ref, bqkv_ref, wo1_ref, bo1_ref,
                    ln2g_ref, ln2b_ref, wq2_ref, bq2_ref, wkv2_ref, bkv2_ref,
                    wo2_ref, bo2_ref,
                    ln3g_ref, ln3b_ref, w1_ref, b1_ref, w2_ref, b2_ref,
                    o_ref, x_scr, *, nhead):
    """One grid step = one decoder layer applied to one batch element.

    grid = (batch [parallel], layer [arbitrary]).  The running activation is carried in
    VMEM scratch across the layer axis; HBM is touched only at layer 0 (read) and the
    last layer (write).
    """
    j = pl.program_id(1)
    n_layers = pl.num_programs(1)

    @pl.when(j == 0)
    def _():
        x_scr[...] = x_ref[...]                       # load activation once per batch elem

    x = x_scr[...]                                    # (Sq, D) f32
    D = x.shape[-1]

    # --- self-attention sublayer: LN1 -> fused qkv proj -> MHA -> out proj -> +residual ---
    h = _layernorm(x, ln1g_ref[...], ln1b_ref[...])
    qkv = _matmul_t(h, wqkv_ref[...], bqkv_ref[...])          # (Sq, 3D), q already pre-scaled
    q, k, v = qkv[:, :D], qkv[:, D:2 * D], qkv[:, 2 * D:]
    x = x + _mha(q, k, v, wo1_ref[...], bo1_ref[...], nhead)

    # --- cross-attention sublayer: LN2 -> q proj / fused kv proj of raw memory -> MHA -> +res ---
    h = _layernorm(x, ln2g_ref[...], ln2b_ref[...])
    q = _matmul_t(h, wq2_ref[...], bq2_ref[...])              # (Sq, D), pre-scaled
    kv = _matmul_t(mem_ref[...], wkv2_ref[...], bkv2_ref[...])  # (Sk, 2D)
    k, v = kv[:, :D], kv[:, D:]
    x = x + _mha(q, k, v, wo2_ref[...], bo2_ref[...], nhead)

    # --- FFN sublayer: LN3 -> lin1 -> ReLU -> lin2 -> +residual ---
    h = _layernorm(x, ln3g_ref[...], ln3b_ref[...])
    y = jnp.maximum(_matmul_t(h, w1_ref[...], b1_ref[...]), 0.0)   # (Sq, FF)
    x = x + _matmul_t(y, w2_ref[...], b2_ref[...])                 # (Sq, D)

    x_scr[...] = x                                    # carry to the next layer step

    @pl.when(j == n_layers - 1)
    def _():
        o_ref[...] = x                                # single HBM writeback per batch elem


# ------------------------------ wrapper -------------------------------

def _per_layer_spec(arr):
    """Block = one layer's full weight slab; streamed (double-buffered) along the layer axis."""
    tail = tuple(int(s) for s in arr.shape[1:])
    return pl.BlockSpec((None,) + tail, lambda b, j: (j, 0, 0))


@functools.partial(jax.jit, static_argnums=(3,))
def transformer_decoder(target_tokens, memory, prep, nhead):
    B, Sq, D = target_tokens.shape
    Sk = memory.shape[1]
    L = prep["wqkv"].shape[0]

    order = ["ln1_g", "ln1_b", "wqkv", "bqkv", "wo1", "bo1",
             "ln2_g", "ln2_b", "wq2", "bq2", "wkv2", "bkv2", "wo2", "bo2",
             "ln3_g", "ln3_b", "w1", "b1", "w2", "b2"]
    weight_args = [prep[k] for k in order]
    weight_specs = [_per_layer_spec(a) for a in weight_args]

    x_spec = pl.BlockSpec((None, Sq, D), lambda b, j: (b, 0, 0))
    mem_spec = pl.BlockSpec((None, Sk, D), lambda b, j: (b, 0, 0))
    out_spec = pl.BlockSpec((None, Sq, D), lambda b, j: (b, 0, 0))

    kernel = functools.partial(_decoder_kernel, nhead=nhead)
    return pl.pallas_call(
        kernel,
        out_shape=jax.ShapeDtypeStruct((B, Sq, D), jnp.float32),
        grid=(B, L),
        in_specs=[x_spec, mem_spec] + weight_specs,
        out_specs=out_spec,
        scratch_shapes=[pltpu.VMEM((Sq, D), jnp.float32)],   # activation carried across layers
        compiler_params=pltpu.CompilerParams(
            dimension_semantics=("parallel", "arbitrary"),
            # Explicit scoped-VMEM budget (safe on v5e/v6e/v7x); scale with weight size for
            # production d_model / dim_feedforward configs.
            vmem_limit_bytes=32 * 1024 * 1024),
    )(target_tokens, memory, *weight_args)


# ---------------------------------- Param prep ---------------------------------

def prepare_params(params, nhead):
    """One-time prep (outside jit): split/stack per-layer weights, cast MXU operands to bf16,
    and fold the 1/sqrt(head_dim) softmax scale into the q projections."""
    D = params[0]["ln1_g"].shape[0]
    assert D % nhead == 0
    FF = params[0]["lin1_w"].shape[0]
    scale = 1.0 / math.sqrt(D // nhead)

    def stack(fn):
        return jnp.stack([fn(p) for p in params], axis=0)

    def scaled_w(a):   # scale the q rows of in_proj_w
        w = a["in_proj_w"]
        return jnp.concatenate([w[:D] * scale, w[D:]], axis=0)

    def scaled_b(a):
        b = a["in_proj_b"]
        return jnp.concatenate([b[:D] * scale, b[D:]], axis=0)

    return {
        "ln1_g": stack(lambda p: p["ln1_g"].reshape(1, D)),
        "ln1_b": stack(lambda p: p["ln1_b"].reshape(1, D)),
        "wqkv": stack(lambda p: scaled_w(p["self_attn"]).astype(MXU_DTYPE)),          # (3D, D)
        "bqkv": stack(lambda p: scaled_b(p["self_attn"]).reshape(1, 3 * D)),
        "wo1": stack(lambda p: p["self_attn"]["out_proj_w"].astype(MXU_DTYPE)),       # (D, D)
        "bo1": stack(lambda p: p["self_attn"]["out_proj_b"].reshape(1, D)),
        "ln2_g": stack(lambda p: p["ln2_g"].reshape(1, D)),
        "ln2_b": stack(lambda p: p["ln2_b"].reshape(1, D)),
        "wq2": stack(lambda p: (p["cross_attn"]["in_proj_w"][:D] * scale).astype(MXU_DTYPE)),
        "bq2": stack(lambda p: (p["cross_attn"]["in_proj_b"][:D] * scale).reshape(1, D)),
        "wkv2": stack(lambda p: p["cross_attn"]["in_proj_w"][D:].astype(MXU_DTYPE)),  # (2D, D)
        "bkv2": stack(lambda p: p["cross_attn"]["in_proj_b"][D:].reshape(1, 2 * D)),
        "wo2": stack(lambda p: p["cross_attn"]["out_proj_w"].astype(MXU_DTYPE)),
        "bo2": stack(lambda p: p["cross_attn"]["out_proj_b"].reshape(1, D)),
        "ln3_g": stack(lambda p: p["ln3_g"].reshape(1, D)),
        "ln3_b": stack(lambda p: p["ln3_b"].reshape(1, D)),
        "w1": stack(lambda p: p["lin1_w"].astype(MXU_DTYPE)),                         # (FF, D)
        "b1": stack(lambda p: p["lin1_b"].reshape(1, FF)),
        "w2": stack(lambda p: p["lin2_w"].astype(MXU_DTYPE)),                         # (D, FF)
        "b2": stack(lambda p: p["lin2_b"].reshape(1, D)),
    }


def init_params(key, d_model, nhead, dim_ff, n_layers):
    params = []
    for _ in range(n_layers):
        keys = jax.random.split(key, 9)
        key = keys[0]

        def nrm(k, shape):
            return (0.02 * jax.random.normal(k, shape)).astype(jnp.float32)

        layer = {
            "self_attn": {
                "in_proj_w": nrm(keys[1], (3 * d_model, d_model)),
                "in_proj_b": jnp.zeros((3 * d_model,), jnp.float32),
                "out_proj_w": nrm(keys[2], (d_model, d_model)),
                "out_proj_b": jnp.zeros((d_model,), jnp.float32),
            },
            "cross_attn": {
                "in_proj_w": nrm(keys[3], (3 * d_model, d_model)),
                "in_proj_b": jnp.zeros((3 * d_model,), jnp.float32),
                "out_proj_w": nrm(keys[4], (d_model, d_model)),
                "out_proj_b": jnp.zeros((d_model,), jnp.float32),
            },
            "lin1_w": nrm(keys[5], (dim_ff, d_model)),
            "lin1_b": jnp.zeros((dim_ff,), jnp.float32),
            "lin2_w": nrm(keys[6], (d_model, dim_ff)),
            "lin2_b": jnp.zeros((d_model,), jnp.float32),
            "ln1_g": jnp.ones((d_model,), jnp.float32),
            "ln1_b": jnp.zeros((d_model,), jnp.float32),
            "ln2_g": jnp.ones((d_model,), jnp.float32),
            "ln2_b": jnp.zeros((d_model,), jnp.float32),
            "ln3_g": jnp.ones((d_model,), jnp.float32),
            "ln3_b": jnp.zeros((d_model,), jnp.float32),
        }
        params.append(layer)
    return params


# ------------------------------ pure-JAX f32 reference ------------------------------

def _reference_forward(x, memory, params, nhead):
    def ln(x, g, b):
        mu = jnp.mean(x, -1, keepdims=True)
        var = jnp.mean((x - mu) ** 2, -1, keepdims=True)
        return (x - mu) / jnp.sqrt(var + 1e-5) * g + b

    def mha(q_in, kv_in, a):
        B, Sq, D = q_in.shape
        Sk = kv_in.shape[1]
        Dh = D // nhead
        w, b = a["in_proj_w"], a["in_proj_b"]
        q = q_in @ w[:D].T + b[:D]
        k = kv_in @ w[D:2 * D].T + b[D:2 * D]
        v = kv_in @ w[2 * D:].T + b[2 * D:]
        q = q.reshape(B, Sq, nhead, Dh).transpose(0, 2, 1, 3)
        k = k.reshape(B, Sk, nhead, Dh).transpose(0, 2, 1, 3)
        v = v.reshape(B, Sk, nhead, Dh).transpose(0, 2, 1, 3)
        s = jnp.einsum("bhqd,bhkd->bhqk", q, k) / math.sqrt(Dh)
        p = jax.nn.softmax(s, axis=-1)
        ctx = jnp.einsum("bhqk,bhkd->bhqd", p, v).transpose(0, 2, 1, 3).reshape(B, Sq, D)
        return ctx @ a["out_proj_w"].T + a["out_proj_b"]

    for p in params:
        x = x + mha(ln(x, p["ln1_g"], p["ln1_b"]), ln(x, p["ln1_g"], p["ln1_b"]), p["self_attn"])
        x = x + mha(ln(x, p["ln2_g"], p["ln2_b"]), memory, p["cross_attn"])
        h = ln(x, p["ln3_g"], p["ln3_b"])
        x = x + (jnp.maximum(h @ p["lin1_w"].T + p["lin1_b"], 0.0) @ p["lin2_w"].T + p["lin2_b"])
    return x


# ------------------------------------ Main --------------------------------------

if __name__ == "__main__":
    # Small shapes consistent with the module (d_model divisible by nhead).
    B, S_TGT, S_MEM = 2, 8, 16
    D_MODEL, NHEAD, DIM_FF, N_LAYERS = 32, 4, 64, 2

    root = jax.random.PRNGKey(0)
    k_tgt, k_mem, k_par = jax.random.split(root, 3)

    target_tokens = jax.random.normal(k_tgt, (B, S_TGT, D_MODEL), dtype=jnp.float32)
    memory = jax.random.normal(k_mem, (B, S_MEM, D_MODEL), dtype=jnp.float32)
    params = init_params(k_par, D_MODEL, NHEAD, DIM_FF, N_LAYERS)
    prep = prepare_params(params, NHEAD)           # one-time bf16 split/cast + scale fold

    out = transformer_decoder(target_tokens, memory, prep, NHEAD)
    out = jax.block_until_ready(out)

    assert out.shape == (B, S_TGT, D_MODEL), out.shape
    assert jnp.all(jnp.isfinite(out))

    ref = _reference_forward(target_tokens, memory, params, NHEAD)
    max_err = float(jnp.max(jnp.abs(out - ref)))
    assert max_err < 5e-2, max_err                 # bf16 MXU + approx reciprocal tolerance

    print("KERNEL_OK")
</pallas_src>

<mosaic_0001>
module attributes {stable_mosaic.version = 11 : i64} {
  func.func @_decoder_kernel(%arg0: i32, %arg1: i32, %arg2: memref<1x8x32xf32, #tpu.memory_space<vmem>>, %arg3: memref<1x16x32xf32, #tpu.memory_space<vmem>>, %arg4: memref<1x1x32xf32, #tpu.memory_space<vmem>>, %arg5: memref<1x1x32xf32, #tpu.memory_space<vmem>>, %arg6: memref<1x96x32xbf16, #tpu.memory_space<vmem>>, %arg7: memref<1x1x96xf32, #tpu.memory_space<vmem>>, %arg8: memref<1x32x32xbf16, #tpu.memory_space<vmem>>, %arg9: memref<1x1x32xf32, #tpu.memory_space<vmem>>, %arg10: memref<1x1x32xf32, #tpu.memory_space<vmem>>, %arg11: memref<1x1x32xf32, #tpu.memory_space<vmem>>, %arg12: memref<1x32x32xbf16, #tpu.memory_space<vmem>>, %arg13: memref<1x1x32xf32, #tpu.memory_space<vmem>>, %arg14: memref<1x64x32xbf16, #tpu.memory_space<vmem>>, %arg15: memref<1x1x64xf32, #tpu.memory_space<vmem>>, %arg16: memref<1x32x32xbf16, #tpu.memory_space<vmem>>, %arg17: memref<1x1x32xf32, #tpu.memory_space<vmem>>, %arg18: memref<1x1x32xf32, #tpu.memory_space<vmem>>, %arg19: memref<1x1x32xf32, #tpu.memory_space<vmem>>, %arg20: memref<1x64x32xbf16, #tpu.memory_space<vmem>>, %arg21: memref<1x1x64xf32, #tpu.memory_space<vmem>>, %arg22: memref<1x32x64xbf16, #tpu.memory_space<vmem>>, %arg23: memref<1x1x32xf32, #tpu.memory_space<vmem>>, %arg24: memref<1x8x32xf32, #tpu.memory_space<vmem>>, %arg25: memref<8x32xf32, #tpu.memory_space<vmem>>) attributes {dimension_semantics = [#tpu.dimension_semantics<parallel>, #tpu.dimension_semantics<arbitrary>], iteration_bounds = array<i64: 2, 2>, scalar_prefetch = 0 : i64, scratch_operands = 1 : i64, tpu.core_type = #tpu.core_type<tc>, window_params = [{transform_indices = @transform_0, window_bounds = array<i64: 1, 8, 32>}, {transform_indices = @transform_1, window_bounds = array<i64: 1, 16, 32>}, {transform_indices = @transform_2, window_bounds = array<i64: 1, 1, 32>}, {transform_indices = @transform_3, window_bounds = array<i64: 1, 1, 32>}, {transform_indices = @transform_4, window_bounds = array<i64: 1, 96, 32>}, {transform_indices = @transform_5, window_bounds = array<i64: 1, 1, 96>}, {transform_indices = @transform_6, window_bounds = array<i64: 1, 32, 32>}, {transform_indices = @transform_7, window_bounds = array<i64: 1, 1, 32>}, {transform_indices = @transform_8, window_bounds = array<i64: 1, 1, 32>}, {transform_indices = @transform_9, window_bounds = array<i64: 1, 1, 32>}, {transform_indices = @transform_10, window_bounds = array<i64: 1, 32, 32>}, {transform_indices = @transform_11, window_bounds = array<i64: 1, 1, 32>}, {transform_indices = @transform_12, window_bounds = array<i64: 1, 64, 32>}, {transform_indices = @transform_13, window_bounds = array<i64: 1, 1, 64>}, {transform_indices = @transform_14, window_bounds = array<i64: 1, 32, 32>}, {transform_indices = @transform_15, window_bounds = array<i64: 1, 1, 32>}, {transform_indices = @transform_16, window_bounds = array<i64: 1, 1, 32>}, {transform_indices = @transform_17, window_bounds = array<i64: 1, 1, 32>}, {transform_indices = @transform_18, window_bounds = array<i64: 1, 64, 32>}, {transform_indices = @transform_19, window_bounds = array<i64: 1, 1, 64>}, {transform_indices = @transform_20, window_bounds = array<i64: 1, 32, 64>}, {transform_indices = @transform_21, window_bounds = array<i64: 1, 1, 32>}, {transform_indices = @transform_22, window_bounds = array<i64: 1, 8, 32>}]} {
    %c0_i32 = arith.constant 0 : i32
    %0 = arith.cmpi eq, %arg1, %c0_i32 : i32
    %1 = arith.extui %0 : i1 to i32
    %c0_i32_0 = arith.constant 0 : i32
    %2 = arith.cmpi ne, %1, %c0_i32_0 : i32
    scf.if %2 {
      %c0_130 = arith.constant 0 : index
      %c0_131 = arith.constant 0 : index
      %c0_132 = arith.constant 0 : index
      %336 = vector.load %arg2[%c0_130, %c0_131, %c0_132] : memref<1x8x32xf32, #tpu.memory_space<vmem>>, vector<1x8x32xf32>
      %337 = vector.shape_cast %336 : vector<1x8x32xf32> to vector<8x32xf32>
      %c0_133 = arith.constant 0 : index
      %c0_134 = arith.constant 0 : index
      %338 = vector.load %arg25[%c0_133, %c0_134] : memref<8x32xf32, #tpu.memory_space<vmem>>, vector<8x32xf32>
      tpu.vector_store %arg25[%c0_133, %c0_134], %337 {strides = array<i32>} : memref<8x32xf32, #tpu.memory_space<vmem>>, vector<8x32xf32>,
    } else {
    }
    %c0 = arith.constant 0 : index
    %c0_1 = arith.constant 0 : index
    %3 = vector.load %arg25[%c0, %c0_1] : memref<8x32xf32, #tpu.memory_space<vmem>>, vector<8x32xf32>
    %c0_2 = arith.constant 0 : index
    %c0_3 = arith.constant 0 : index
    %c0_4 = arith.constant 0 : index
    %4 = vector.load %arg4[%c0_2, %c0_3, %c0_4] : memref<1x1x32xf32, #tpu.memory_space<vmem>>, vector<1x1x32xf32>
    %5 = vector.shape_cast %4 : vector<1x1x32xf32> to vector<1x32xf32>
    %c0_5 = arith.constant 0 : index
    %c0_6 = arith.constant 0 : index
    %c0_7 = arith.constant 0 : index
    %6 = vector.load %arg5[%c0_5, %c0_6, %c0_7] : memref<1x1x32xf32, #tpu.memory_space<vmem>>, vector<1x1x32xf32>
    %7 = vector.shape_cast %6 : vector<1x1x32xf32> to vector<1x32xf32>
    %cst = arith.constant dense<0.000000e+00> : vector<8xf32>
    %8 = vector.multi_reduction <add>, %3, %cst [1] : vector<8x32xf32> to vector<8xf32>
    %9 = vector.shape_cast %8 : vector<8xf32> to vector<8x1xf32>
    %cst_8 = arith.constant 3.200000e+01 : f32
    %10 = vector.broadcast %cst_8 : f32 to vector<8x1xf32>
    %11 = arith.divf %9, %10 : vector<8x1xf32>
    %12 = vector.broadcast %11 : vector<8x1xf32> to vector<8x32xf32>
    %13 = arith.subf %3, %12 : vector<8x32xf32>
    %14 = arith.mulf %13, %13 : vector<8x32xf32>
    %cst_9 = arith.constant dense<0.000000e+00> : vector<8xf32>
    %15 = vector.multi_reduction <add>, %14, %cst_9 [1] : vector<8x32xf32> to vector<8xf32>
    %16 = vector.shape_cast %15 : vector<8xf32> to vector<8x1xf32>
    %cst_10 = arith.constant 3.200000e+01 : f32
    %17 = vector.broadcast %cst_10 : f32 to vector<8x1xf32>
    %18 = arith.divf %16, %17 : vector<8x1xf32>
    %19 = vector.broadcast %11 : vector<8x1xf32> to vector<8x32xf32>
    %20 = arith.subf %3, %19 : vector<8x32xf32>
    %cst_11 = arith.constant 9.99999974E-6 : f32
    %21 = vector.broadcast %cst_11 : f32 to vector<8x1xf32>
    %22 = arith.addf %18, %21 : vector<8x1xf32>
    %23 = math.rsqrt %22 : vector<8x1xf32>
    %24 = vector.broadcast %23 : vector<8x1xf32> to vector<8x32xf32>
    %25 = arith.mulf %20, %24 : vector<8x32xf32>
    %26 = vector.broadcast %5 : vector<1x32xf32> to vector<8x32xf32>
    %27 = arith.mulf %25, %26 : vector<8x32xf32>
    %28 = vector.broadcast %7 : vector<1x32xf32> to vector<8x32xf32>
    %29 = arith.addf %27, %28 : vector<8x32xf32>
    %c0_12 = arith.constant 0 : index
    %c0_13 = arith.constant 0 : index
    %c0_14 = arith.constant 0 : index
    %30 = vector.load %arg6[%c0_12, %c0_13, %c0_14] : memref<1x96x32xbf16, #tpu.memory_space<vmem>>, vector<1x96x32xbf16>
    %31 = vector.shape_cast %30 : vector<1x96x32xbf16> to vector<96x32xbf16>
    %c0_15 = arith.constant 0 : index
    %c0_16 = arith.constant 0 : index
    %c0_17 = arith.constant 0 : index
    %32 = vector.load %arg7[%c0_15, %c0_16, %c0_17] : memref<1x1x96xf32, #tpu.memory_space<vmem>>, vector<1x1x96xf32>
    %33 = vector.shape_cast %32 : vector<1x1x96xf32> to vector<1x96xf32>
    %34 = arith.truncf %29 : vector<8x32xf32> to vector<8x32xbf16>
    %cst_18 = arith.constant dense<0.000000e+00> : vector<8x96xf32>
    %35 = tpu.matmul %34, %31, %cst_18 {dimension_numbers = #tpu.dot_dimension_numbers<[1], [1], [0], [0], [0, 0, 1, 0], [], []>} : vector<8x32xbf16>, vector<96x32xbf16>, vector<8x96xf32> -> vector<8x96xf32>
    %36 = vector.broadcast %33 : vector<1x96xf32> to vector<8x96xf32>
    %37 = arith.addf %35, %36 : vector<8x96xf32>
    %38 = vector.extract_strided_slice %37 {offsets = [0, 0], sizes = [8, 32], strides = [1, 1]} : vector<8x96xf32> to vector<8x32xf32>
    %39 = vector.extract_strided_slice %37 {offsets = [0, 32], sizes = [8, 32], strides = [1, 1]} : vector<8x96xf32> to vector<8x32xf32>
    %40 = vector.extract_strided_slice %37 {offsets = [0, 64], sizes = [8, 32], strides = [1, 1]} : vector<8x96xf32> to vector<8x32xf32>
    %c0_19 = arith.constant 0 : index
    %c0_20 = arith.constant 0 : index
    %c0_21 = arith.constant 0 : index
    %41 = vector.load %arg8[%c0_19, %c0_20, %c0_21] : memref<1x32x32xbf16, #tpu.memory_space<vmem>>, vector<1x32x32xbf16>
    %42 = vector.shape_cast %41 : vector<1x32x32xbf16> to vector<32x32xbf16>
    %c0_22 = arith.constant 0 : index
    %c0_23 = arith.constant 0 : index
    %c0_24 = arith.constant 0 : index
    %43 = vector.load %arg9[%c0_22, %c0_23, %c0_24] : memref<1x1x32xf32, #tpu.memory_space<vmem>>, vector<1x1x32xf32>
    %44 = vector.shape_cast %43 : vector<1x1x32xf32> to vector<1x32xf32>
    %cst_25 = arith.constant 0.000000e+00 : f32
    %45 = vector.broadcast %cst_25 : f32 to vector<8x32xf32>
    %46 = vector.extract_strided_slice %38 {offsets = [0, 0], sizes = [8, 8], strides = [1, 1]} : vector<8x32xf32> to vector<8x8xf32>
    %47 = arith.truncf %46 : vector<8x8xf32> to vector<8x8xbf16>
    %48 = vector.extract_strided_slice %39 {offsets = [0, 0], sizes = [8, 8], strides = [1, 1]} : vector<8x32xf32> to vector<8x8xf32>
    %49 = arith.truncf %48 : vector<8x8xf32> to vector<8x8xbf16>
    %50 = vector.extract_strided_slice %40 {offsets = [0, 0], sizes = [8, 8], strides = [1, 1]} : vector<8x32xf32> to vector<8x8xf32>
    %51 = arith.truncf %50 : vector<8x8xf32> to vector<8x8xbf16>
    %cst_26 = arith.constant dense<0.000000e+00> : vector<8x8xf32>
    %52 = tpu.matmul %47, %49, %cst_26 {dimension_numbers = #tpu.dot_dimension_numbers<[1], [1], [0], [0], [0, 0, 1, 0], [], []>} : vector<8x8xbf16>, vector<8x8xbf16>, vector<8x8xf32> -> vector<8x8xf32>
    %cst_27 = arith.constant dense<0xFF800000> : vector<8xf32>
    %53 = vector.multi_reduction <maximumf>, %52, %cst_27 [1] : vector<8x8xf32> to vector<8xf32>
    %54 = vector.shape_cast %53 : vector<8xf32> to vector<8x1xf32>
    %55 = vector.broadcast %54 : vector<8x1xf32> to vector<8x8xf32>
    %56 = arith.subf %52, %55 : vector<8x8xf32>
    %57 = math.exp %56 : vector<8x8xf32>
    %cst_28 = arith.constant dense<0.000000e+00> : vector<8xf32>
    %58 = vector.multi_reduction <add>, %57, %cst_28 [1] : vector<8x8xf32> to vector<8xf32>
    %59 = vector.shape_cast %58 : vector<8xf32> to vector<8x1xf32>
    %60 = tpu.reciprocal %59 {approx = true} : vector<8x1xf32> -> vector<8x1xf32>
    %61 = vector.broadcast %60 : vector<8x1xf32> to vector<8x8xf32>
    %62 = arith.mulf %57, %61 : vector<8x8xf32>
    %63 = arith.truncf %62 : vector<8x8xf32> to vector<8x8xbf16>
    %cst_29 = arith.constant dense<0.000000e+00> : vector<8x8xf32>
    %64 = tpu.matmul %63, %51, %cst_29 {dimension_numbers = #tpu.dot_dimension_numbers<[1], [0], [0], [1], [0, 0, 1, 1], [], []>} : vector<8x8xbf16>, vector<8x8xbf16>, vector<8x8xf32> -> vector<8x8xf32>
    %65 = arith.truncf %64 : vector<8x8xf32> to vector<8x8xbf16>
    %66 = vector.extract_strided_slice %42 {offsets = [0, 0], sizes = [32, 8], strides = [1, 1]} : vector<32x32xbf16> to vector<32x8xbf16>
    %cst_30 = arith.constant dense<0.000000e+00> : vector<8x32xf32>
    %67 = tpu.matmul %65, %66, %cst_30 {dimension_numbers = #tpu.dot_dimension_numbers<[1], [1], [0], [0], [0, 0, 1, 0], [], []>} : vector<8x8xbf16>, vector<32x8xbf16>, vector<8x32xf32> -> vector<8x32xf32>
    %68 = arith.addf %45, %67 : vector<8x32xf32>
    %69 = vector.extract_strided_slice %38 {offsets = [0, 8], sizes = [8, 8], strides = [1, 1]} : vector<8x32xf32> to vector<8x8xf32>
    %70 = arith.truncf %69 : vector<8x8xf32> to vector<8x8xbf16>
    %71 = vector.extract_strided_slice %39 {offsets = [0, 8], sizes = [8, 8], strides = [1, 1]} : vector<8x32xf32> to vector<8x8xf32>
    %72 = arith.truncf %71 : vector<8x8xf32> to vector<8x8xbf16>
    %73 = vector.extract_strided_slice %40 {offsets = [0, 8], sizes = [8, 8], strides = [1, 1]} : vector<8x32xf32> to vector<8x8xf32>
    %74 = arith.truncf %73 : vector<8x8xf32> to vector<8x8xbf16>
    %cst_31 = arith.constant dense<0.000000e+00> : vector<8x8xf32>
    %75 = tpu.matmul %70, %72, %cst_31 {dimension_numbers = #tpu.dot_dimension_numbers<[1], [1], [0], [0], [0, 0, 1, 0], [], []>} : vector<8x8xbf16>, vector<8x8xbf16>, vector<8x8xf32> -> vector<8x8xf32>
    %cst_32 = arith.constant dense<0xFF800000> : vector<8xf32>
    %76 = vector.multi_reduction <maximumf>, %75, %cst_32 [1] : vector<8x8xf32> to vector<8xf32>
    %77 = vector.shape_cast %76 : vector<8xf32> to vector<8x1xf32>
    %78 = vector.broadcast %77 : vector<8x1xf32> to vector<8x8xf32>
    %79 = arith.subf %75, %78 : vector<8x8xf32>
    %80 = math.exp %79 : vector<8x8xf32>
    %cst_33 = arith.constant dense<0.000000e+00> : vector<8xf32>
    %81 = vector.multi_reduction <add>, %80, %cst_33 [1] : vector<8x8xf32> to vector<8xf32>
    %82 = vector.shape_cast %81 : vector<8xf32> to vector<8x1xf32>
    %83 = tpu.reciprocal %82 {approx = true} : vector<8x1xf32> -> vector<8x1xf32>
    %84 = vector.broadcast %83 : vector<8x1xf32> to vector<8x8xf32>
    %85 = arith.mulf %80, %84 : vector<8x8xf32>
    %86 = arith.truncf %85 : vector<8x8xf32> to vector<8x8xbf16>
    %cst_34 = arith.constant dense<0.000000e+00> : vector<8x8xf32>
    %87 = tpu.matmul %86, %74, %cst_34 {dimension_numbers = #tpu.dot_dimension_numbers<[1], [0], [0], [1], [0, 0, 1, 1], [], []>} : vector<8x8xbf16>, vector<8x8xbf16>, vector<8x8xf32> -> vector<8x8xf32>
    %88 = arith.truncf %87 : vector<8x8xf32> to vector<8x8xbf16>
    %89 = vector.extract_strided_slice %42 {offsets = [0, 8], sizes = [32, 8], strides = [1, 1]} : vector<32x32xbf16> to vector<32x8xbf16>
    %cst_35 = arith.constant dense<0.000000e+00> : vector<8x32xf32>
    %90 = tpu.matmul %88, %89, %cst_35 {dimension_numbers = #tpu.dot_dimension_numbers<[1], [1], [0], [0], [0, 0, 1, 0], [], []>} : vector<8x8xbf16>, vector<32x8xbf16>, vector<8x32xf32> -> vector<8x32xf32>
    %91 = arith.addf %68, %90 : vector<8x32xf32>
    %92 = vector.extract_strided_slice %38 {offsets = [0, 16], sizes = [8, 8], strides = [1, 1]} : vector<8x32xf32> to vector<8x8xf32>
    %93 = arith.truncf %92 : vector<8x8xf32> to vector<8x8xbf16>
    %94 = vector.extract_strided_slice %39 {offsets = [0, 16], sizes = [8, 8], strides = [1, 1]} : vector<8x32xf32> to vector<8x8xf32>
    %95 = arith.truncf %94 : vector<8x8xf32> to vector<8x8xbf16>
    %96 = vector.extract_strided_slice %40 {offsets = [0, 16], sizes = [8, 8], strides = [1, 1]} : vector<8x32xf32> to vector<8x8xf32>
    %97 = arith.truncf %96 : vector<8x8xf32> to vector<8x8xbf16>
    %cst_36 = arith.constant dense<0.000000e+00> : vector<8x8xf32>
    %98 = tpu.matmul %93, %95, %cst_36 {dimension_numbers = #tpu.dot_dimension_numbers<[1], [1], [0], [0], [0, 0, 1, 0], [], []>} : vector<8x8xbf16>, vector<8x8xbf16>, vector<8x8xf32> -> vector<8x8xf32>
    %cst_37 = arith.constant dense<0xFF800000> : vector<8xf32>
    %99 = vector.multi_reduction <maximumf>, %98, %cst_37 [1] : vector<8x8xf32> to vector<8xf32>
    %100 = vector.shape_cast %99 : vector<8xf32> to vector<8x1xf32>
    %101 = vector.broadcast %100 : vector<8x1xf32> to vector<8x8xf32>
    %102 = arith.subf %98, %101 : vector<8x8xf32>
    %103 = math.exp %102 : vector<8x8xf32>
    %cst_38 = arith.constant dense<0.000000e+00> : vector<8xf32>
    %104 = vector.multi_reduction <add>, %103, %cst_38 [1] : vector<8x8xf32> to vector<8xf32>
    %105 = vector.shape_cast %104 : vector<8xf32> to vector<8x1xf32>
    %106 = tpu.reciprocal %105 {approx = true} : vector<8x1xf32> -> vector<8x1xf32>
    %107 = vector.broadcast %106 : vector<8x1xf32> to vector<8x8xf32>
    %108 = arith.mulf %103, %107 : vector<8x8xf32>
    %109 = arith.truncf %108 : vector<8x8xf32> to vector<8x8xbf16>
    %cst_39 = arith.constant dense<0.000000e+00> : vector<8x8xf32>
    %110 = tpu.matmul %109, %97, %cst_39 {dimension_numbers = #tpu.dot_dimension_numbers<[1], [0], [0], [1], [0, 0, 1, 1], [], []>} : vector<8x8xbf16>, vector<8x8xbf16>, vector<8x8xf32> -> vector<8x8xf32>
    %111 = arith.truncf %110 : vector<8x8xf32> to vector<8x8xbf16>
    %112 = vector.extract_strided_slice %42 {offsets = [0, 16], sizes = [32, 8], strides = [1, 1]} : vector<32x32xbf16> to vector<32x8xbf16>
    %cst_40 = arith.constant dense<0.000000e+00> : vector<8x32xf32>
    %113 = tpu.matmul %111, %112, %cst_40 {dimension_numbers = #tpu.dot_dimension_numbers<[1], [1], [0], [0], [0, 0, 1, 0], [], []>} : vector<8x8xbf16>, vector<32x8xbf16>, vector<8x32xf32> -> vector<8x32xf32>
    %114 = arith.addf %91, %113 : vector<8x32xf32>
    %115 = vector.extract_strided_slice %38 {offsets = [0, 24], sizes = [8, 8], strides = [1, 1]} : vector<8x32xf32> to vector<8x8xf32>
    %116 = arith.truncf %115 : vector<8x8xf32> to vector<8x8xbf16>
    %117 = vector.extract_strided_slice %39 {offsets = [0, 24], sizes = [8, 8], strides = [1, 1]} : vector<8x32xf32> to vector<8x8xf32>
    %118 = arith.truncf %117 : vector<8x8xf32> to vector<8x8xbf16>
    %119 = vector.extract_strided_slice %40 {offsets = [0, 24], sizes = [8, 8], strides = [1, 1]} : vector<8x32xf32> to vector<8x8xf32>
    %120 = arith.truncf %119 : vector<8x8xf32> to vector<8x8xbf16>
    %cst_41 = arith.constant dense<0.000000e+00> : vector<8x8xf32>
    %121 = tpu.matmul %116, %118, %cst_41 {dimension_numbers = #tpu.dot_dimension_numbers<[1], [1], [0], [0], [0, 0, 1, 0], [], []>} : vector<8x8xbf16>, vector<8x8xbf16>, vector<8x8xf32> -> vector<8x8xf32>
    %cst_42 = arith.constant dense<0xFF800000> : vector<8xf32>
    %122 = vector.multi_reduction <maximumf>, %121, %cst_42 [1] : vector<8x8xf32> to vector<8xf32>
    %123 = vector.shape_cast %122 : vector<8xf32> to vector<8x1xf32>
    %124 = vector.broadcast %123 : vector<8x1xf32> to vector<8x8xf32>
    %125 = arith.subf %121, %124 : vector<8x8xf32>
    %126 = math.exp %125 : vector<8x8xf32>
    %cst_43 = arith.constant dense<0.000000e+00> : vector<8xf32>
    %127 = vector.multi_reduction <add>, %126, %cst_43 [1] : vector<8x8xf32> to vector<8xf32>
    %128 = vector.shape_cast %127 : vector<8xf32> to vector<8x1xf32>
    %129 = tpu.reciprocal %128 {approx = true} : vector<8x1xf32> -> vector<8x1xf32>
    %130 = vector.broadcast %129 : vector<8x1xf32> to vector<8x8xf32>
    %131 = arith.mulf %126, %130 : vector<8x8xf32>
    %132 = arith.truncf %131 : vector<8x8xf32> to vector<8x8xbf16>
    %cst_44 = arith.constant dense<0.000000e+00> : vector<8x8xf32>
    %133 = tpu.matmul %132, %120, %cst_44 {dimension_numbers = #tpu.dot_dimension_numbers<[1], [0], [0], [1], [0, 0, 1, 1], [], []>} : vector<8x8xbf16>, vector<8x8xbf16>, vector<8x8xf32> -> vector<8x8xf32>
    %134 = arith.truncf %133 : vector<8x8xf32> to vector<8x8xbf16>
    %135 = vector.extract_strided_slice %42 {offsets = [0, 24], sizes = [32, 8], strides = [1, 1]} : vector<32x32xbf16> to vector<32x8xbf16>
    %cst_45 = arith.constant dense<0.000000e+00> : vector<8x32xf32>
    %136 = tpu.matmul %134, %135, %cst_45 {dimension_numbers = #tpu.dot_dimension_numbers<[1], [1], [0], [0], [0, 0, 1, 0], [], []>} : vector<8x8xbf16>, vector<32x8xbf16>, vector<8x32xf32> -> vector<8x32xf32>
    %137 = arith.addf %114, %136 : vector<8x32xf32>
    %138 = vector.broadcast %44 : vector<1x32xf32> to vector<8x32xf32>
    %139 = arith.addf %137, %138 : vector<8x32xf32>
    %140 = arith.addf %3, %139 : vector<8x32xf32>
    %c0_46 = arith.constant 0 : index
    %c0_47 = arith.constant 0 : index
    %c0_48 = arith.constant 0 : index
    %141 = vector.load %arg10[%c0_46, %c0_47, %c0_48] : memref<1x1x32xf32, #tpu.memory_space<vmem>>, vector<1x1x32xf32>
    %142 = vector.shape_cast %141 : vector<1x1x32xf32> to vector<1x32xf32>
    %c0_49 = arith.constant 0 : index
    %c0_50 = arith.constant 0 : index
    %c0_51 = arith.constant 0 : index
    %143 = vector.load %arg11[%c0_49, %c0_50, %c0_51] : memref<1x1x32xf32, #tpu.memory_space<vmem>>, vector<1x1x32xf32>
    %144 = vector.shape_cast %143 : vector<1x1x32xf32> to vector<1x32xf32>
    %cst_52 = arith.constant dense<0.000000e+00> : vector<8xf32>
    %145 = vector.multi_reduction <add>, %140, %cst_52 [1] : vector<8x32xf32> to vector<8xf32>
    %146 = vector.shape_cast %145 : vector<8xf32> to vector<8x1xf32>
    %cst_53 = arith.constant 3.200000e+01 : f32
    %147 = vector.broadcast %cst_53 : f32 to vector<8x1xf32>
    %148 = arith.divf %146, %147 : vector<8x1xf32>
    %149 = vector.broadcast %148 : vector<8x1xf32> to vector<8x32xf32>
    %150 = arith.subf %140, %149 : vector<8x32xf32>
    %151 = arith.mulf %150, %150 : vector<8x32xf32>
    %cst_54 = arith.constant dense<0.000000e+00> : vector<8xf32>
    %152 = vector.multi_reduction <add>, %151, %cst_54 [1] : vector<8x32xf32> to vector<8xf32>
    %153 = vector.shape_cast %152 : vector<8xf32> to vector<8x1xf32>
    %cst_55 = arith.constant 3.200000e+01 : f32
    %154 = vector.broadcast %cst_55 : f32 to vector<8x1xf32>
    %155 = arith.divf %153, %154 : vector<8x1xf32>
    %156 = vector.broadcast %148 : vector<8x1xf32> to vector<8x32xf32>
    %157 = arith.subf %140, %156 : vector<8x32xf32>
    %cst_56 = arith.constant 9.99999974E-6 : f32
    %158 = vector.broadcast %cst_56 : f32 to vector<8x1xf32>
    %159 = arith.addf %155, %158 : vector<8x1xf32>
    %160 = math.rsqrt %159 : vector<8x1xf32>
    %161 = vector.broadcast %160 : vector<8x1xf32> to vector<8x32xf32>
    %162 = arith.mulf %157, %161 : vector<8x32xf32>
    %163 = vector.broadcast %142 : vector<1x32xf32> to vector<8x32xf32>
    %164 = arith.mulf %162, %163 : vector<8x32xf32>
    %165 = vector.broadcast %144 : vector<1x32xf32> to vector<8x32xf32>
    %166 = arith.addf %164, %165 : vector<8x32xf32>
    %c0_57 = arith.constant 0 : index
    %c0_58 = arith.constant 0 : index
    %c0_59 = arith.constant 0 : index
    %167 = vector.load %arg12[%c0_57, %c0_58, %c0_59] : memref<1x32x32xbf16, #tpu.memory_space<vmem>>, vector<1x32x32xbf16>
    %168 = vector.shape_cast %167 : vector<1x32x32xbf16> to vector<32x32xbf16>
    %c0_60 = arith.constant 0 : index
    %c0_61 = arith.constant 0 : index
    %c0_62 = arith.constant 0 : index
    %169 = vector.load %arg13[%c0_60, %c0_61, %c0_62] : memref<1x1x32xf32, #tpu.memory_space<vmem>>, vector<1x1x32xf32>
    %170 = vector.shape_cast %169 : vector<1x1x32xf32> to vector<1x32xf32>
    %171 = arith.truncf %166 : vector<8x32xf32> to vector<8x32xbf16>
    %cst_63 = arith.constant dense<0.000000e+00> : vector<8x32xf32>
    %172 = tpu.matmul %171, %168, %cst_63 {dimension_numbers = #tpu.dot_dimension_numbers<[1], [1], [0], [0], [0, 0, 1, 0], [], []>} : vector<8x32xbf16>, vector<32x32xbf16>, vector<8x32xf32> -> vector<8x32xf32>
    %173 = vector.broadcast %170 : vector<1x32xf32> to vector<8x32xf32>
    %174 = arith.addf %172, %173 : vector<8x32xf32>
    %c0_64 = arith.constant 0 : index
    %c0_65 = arith.constant 0 : index
    %c0_66 = arith.constant 0 : index
    %175 = vector.load %arg3[%c0_64, %c0_65, %c0_66] : memref<1x16x32xf32, #tpu.memory_space<vmem>>, vector<1x16x32xf32>
    %176 = vector.shape_cast %175 : vector<1x16x32xf32> to vector<16x32xf32>
    %c0_67 = arith.constant 0 : index
    %c0_68 = arith.constant 0 : index
    %c0_69 = arith.constant 0 : index
    %177 = vector.load %arg14[%c0_67, %c0_68, %c0_69] : memref<1x64x32xbf16, #tpu.memory_space<vmem>>, vector<1x64x32xbf16>
    %178 = vector.shape_cast %177 : vector<1x64x32xbf16> to vector<64x32xbf16>
    %c0_70 = arith.constant 0 : index
    %c0_71 = arith.constant 0 : index
    %c0_72 = arith.constant 0 : index
    %179 = vector.load %arg15[%c0_70, %c0_71, %c0_72] : memref<1x1x64xf32, #tpu.memory_space<vmem>>, vector<1x1x64xf32>
    %180 = vector.shape_cast %179 : vector<1x1x64xf32> to vector<1x64xf32>
    %181 = arith.truncf %176 : vector<16x32xf32> to vector<16x32xbf16>
    %cst_73 = arith.constant dense<0.000000e+00> : vector<16x64xf32>
    %182 = tpu.matmul %181, %178, %cst_73 {dimension_numbers = #tpu.dot_dimension_numbers<[1], [1], [0], [0], [0, 0, 1, 0], [], []>} : vector<16x32xbf16>, vector<64x32xbf16>, vector<16x64xf32> -> vector<16x64xf32>
    %183 = vector.broadcast %180 : vector<1x64xf32> to vector<16x64xf32>
    %184 = arith.addf %182, %183 : vector<16x64xf32>
    %185 = vector.extract_strided_slice %184 {offsets = [0, 0], sizes = [16, 32], strides = [1, 1]} : vector<16x64xf32> to vector<16x32xf32>
    %186 = vector.extract_strided_slice %184 {offsets = [0, 32], sizes = [16, 32], strides = [1, 1]} : vector<16x64xf32> to vector<16x32xf32>
    %c0_74 = arith.constant 0 : index
    %c0_75 = arith.constant 0 : index
    %c0_76 = arith.constant 0 : index
    %187 = vector.load %arg16[%c0_74, %c0_75, %c0_76] : memref<1x32x32xbf16, #tpu.memory_space<vmem>>, vector<1x32x32xbf16>
    %188 = vector.shape_cast %187 : vector<1x32x32xbf16> to vector<32x32xbf16>
    %c0_77 = arith.constant 0 : index
    %c0_78 = arith.constant 0 : index
    %c0_79 = arith.constant 0 : index
    %189 = vector.load %arg17[%c0_77, %c0_78, %c0_79] : memref<1x1x32xf32, #tpu.memory_space<vmem>>, vector<1x1x32xf32>
    %190 = vector.shape_cast %189 : vector<1x1x32xf32> to vector<1x32xf32>
    %cst_80 = arith.constant 0.000000e+00 : f32
    %191 = vector.broadcast %cst_80 : f32 to vector<8x32xf32>
    %192 = vector.extract_strided_slice %174 {offsets = [0, 0], sizes = [8, 8], strides = [1, 1]} : vector<8x32xf32> to vector<8x8xf32>
    %193 = arith.truncf %192 : vector<8x8xf32> to vector<8x8xbf16>
    %194 = vector.extract_strided_slice %185 {offsets = [0, 0], sizes = [16, 8], strides = [1, 1]} : vector<16x32xf32> to vector<16x8xf32>
    %195 = arith.truncf %194 : vector<16x8xf32> to vector<16x8xbf16>
    %196 = vector.extract_strided_slice %186 {offsets = [0, 0], sizes = [16, 8], strides = [1, 1]} : vector<16x32xf32> to vector<16x8xf32>
    %197 = arith.truncf %196 : vector<16x8xf32> to vector<16x8xbf16>
    %cst_81 = arith.constant dense<0.000000e+00> : vector<8x16xf32>
    %198 = tpu.matmul %193, %195, %cst_81 {dimension_numbers = #tpu.dot_dimension_numbers<[1], [1], [0], [0], [0, 0, 1, 0], [], []>} : vector<8x8xbf16>, vector<16x8xbf16>, vector<8x16xf32> -> vector<8x16xf32>
    %cst_82 = arith.constant dense<0xFF800000> : vector<8xf32>
    %199 = vector.multi_reduction <maximumf>, %198, %cst_82 [1] : vector<8x16xf32> to vector<8xf32>
    %200 = vector.shape_cast %199 : vector<8xf32> to vector<8x1xf32>
    %201 = vector.broadcast %200 : vector<8x1xf32> to vector<8x16xf32>
    %202 = arith.subf %198, %201 : vector<8x16xf32>
    %203 = math.exp %202 : vector<8x16xf32>
    %cst_83 = arith.constant dense<0.000000e+00> : vector<8xf32>
    %204 = vector.multi_reduction <add>, %203, %cst_83 [1] : vector<8x16xf32> to vector<8xf32>
    %205 = vector.shape_cast %204 : vector<8xf32> to vector<8x1xf32>
    %206 = tpu.reciprocal %205 {approx = true} : vector<8x1xf32> -> vector<8x1xf32>
    %207 = vector.broadcast %206 : vector<8x1xf32> to vector<8x16xf32>
    %208 = arith.mulf %203, %207 : vector<8x16xf32>
    %209 = arith.truncf %208 : vector<8x16xf32> to vector<8x16xbf16>
    %cst_84 = arith.constant dense<0.000000e+00> : vector<8x8xf32>
    %210 = tpu.matmul %209, %197, %cst_84 {dimension_numbers = #tpu.dot_dimension_numbers<[1], [0], [0], [1], [0, 0, 1, 1], [], []>} : vector<8x16xbf16>, vector<16x8xbf16>, vector<8x8xf32> -> vector<8x8xf32>
    %211 = arith.truncf %210 : vector<8x8xf32> to vector<8x8xbf16>
    %212 = vector.extract_strided_slice %188 {offsets = [0, 0], sizes = [32, 8], strides = [1, 1]} : vector<32x32xbf16> to vector<32x8xbf16>
    %cst_85 = arith.constant dense<0.000000e+00> : vector<8x32xf32>
    %213 = tpu.matmul %211, %212, %cst_85 {dimension_numbers = #tpu.dot_dimension_numbers<[1], [1], [0], [0], [0, 0, 1, 0], [], []>} : vector<8x8xbf16>, vector<32x8xbf16>, vector<8x32xf32> -> vector<8x32xf32>
    %214 = arith.addf %191, %213 : vector<8x32xf32>
    %215 = vector.extract_strided_slice %174 {offsets = [0, 8], sizes = [8, 8], strides = [1, 1]} : vector<8x32xf32> to vector<8x8xf32>
    %216 = arith.truncf %215 : vector<8x8xf32> to vector<8x8xbf16>
    %217 = vector.extract_strided_slice %185 {offsets = [0, 8], sizes = [16, 8], strides = [1, 1]} : vector<16x32xf32> to vector<16x8xf32>
    %218 = arith.truncf %217 : vector<16x8xf32> to vector<16x8xbf16>
    %219 = vector.extract_strided_slice %186 {offsets = [0, 8], sizes = [16, 8], strides = [1, 1]} : vector<16x32xf32> to vector<16x8xf32>
    %220 = arith.truncf %219 : vector<16x8xf32> to vector<16x8xbf16>
    %cst_86 = arith.constant dense<0.000000e+00> : vector<8x16xf32>
    %221 = tpu.matmul %216, %218, %cst_86 {dimension_numbers = #tpu.dot_dimension_numbers<[1], [1], [0], [0], [0, 0, 1, 0], [], []>} : vector<8x8xbf16>, vector<16x8xbf16>, vector<8x16xf32> -> vector<8x16xf32>
    %cst_87 = arith.constant dense<0xFF800000> : vector<8xf32>
    %222 = vector.multi_reduction <maximumf>, %221, %cst_87 [1] : vector<8x16xf32> to vector<8xf32>
    %223 = vector.shape_cast %222 : vector<8xf32> to vector<8x1xf32>
    %224 = vector.broadcast %223 : vector<8x1xf32> to vector<8x16xf32>
    %225 = arith.subf %221, %224 : vector<8x16xf32>
    %226 = math.exp %225 : vector<8x16xf32>
    %cst_88 = arith.constant dense<0.000000e+00> : vector<8xf32>
    %227 = vector.multi_reduction <add>, %226, %cst_88 [1] : vector<8x16xf32> to vector<8xf32>
    %228 = vector.shape_cast %227 : vector<8xf32> to vector<8x1xf32>
    %229 = tpu.reciprocal %228 {approx = true} : vector<8x1xf32> -> vector<8x1xf32>
    %230 = vector.broadcast %229 : vector<8x1xf32> to vector<8x16xf32>
    %231 = arith.mulf %226, %230 : vector<8x16xf32>
    %232 = arith.truncf %231 : vector<8x16xf32> to vector<8x16xbf16>
    %cst_89 = arith.constant dense<0.000000e+00> : vector<8x8xf32>
    %233 = tpu.matmul %232, %220, %cst_89 {dimension_numbers = #tpu.dot_dimension_numbers<[1], [0], [0], [1], [0, 0, 1, 1], [], []>} : vector<8x16xbf16>, vector<16x8xbf16>, vector<8x8xf32> -> vector<8x8xf32>
    %234 = arith.truncf %233 : vector<8x8xf32> to vector<8x8xbf16>
    %235 = vector.extract_strided_slice %188 {offsets = [0, 8], sizes = [32, 8], strides = [1, 1]} : vector<32x32xbf16> to vector<32x8xbf16>
    %cst_90 = arith.constant dense<0.000000e+00> : vector<8x32xf32>
    %236 = tpu.matmul %234, %235, %cst_90 {dimension_numbers = #tpu.dot_dimension_numbers<[1], [1], [0], [0], [0, 0, 1, 0], [], []>} : vector<8x8xbf16>, vector<32x8xbf16>, vector<8x32xf32> -> vector<8x32xf32>
    %237 = arith.addf %214, %236 : vector<8x32xf32>
    %238 = vector.extract_strided_slice %174 {offsets = [0, 16], sizes = [8, 8], strides = [1, 1]} : vector<8x32xf32> to vector<8x8xf32>
    %239 = arith.truncf %238 : vector<8x8xf32> to vector<8x8xbf16>
    %240 = vector.extract_strided_slice %185 {offsets = [0, 16], sizes = [16, 8], strides = [1, 1]} : vector<16x32xf32> to vector<16x8xf32>
    %241 = arith.truncf %240 : vector<16x8xf32> to vector<16x8xbf16>
    %242 = vector.extract_strided_slice %186 {offsets = [0, 16], sizes = [16, 8], strides = [1, 1]} : vector<16x32xf32> to vector<16x8xf32>
    %243 = arith.truncf %242 : vector<16x8xf32> to vector<16x8xbf16>
    %cst_91 = arith.constant dense<0.000000e+00> : vector<8x16xf32>
    %244 = tpu.matmul %239, %241, %cst_91 {dimension_numbers = #tpu.dot_dimension_numbers<[1], [1], [0], [0], [0, 0, 1, 0], [], []>} : vector<8x8xbf16>, vector<16x8xbf16>, vector<8x16xf32> -> vector<8x16xf32>
    %cst_92 = arith.constant dense<0xFF800000> : vector<8xf32>
    %245 = vector.multi_reduction <maximumf>, %244, %cst_92 [1] : vector<8x16xf32> to vector<8xf32>
    %246 = vector.shape_cast %245 : vector<8xf32> to vector<8x1xf32>
    %247 = vector.broadcast %246 : vector<8x1xf32> to vector<8x16xf32>
    %248 = arith.subf %244, %247 : vector<8x16xf32>
    %249 = math.exp %248 : vector<8x16xf32>
    %cst_93 = arith.constant dense<0.000000e+00> : vector<8xf32>
    %250 = vector.multi_reduction <add>, %249, %cst_93 [1] : vector<8x16xf32> to vector<8xf32>
    %251 = vector.shape_cast %250 : vector<8xf32> to vector<8x1xf32>
    %252 = tpu.reciprocal %251 {approx = true} : vector<8x1xf32> -> vector<8x1xf32>
    %253 = vector.broadcast %252 : vector<8x1xf32> to vector<8x16xf32>
    %254 = arith.mulf %249, %253 : vector<8x16xf32>
    %255 = arith.truncf %254 : vector<8x16xf32> to vector<8x16xbf16>
    %cst_94 = arith.constant dense<0.000000e+00> : vector<8x8xf32>
    %256 = tpu.matmul %255, %243, %cst_94 {dimension_numbers = #tpu.dot_dimension_numbers<[1], [0], [0], [1], [0, 0, 1, 1], [], []>} : vector<8x16xbf16>, vector<16x8xbf16>, vector<8x8xf32> -> vector<8x8xf32>
    %257 = arith.truncf %256 : vector<8x8xf32> to vector<8x8xbf16>
    %258 = vector.extract_strided_slice %188 {offsets = [0, 16], sizes = [32, 8], strides = [1, 1]} : vector<32x32xbf16> to vector<32x8xbf16>
    %cst_95 = arith.constant dense<0.000000e+00> : vector<8x32xf32>
    %259 = tpu.matmul %257, %258, %cst_95 {dimension_numbers = #tpu.dot_dimension_numbers<[1], [1], [0], [0], [0, 0, 1, 0], [], []>} : vector<8x8xbf16>, vector<32x8xbf16>, vector<8x32xf32> -> vector<8x32xf32>
    %260 = arith.addf %237, %259 : vector<8x32xf32>
    %261 = vector.extract_strided_slice %174 {offsets = [0, 24], sizes = [8, 8], strides = [1, 1]} : vector<8x32xf32> to vector<8x8xf32>
    %262 = arith.truncf %261 : vector<8x8xf32> to vector<8x8xbf16>
    %263 = vector.extract_strided_slice %185 {offsets = [0, 24], sizes = [16, 8], strides = [1, 1]} : vector<16x32xf32> to vector<16x8xf32>
    %264 = arith.truncf %263 : vector<16x8xf32> to vector<16x8xbf16>
    %265 = vector.extract_strided_slice %186 {offsets = [0, 24], sizes = [16, 8], strides = [1, 1]} : vector<16x32xf32> to vector<16x8xf32>
    %266 = arith.truncf %265 : vector<16x8xf32> to vector<16x8xbf16>
    %cst_96 = arith.constant dense<0.000000e+00> : vector<8x16xf32>
    %267 = tpu.matmul %262, %264, %cst_96 {dimension_numbers = #tpu.dot_dimension_numbers<[1], [1], [0], [0], [0, 0, 1, 0], [], []>} : vector<8x8xbf16>, vector<16x8xbf16>, vector<8x16xf32> -> vector<8x16xf32>
    %cst_97 = arith.constant dense<0xFF800000> : vector<8xf32>
    %268 = vector.multi_reduction <maximumf>, %267, %cst_97 [1] : vector<8x16xf32> to vector<8xf32>
    %269 = vector.shape_cast %268 : vector<8xf32> to vector<8x1xf32>
    %270 = vector.broadcast %269 : vector<8x1xf32> to vector<8x16xf32>
    %271 = arith.subf %267, %270 : vector<8x16xf32>
    %272 = math.exp %271 : vector<8x16xf32>
    %cst_98 = arith.constant dense<0.000000e+00> : vector<8xf32>
    %273 = vector.multi_reduction <add>, %272, %cst_98 [1] : vector<8x16xf32> to vector<8xf32>
    %274 = vector.shape_cast %273 : vector<8xf32> to vector<8x1xf32>
    %275 = tpu.reciprocal %274 {approx = true} : vector<8x1xf32> -> vector<8x1xf32>
    %276 = vector.broadcast %275 : vector<8x1xf32> to vector<8x16xf32>
    %277 = arith.mulf %272, %276 : vector<8x16xf32>
    %278 = arith.truncf %277 : vector<8x16xf32> to vector<8x16xbf16>
    %cst_99 = arith.constant dense<0.000000e+00> : vector<8x8xf32>
    %279 = tpu.matmul %278, %266, %cst_99 {dimension_numbers = #tpu.dot_dimension_numbers<[1], [0], [0], [1], [0, 0, 1, 1], [], []>} : vector<8x16xbf16>, vector<16x8xbf16>, vector<8x8xf32> -> vector<8x8xf32>
    %280 = arith.truncf %279 : vector<8x8xf32> to vector<8x8xbf16>
    %281 = vector.extract_strided_slice %188 {offsets = [0, 24], sizes = [32, 8], strides = [1, 1]} : vector<32x32xbf16> to vector<32x8xbf16>
    %cst_100 = arith.constant dense<0.000000e+00> : vector<8x32xf32>
    %282 = tpu.matmul %280, %281, %cst_100 {dimension_numbers = #tpu.dot_dimension_numbers<[1], [1], [0], [0], [0, 0, 1, 0], [], []>} : vector<8x8xbf16>, vector<32x8xbf16>, vector<8x32xf32> -> vector<8x32xf32>
    %283 = arith.addf %260, %282 : vector<8x32xf32>
    %284 = vector.broadcast %190 : vector<1x32xf32> to vector<8x32xf32>
    %285 = arith.addf %283, %284 : vector<8x32xf32>
    %286 = arith.addf %140, %285 : vector<8x32xf32>
    %c0_101 = arith.constant 0 : index
    %c0_102 = arith.constant 0 : index
    %c0_103 = arith.constant 0 : index
    %287 = vector.load %arg18[%c0_101, %c0_102, %c0_103] : memref<1x1x32xf32, #tpu.memory_space<vmem>>, vector<1x1x32xf32>
    %288 = vector.shape_cast %287 : vector<1x1x32xf32> to vector<1x32xf32>
    %c0_104 = arith.constant 0 : index
    %c0_105 = arith.constant 0 : index
    %c0_106 = arith.constant 0 : index
    %289 = vector.load %arg19[%c0_104, %c0_105, %c0_106] : memref<1x1x32xf32, #tpu.memory_space<vmem>>, vector<1x1x32xf32>
    %290 = vector.shape_cast %289 : vector<1x1x32xf32> to vector<1x32xf32>
    %cst_107 = arith.constant dense<0.000000e+00> : vector<8xf32>
    %291 = vector.multi_reduction <add>, %286, %cst_107 [1] : vector<8x32xf32> to vector<8xf32>
    %292 = vector.shape_cast %291 : vector<8xf32> to vector<8x1xf32>
    %cst_108 = arith.constant 3.200000e+01 : f32
    %293 = vector.broadcast %cst_108 : f32 to vector<8x1xf32>
    %294 = arith.divf %292, %293 : vector<8x1xf32>
    %295 = vector.broadcast %294 : vector<8x1xf32> to vector<8x32xf32>
    %296 = arith.subf %286, %295 : vector<8x32xf32>
    %297 = arith.mulf %296, %296 : vector<8x32xf32>
    %cst_109 = arith.constant dense<0.000000e+00> : vector<8xf32>
    %298 = vector.multi_reduction <add>, %297, %cst_109 [1] : vector<8x32xf32> to vector<8xf32>
    %299 = vector.shape_cast %298 : vector<8xf32> to vector<8x1xf32>
    %cst_110 = arith.constant 3.200000e+01 : f32
    %300 = vector.broadcast %cst_110 : f32 to vector<8x1xf32>
    %301 = arith.divf %299, %300 : vector<8x1xf32>
    %302 = vector.broadcast %294 : vector<8x1xf32> to vector<8x32xf32>
    %303 = arith.subf %286, %302 : vector<8x32xf32>
    %cst_111 = arith.constant 9.99999974E-6 : f32
    %304 = vector.broadcast %cst_111 : f32 to vector<8x1xf32>
    %305 = arith.addf %301, %304 : vector<8x1xf32>
    %306 = math.rsqrt %305 : vector<8x1xf32>
    %307 = vector.broadcast %306 : vector<8x1xf32> to vector<8x32xf32>
    %308 = arith.mulf %303, %307 : vector<8x32xf32>
    %309 = vector.broadcast %288 : vector<1x32xf32> to vector<8x32xf32>
    %310 = arith.mulf %308, %309 : vector<8x32xf32>
    %311 = vector.broadcast %290 : vector<1x32xf32> to vector<8x32xf32>
    %312 = arith.addf %310, %311 : vector<8x32xf32>
    %c0_112 = arith.constant 0 : index
    %c0_113 = arith.constant 0 : index
    %c0_114 = arith.constant 0 : index
    %313 = vector.load %arg20[%c0_112, %c0_113, %c0_114] : memref<1x64x32xbf16, #tpu.memory_space<vmem>>, vector<1x64x32xbf16>
    %314 = vector.shape_cast %313 : vector<1x64x32xbf16> to vector<64x32xbf16>
    %c0_115 = arith.constant 0 : index
    %c0_116 = arith.constant 0 : index
    %c0_117 = arith.constant 0 : index
    %315 = vector.load %arg21[%c0_115, %c0_116, %c0_117] : memref<1x1x64xf32, #tpu.memory_space<vmem>>, vector<1x1x64xf32>
    %316 = vector.shape_cast %315 : vector<1x1x64xf32> to vector<1x64xf32>
    %317 = arith.truncf %312 : vector<8x32xf32> to vector<8x32xbf16>
    %cst_118 = arith.constant dense<0.000000e+00> : vector<8x64xf32>
    %318 = tpu.matmul %317, %314, %cst_118 {dimension_numbers = #tpu.dot_dimension_numbers<[1], [1], [0], [0], [0, 0, 1, 0], [], []>} : vector<8x32xbf16>, vector<64x32xbf16>, vector<8x64xf32> -> vector<8x64xf32>
    %319 = vector.broadcast %316 : vector<1x64xf32> to vector<8x64xf32>
    %320 = arith.addf %318, %319 : vector<8x64xf32>
    %cst_119 = arith.constant 0.000000e+00 : f32
    %321 = vector.broadcast %cst_119 : f32 to vector<8x64xf32>
    %322 = arith.maximumf %320, %321 : vector<8x64xf32>
    %c0_120 = arith.constant 0 : index
    %c0_121 = arith.constant 0 : index
    %c0_122 = arith.constant 0 : index
    %323 = vector.load %arg22[%c0_120, %c0_121, %c0_122] : memref<1x32x64xbf16, #tpu.memory_space<vmem>>, vector<1x32x64xbf16>
    %324 = vector.shape_cast %323 : vector<1x32x64xbf16> to vector<32x64xbf16>
    %c0_123 = arith.constant 0 : index
    %c0_124 = arith.constant 0 : index
    %c0_125 = arith.constant 0 : index
    %325 = vector.load %arg23[%c0_123, %c0_124, %c0_125] : memref<1x1x32xf32, #tpu.memory_space<vmem>>, vector<1x1x32xf32>
    %326 = vector.shape_cast %325 : vector<1x1x32xf32> to vector<1x32xf32>
    %327 = arith.truncf %322 : vector<8x64xf32> to vector<8x64xbf16>
    %cst_126 = arith.constant dense<0.000000e+00> : vector<8x32xf32>
    %328 = tpu.matmul %327, %324, %cst_126 {dimension_numbers = #tpu.dot_dimension_numbers<[1], [1], [0], [0], [0, 0, 1, 0], [], []>} : vector<8x64xbf16>, vector<32x64xbf16>, vector<8x32xf32> -> vector<8x32xf32>
    %329 = vector.broadcast %326 : vector<1x32xf32> to vector<8x32xf32>
    %330 = arith.addf %328, %329 : vector<8x32xf32>
    %331 = arith.addf %286, %330 : vector<8x32xf32>
    %c0_127 = arith.constant 0 : index
    %c0_128 = arith.constant 0 : index
    %332 = vector.load %arg25[%c0_127, %c0_128] : memref<8x32xf32, #tpu.memory_space<vmem>>, vector<8x32xf32>
    tpu.vector_store %arg25[%c0_127, %c0_128], %331 {strides = array<i32>} : memref<8x32xf32, #tpu.memory_space<vmem>>, vector<8x32xf32>,
    %c1_i32 = arith.constant 1 : i32
    %333 = arith.cmpi eq, %arg1, %c1_i32 : i32
    %334 = arith.extui %333 : i1 to i32
    %c0_i32_129 = arith.constant 0 : i32
    %335 = arith.cmpi ne, %334, %c0_i32_129 : i32
    scf.if %335 {
      %c0_130 = arith.constant 0 : index
      %c0_131 = arith.constant 0 : index
      %c0_132 = arith.constant 0 : index
      %336 = vector.load %arg24[%c0_130, %c0_131, %c0_132] : memref<1x8x32xf32, #tpu.memory_space<vmem>>, vector<1x8x32xf32>
      %337 = vector.shape_cast %336 : vector<1x8x32xf32> to vector<8x32xf32>
      %338 = vector.shape_cast %331 : vector<8x32xf32> to vector<1x8x32xf32>
      tpu.vector_store %arg24[%c0_130, %c0_131, %c0_132], %338 {strides = array<i32>} : memref<1x8x32xf32, #tpu.memory_space<vmem>>, vector<1x8x32xf32>,
    } else {
    }
    return
  }
  func.func @transform_0(%arg0: i32, %arg1: i32) -> (i32, i32, i32) {
    %c0_i32 = arith.constant 0 : i32
    %c0_i32_0 = arith.constant 0 : i32
    %c0_i32_1 = arith.constant 0 : i32
    return %arg0, %c0_i32, %c0_i32_0 : i32, i32, i32
  }
  func.func @transform_1(%arg0: i32, %arg1: i32) -> (i32, i32, i32) {
    %c0_i32 = arith.constant 0 : i32
    %c0_i32_0 = arith.constant 0 : i32
    %c0_i32_1 = arith.constant 0 : i32
    return %arg0, %c0_i32, %c0_i32_0 : i32, i32, i32
  }
  func.func @transform_2(%arg0: i32, %arg1: i32) -> (i32, i32, i32) {
    %c0_i32 = arith.constant 0 : i32
    %c0_i32_0 = arith.constant 0 : i32
    %c0_i32_1 = arith.constant 0 : i32
    return %arg1, %c0_i32, %c0_i32_0 : i32, i32, i32
  }
  func.func @transform_3(%arg0: i32, %arg1: i32) -> (i32, i32, i32) {
    %c0_i32 = arith.constant 0 : i32
    %c0_i32_0 = arith.constant 0 : i32
    %c0_i32_1 = arith.constant 0 : i32
    return %arg1, %c0_i32, %c0_i32_0 : i32, i32, i32
  }
  func.func @transform_4(%arg0: i32, %arg1: i32) -> (i32, i32, i32) {
    %c0_i32 = arith.constant 0 : i32
    %c0_i32_0 = arith.constant 0 : i32
    %c0_i32_1 = arith.constant 0 : i32
    return %arg1, %c0_i32, %c0_i32_0 : i32, i32, i32
  }
  func.func @transform_5(%arg0: i32, %arg1: i32) -> (i32, i32, i32) {
    %c0_i32 = arith.constant 0 : i32
    %c0_i32_0 = arith.constant 0 : i32
    %c0_i32_1 = arith.constant 0 : i32
    return %arg1, %c0_i32, %c0_i32_0 : i32, i32, i32
  }
  func.func @transform_6(%arg0: i32, %arg1: i32) -> (i32, i32, i32) {
    %c0_i32 = arith.constant 0 : i32
    %c0_i32_0 = arith.constant 0 : i32
    %c0_i32_1 = arith.constant 0 : i32
    return %arg1, %c0_i32, %c0_i32_0 : i32, i32, i32
  }
  func.func @transform_7(%arg0: i32, %arg1: i32) -> (i32, i32, i32) {
    %c0_i32 = arith.constant 0 : i32
    %c0_i32_0 = arith.constant 0 : i32
    %c0_i32_1 = arith.constant 0 : i32
    return %arg1, %c0_i32, %c0_i32_0 : i32, i32, i32
  }
  func.func @transform_8(%arg0: i32, %arg1: i32) -> (i32, i32, i32) {
    %c0_i32 = arith.constant 0 : i32
    %c0_i32_0 = arith.constant 0 : i32
    %c0_i32_1 = arith.constant 0 : i32
    return %arg1, %c0_i32, %c0_i32_0 : i32, i32, i32
  }
  func.func @transform_9(%arg0: i32, %arg1: i32) -> (i32, i32, i32) {
    %c0_i32 = arith.constant 0 : i32
    %c0_i32_0 = arith.constant 0 : i32
    %c0_i32_1 = arith.constant 0 : i32
    return %arg1, %c0_i32, %c0_i32_0 : i32, i32, i32
  }
  func.func @transform_10(%arg0: i32, %arg1: i32) -> (i32, i32, i32) {
    %c0_i32 = arith.constant 0 : i32
    %c0_i32_0 = arith.constant 0 : i32
    %c0_i32_1 = arith.constant 0 : i32
    return %arg1, %c0_i32, %c0_i32_0 : i32, i32, i32
  }
  func.func @transform_11(%arg0: i32, %arg1: i32) -> (i32, i32, i32) {
    %c0_i32 = arith.constant 0 : i32
    %c0_i32_0 = arith.constant 0 : i32
    %c0_i32_1 = arith.constant 0 : i32
    return %arg1, %c0_i32, %c0_i32_0 : i32, i32, i32
  }
  func.func @transform_12(%arg0: i32, %arg1: i32) -> (i32, i32, i32) {
    %c0_i32 = arith.constant 0 : i32
    %c0_i32_0 = arith.constant 0 : i32
    %c0_i32_1 = arith.constant 0 : i32
    return %arg1, %c0_i32, %c0_i32_0 : i32, i32, i32
  }
  func.func @transform_13(%arg0: i32, %arg1: i32) -> (i32, i32, i32) {
    %c0_i32 = arith.constant 0 : i32
    %c0_i32_0 = arith.constant 0 : i32
    %c0_i32_1 = arith.constant 0 : i32
    return %arg1, %c0_i32, %c0_i32_0 : i32, i32, i32
  }
  func.func @transform_14(%arg0: i32, %arg1: i32) -> (i32, i32, i32) {
    %c0_i32 = arith.constant 0 : i32
    %c0_i32_0 = arith.constant 0 : i32
    %c0_i32_1 = arith.constant 0 : i32
    return %arg1, %c0_i32, %c0_i32_0 : i32, i32, i32
  }
  func.func @transform_15(%arg0: i32, %arg1: i32) -> (i32, i32, i32) {
    %c0_i32 = arith.constant 0 : i32
    %c0_i32_0 = arith.constant 0 : i32
    %c0_i32_1 = arith.constant 0 : i32
    return %arg1, %c0_i32, %c0_i32_0 : i32, i32, i32
  }
  func.func @transform_16(%arg0: i32, %arg1: i32) -> (i32, i32, i32) {
    %c0_i32 = arith.constant 0 : i32
    %c0_i32_0 = arith.constant 0 : i32
    %c0_i32_1 = arith.constant 0 : i32
    return %arg1, %c0_i32, %c0_i32_0 : i32, i32, i32
  }
  func.func @transform_17(%arg0: i32, %arg1: i32) -> (i32, i32, i32) {
    %c0_i32 = arith.constant 0 : i32
    %c0_i32_0 = arith.constant 0 : i32
    %c0_i32_1 = arith.constant 0 : i32
    return %arg1, %c0_i32, %c0_i32_0 : i32, i32, i32
  }
  func.func @transform_18(%arg0: i32, %arg1: i32) -> (i32, i32, i32) {
    %c0_i32 = arith.constant 0 : i32
    %c0_i32_0 = arith.constant 0 : i32
    %c0_i32_1 = arith.constant 0 : i32
    return %arg1, %c0_i32, %c0_i32_0 : i32, i32, i32
  }
  func.func @transform_19(%arg0: i32, %arg1: i32) -> (i32, i32, i32) {
    %c0_i32 = arith.constant 0 : i32
    %c0_i32_0 = arith.constant 0 : i32
    %c0_i32_1 = arith.constant 0 : i32
    return %arg1, %c0_i32, %c0_i32_0 : i32, i32, i32
  }
  func.func @transform_20(%arg0: i32, %arg1: i32) -> (i32, i32, i32) {
    %c0_i32 = arith.constant 0 : i32
    %c0_i32_0 = arith.constant 0 : i32
    %c0_i32_1 = arith.constant 0 : i32
    return %arg1, %c0_i32, %c0_i32_0 : i32, i32, i32
  }
  func.func @transform_21(%arg0: i32, %arg1: i32) -> (i32, i32, i32) {
    %c0_i32 = arith.constant 0 : i32
    %c0_i32_0 = arith.constant 0 : i32
    %c0_i32_1 = arith.constant 0 : i32
    return %arg1, %c0_i32, %c0_i32_0 : i32, i32, i32
  }
  func.func @transform_22(%arg0: i32, %arg1: i32) -> (i32, i32, i32) {
    %c0_i32 = arith.constant 0 : i32
    %c0_i32_0 = arith.constant 0 : i32
    %c0_i32_1 = arith.constant 0 : i32
    return %arg0, %c0_i32, %c0_i32_0 : i32, i32, i32
  }
}

</mosaic_0001>

<llo_original>
// kernel: transformer_decoder.1
$region0: #{transformer_decoder.1}
  #allocation0 [shape = 'u32[]', space=smem, size = 0x4, offset = 0x4, fixed_abs, tag = 'smem constant byte address 0x4 - core index']
  #allocation1 [shape = 'u32[144,128]{1,0:T(1,128)}', space=vmem, size = 0x12000, scoped, tag = 'internal scratch']
  #allocation2 [shape = 'f32[8,32]{1,0:T(8,128)}', space=vmem, size = 0x1000, scoped, tag = 'scratch operand']
  %s0 = inlined_call_operand.vmem [shape: f32[2,8,32], index: 0, kind: input, shape index: {}]
  %s1 = inlined_call_operand.vmem [shape: f32[2,16,32], index: 1, kind: input, shape index: {}]
  %s2 = inlined_call_operand.vmem [shape: f32[2,1,32], index: 2, kind: input, shape index: {}]
  %s3 = inlined_call_operand.vmem [shape: f32[2,1,32], index: 3, kind: input, shape index: {}]
  %s4 = inlined_call_operand.vmem [shape: bf16[2,96,32], index: 4, kind: input, shape index: {}]
  %s5 = inlined_call_operand.vmem [shape: f32[2,1,96], index: 5, kind: input, shape index: {}]
  %s6 = inlined_call_operand.vmem [shape: bf16[2,32,32], index: 6, kind: input, shape index: {}]
  %s7 = inlined_call_operand.vmem [shape: f32[2,1,32], index: 7, kind: input, shape index: {}]
  %s8 = inlined_call_operand.vmem [shape: f32[2,1,32], index: 8, kind: input, shape index: {}]
  %s9 = inlined_call_operand.vmem [shape: f32[2,1,32], index: 9, kind: input, shape index: {}]
  %s10 = inlined_call_operand.vmem [shape: bf16[2,32,32], index: 10, kind: input, shape index: {}]
  %s11 = inlined_call_operand.vmem [shape: f32[2,1,32], index: 11, kind: input, shape index: {}]
  %s12 = inlined_call_operand.vmem [shape: bf16[2,64,32], index: 12, kind: input, shape index: {}]
  %s13 = inlined_call_operand.vmem [shape: f32[2,1,64], index: 13, kind: input, shape index: {}]
  %s14 = inlined_call_operand.vmem [shape: bf16[2,32,32], index: 14, kind: input, shape index: {}]
  %s15 = inlined_call_operand.vmem [shape: f32[2,1,32], index: 15, kind: input, shape index: {}]
  %s16 = inlined_call_operand.vmem [shape: f32[2,1,32], index: 16, kind: input, shape index: {}]
  %s17 = inlined_call_operand.vmem [shape: f32[2,1,32], index: 17, kind: input, shape index: {}]
  %s18 = inlined_call_operand.vmem [shape: bf16[2,64,32], index: 18, kind: input, shape index: {}]
  %s19 = inlined_call_operand.vmem [shape: f32[2,1,64], index: 19, kind: input, shape index: {}]
  %s20 = inlined_call_operand.vmem [shape: bf16[2,32,64], index: 20, kind: input, shape index: {}]
  %s21 = inlined_call_operand.vmem [shape: f32[2,1,32], index: 21, kind: input, shape index: {}]
  %s22 = inlined_call_operand.hbm [shape: f32[2,8,32], index: 22, kind: output, shape index: {}]
  %s23 = sld [smem:[#allocation0]]
  $region129: #{transformer_decoder.1} parent=0
    _
  %s25 = ssub.s32 1, %s23
  %s26 = scalar_select 0, %s25, %s23
  $region1: #{transformer_decoder.1} parent=0
    #allocation3 [shape = 'u8[8192]{0}', space=vmem, size = 0x2000, scoped, tag = 'output window, operand 0']
    #allocation4 [shape = 's32[2]{0}', space=sflag, size = 0x8, scoped, tag = 'scoped memory for transformer_decoder.1']
    %27 = vsyncpa [#allocation4], 0
    %s28 = scalar_lea.sflag [#allocation4], 1
    %29 = vsyncpa %s28, 0
    loop: start=0, step=1, limit=6
    $region2: #{transformer_decoder.1} parent=1 // loop_pre_header
      _
    $region3: #{transformer_decoder.1} parent=1 // loop_header
      %s31 = sphi 0, %s35
      %p32 = scmp.ge.s32.totalorder %s31, 6
      %s38 = sphi 0, %s50
      %s39 = sphi 0, %s46
      %s40 = sphi 0, %s38
      %s41 = sphi 0, %s39
      %s42 = sphi 0, %s40
      %s43 = sphi 0, %s41
      %s53 = sphi 0, %s55
      %s56 = sphi 0, %s53
      %s57 = sphi 0, %s56
      %s73 = sphi 0, %s57
      %s79 = sphi 0, %s81
      %s82 = sphi 0, %s79
      %s83 = sphi 0, %s82
      %s99 = sphi 0, %s83
      %s105 = sphi 0, %s107
      %s108 = sphi 0, %s105
      %s109 = sphi 0, %s108
      %s125 = sphi 0, %s109
      %s131 = sphi 0, %s133
      %s134 = sphi 0, %s131
      %s135 = sphi 0, %s134
      %s151 = sphi 0, %s135
      %s157 = sphi 0, %s159
      %s160 = sphi 0, %s157
      %s161 = sphi 0, %s160
      %s177 = sphi 0, %s161
      %s183 = sphi 0, %s185
      %s186 = sphi 0, %s183
      %s187 = sphi 0, %s186
      %s203 = sphi 0, %s187
      %s209 = sphi 0, %s211
      %s212 = sphi 0, %s209
      %s213 = sphi 0, %s212
      %s229 = sphi 0, %s213
      %s235 = sphi 0, %s237
      %s238 = sphi 0, %s235
      %s239 = sphi 0, %s238
      %s255 = sphi 0, %s239
      %s261 = sphi 0, %s263
      %s264 = sphi 0, %s261
      %s265 = sphi 0, %s264
      %s281 = sphi 0, %s265
      %s287 = sphi 0, %s289
      %s290 = sphi 0, %s287
      %s291 = sphi 0, %s290
      %s307 = sphi 0, %s291
      %s313 = sphi 0, %s315
      %s316 = sphi 0, %s313
      %s317 = sphi 0, %s316
      %s333 = sphi 0, %s317
      %s339 = sphi 0, %s341
      %s342 = sphi 0, %s339
      %s343 = sphi 0, %s342
      %s359 = sphi 0, %s343
      %s365 = sphi 0, %s367
      %s368 = sphi 0, %s365
      %s369 = sphi 0, %s368
      %s385 = sphi 0, %s369
      %s391 = sphi 0, %s393
      %s394 = sphi 0, %s391
      %s395 = sphi 0, %s394
      %s411 = sphi 0, %s395
      %s417 = sphi 0, %s419
      %s420 = sphi 0, %s417
      %s421 = sphi 0, %s420
      %s437 = sphi 0, %s421
      %s443 = sphi 0, %s445
      %s446 = sphi 0, %s443
      %s447 = sphi 0, %s446
      %s463 = sphi 0, %s447
      %s469 = sphi 0, %s471
      %s472 = sphi 0, %s469
      %s473 = sphi 0, %s472
      %s489 = sphi 0, %s473
      %s495 = sphi 0, %s497
      %s498 = sphi 0, %s495
      %s499 = sphi 0, %s498
      %s515 = sphi 0, %s499
      %s521 = sphi 0, %s523
      %s524 = sphi 0, %s521
      %s525 = sphi 0, %s524
      %s541 = sphi 0, %s525
      %s547 = sphi 0, %s549
      %s550 = sphi 0, %s547
      %s551 = sphi 0, %s550
      %s567 = sphi 0, %s551
      %s573 = sphi 0, %s575
      %s576 = sphi 0, %s573
      %s577 = sphi 0, %s576
      %s593 = sphi 0, %s577
      %s599 = sphi 0, %s601
      %s602 = sphi 0, %s599
      %s603 = sphi 0, %s602
      %s619 = sphi 0, %s603
      %s625 = sphi 0, %s627
      %s628 = sphi 0, %s625
      %s629 = sphi 0, %s628
      %s645 = sphi 0, %s629
    $region4: #{transformer_decoder.1} parent=1 // loop_header_branch
      %34 = sbr.rel (%p32) target = $region8
    $region5: #{transformer_decoder.1} parent=1 // loop_body
      %s36 = ssub.s32 %s31, 1
      %s37 = ssub.s32 %s31, 2
      %s44 = sadd.s32 1, %s39
      %p45 = scmp.ge.s32.totalorder %s44, 2
      %s46 = scalar_select %p45, 0, %s44
      %s47 = sadd.s32 1, %s38
      %s48 = scalar_select %p45, %s47, %s38
      %p49 = scmp.ge.s32.totalorder %s48, 2
      %s50 = scalar_select %p49, 0, %s48
      %s51 = ssub.s32 %s38, %s50
      %p52 = scmp.eq.s32.totalorder %s51, 0
      %s54 = sadd.s32 %s53, 1
      %s55 = scalar_select %p52, %s53, %s54
      %p58 = pneg %p52
      %p59 = scmp.eq.s32.totalorder %s31, 3
      %p60 = por %p58, %p59
      %p61 = scmp.ne.s32.totalorder %s53, %s56
      %p62 = scmp.eq.s32.totalorder %s31, 0
      %p63 = por %p61, %p62
      %p64 = scmp.ne.s32.totalorder %s53, %s56
      %p65 = scmp.eq.s32.totalorder %s36, 3
      %p66 = por %p64, %p65
      %p67 = scmp.ne.s32.totalorder %s56, %s57
      %p68 = scmp.eq.s32.totalorder %s36, 0
      %p69 = por %p67, %p68
      %p70 = scmp.ne.s32.totalorder %s56, %s57
      %p71 = scmp.eq.s32.totalorder %s37, 3
      %p72 = por %p70, %p71
      %p74 = scmp.ne.s32.totalorder %s57, %s73
      %p75 = scmp.eq.s32.totalorder %s37, 0
      %p76 = por %p74, %p75
      %s77 = ssub.s32 %s38, %s50
      %p78 = scmp.eq.s32.totalorder %s77, 0
      %s80 = sadd.s32 %s79, 1
      %s81 = scalar_select %p78, %s79, %s80
      %p84 = pneg %p78
      %p85 = scmp.eq.s32.totalorder %s31, 3
      %p86 = por %p84, %p85
      %p87 = scmp.ne.s32.totalorder %s79, %s82
      %p88 = scmp.eq.s32.totalorder %s31, 0
      %p89 = por %p87, %p88
      %p90 = scmp.ne.s32.totalorder %s79, %s82
      %p91 = scmp.eq.s32.totalorder %s36, 3
      %p92 = por %p90, %p91
      %p93 = scmp.ne.s32.totalorder %s82, %s83
      %p94 = scmp.eq.s32.totalorder %s36, 0
      %p95 = por %p93, %p94
      %p96 = scmp.ne.s32.totalorder %s82, %s83
      %p97 = scmp.eq.s32.totalorder %s37, 3
      %p98 = por %p96, %p97
      %p100 = scmp.ne.s32.totalorder %s83, %s99
      %p101 = scmp.eq.s32.totalorder %s37, 0
      %p102 = por %p100, %p101
      %s103 = ssub.s32 %s39, %s46
      %p104 = scmp.eq.s32.totalorder %s103, 0
      %s106 = sadd.s32 %s105, 1
      %s107 = scalar_select %p104, %s105, %s106
      %p110 = pneg %p104
      %p111 = scmp.eq.s32.totalorder %s31, 3
      %p112 = por %p110, %p111
      %p113 = scmp.ne.s32.totalorder %s105, %s108
      %p114 = scmp.eq.s32.totalorder %s31, 0
      %p115 = por %p113, %p114
      %p116 = scmp.ne.s32.totalorder %s105, %s108
      %p117 = scmp.eq.s32.totalorder %s36, 3
      %p118 = por %p116, %p117
      %p119 = scmp.ne.s32.totalorder %s108, %s109
      %p120 = scmp.eq.s32.totalorder %s36, 0
      %p121 = por %p119, %p120
      %p122 = scmp.ne.s32.totalorder %s108, %s109
      %p123 = scmp.eq.s32.totalorder %s37, 3
      %p124 = por %p122, %p123
      %p126 = scmp.ne.s32.totalorder %s109, %s125
      %p127 = scmp.eq.s32.totalorder %s37, 0
      %p128 = por %p126, %p127
      %s129 = ssub.s32 %s39, %s46
      %p130 = scmp.eq.s32.totalorder %s129, 0
      %s132 = sadd.s32 %s131, 1
      %s133 = scalar_select %p130, %s131, %s132
      %p136 = pneg %p130
      %p137 = scmp.eq.s32.totalorder %s31, 3
      %p138 = por %p136, %p137
      %p139 = scmp.ne.s32.totalorder %s131, %s134
      %p140 = scmp.eq.s32.totalorder %s31, 0
      %p141 = por %p139, %p140
      %p142 = scmp.ne.s32.totalorder %s131, %s134
      %p143 = scmp.eq.s32.totalorder %s36, 3
      %p144 = por %p142, %p143
      %p145 = scmp.ne.s32.totalorder %s134, %s135
      %p146 = scmp.eq.s32.totalorder %s36, 0
      %p147 = por %p145, %p146
      %p148 = scmp.ne.s32.totalorder %s134, %s135
      %p149 = scmp.eq.s32.totalorder %s37, 3
      %p150 = por %p148, %p149
      %p152 = scmp.ne.s32.totalorder %s135, %s151
      %p153 = scmp.eq.s32.totalorder %s37, 0
      %p154 = por %p152, %p153
      %s155 = ssub.s32 %s39, %s46
      %p156 = scmp.eq.s32.totalorder %s155, 0
      %s158 = sadd.s32 %s157, 1
      %s159 = scalar_select %p156, %s157, %s158
      %p162 = pneg %p156
      %p163 = scmp.eq.s32.totalorder %s31, 3
      %p164 = por %p162, %p163
      %p165 = scmp.ne.s32.totalorder %s157, %s160
      %p166 = scmp.eq.s32.totalorder %s31, 0
      %p167 = por %p165, %p166
      %p168 = scmp.ne.s32.totalorder %s157, %s160
      %p169 = scmp.eq.s32.totalorder %s36, 3
      %p170 = por %p168, %p169
      %p171 = scmp.ne.s32.totalorder %s160, %s161
      %p172 = scmp.eq.s32.totalorder %s36, 0
      %p173 = por %p171, %p172
      %p174 = scmp.ne.s32.totalorder %s160, %s161
      %p175 = scmp.eq.s32.totalorder %s37, 3
      %p176 = por %p174, %p175
      %p178 = scmp.ne.s32.totalorder %s161, %s177
      %p179 = scmp.eq.s32.totalorder %s37, 0
      %p180 = por %p178, %p179
      %s181 = ssub.s32 %s39, %s46
      %p182 = scmp.eq.s32.totalorder %s181, 0
      %s184 = sadd.s32 %s183, 1
      %s185 = scalar_select %p182, %s183, %s184
      %p188 = pneg %p182
      %p189 = scmp.eq.s32.totalorder %s31, 3
      %p190 = por %p188, %p189
      %p191 = scmp.ne.s32.totalorder %s183, %s186
      %p192 = scmp.eq.s32.totalorder %s31, 0
      %p193 = por %p191, %p192
      %p194 = scmp.ne.s32.totalorder %s183, %s186
      %p195 = scmp.eq.s32.totalorder %s36, 3
      %p196 = por %p194, %p195
      %p197 = scmp.ne.s32.totalorder %s186, %s187
      %p198 = scmp.eq.s32.totalorder %s36, 0
      %p199 = por %p197, %p198
      %p200 = scmp.ne.s32.totalorder %s186, %s187
      %p201 = scmp.eq.s32.totalorder %s37, 3
      %p202 = por %p200, %p201
      %p204 = scmp.ne.s32.totalorder %s187, %s203
      %p205 = scmp.eq.s32.totalorder %s37, 0
      %p206 = por %p204, %p205
      %s207 = ssub.s32 %s39, %s46
      %p208 = scmp.eq.s32.totalorder %s207, 0
      %s210 = sadd.s32 %s209, 1
      %s211 = scalar_select %p208, %s209, %s210
      %p214 = pneg %p208
      %p215 = scmp.eq.s32.totalorder %s31, 3
      %p216 = por %p214, %p215
      %p217 = scmp.ne.s32.totalorder %s209, %s212
      %p218 = scmp.eq.s32.totalorder %s31, 0
      %p219 = por %p217, %p218
      %p220 = scmp.ne.s32.totalorder %s209, %s212
      %p221 = scmp.eq.s32.totalorder %s36, 3
      %p222 = por %p220, %p221
      %p223 = scmp.ne.s32.totalorder %s212, %s213
      %p224 = scmp.eq.s32.totalorder %s36, 0
      %p225 = por %p223, %p224
      %p226 = scmp.ne.s32.totalorder %s212, %s213
      %p227 = scmp.eq.s32.totalorder %s37, 3
      %p228 = por %p226, %p227
      %p230 = scmp.ne.s32.totalorder %s213, %s229
      %p231 = scmp.eq.s32.totalorder %s37, 0
      %p232 = por %p230, %p231
      %s233 = ssub.s32 %s39, %s46
      %p234 = scmp.eq.s32.totalorder %s233, 0
      %s236 = sadd.s32 %s235, 1
      %s237 = scalar_select %p234, %s235, %s236
      %p240 = pneg %p234
      %p241 = scmp.eq.s32.totalorder %s31, 3
      %p242 = por %p240, %p241
      %p243 = scmp.ne.s32.totalorder %s235, %s238
      %p244 = scmp.eq.s32.totalorder %s31, 0
      %p245 = por %p243, %p244
      %p246 = scmp.ne.s32.totalorder %s235, %s238
      %p247 = scmp.eq.s32.totalorder %s36, 3
      %p248 = por %p246, %p247
      %p249 = scmp.ne.s32.totalorder %s238, %s239
      %p250 = scmp.eq.s32.totalorder %s36, 0
      %p251 = por %p249, %p250
      %p252 = scmp.ne.s32.totalorder %s238, %s239
      %p253 = scmp.eq.s32.totalorder %s37, 3
      %p254 = por %p252, %p253
      %p256 = scmp.ne.s32.totalorder %s239, %s255
      %p257 = scmp.eq.s32.totalorder %s37, 0
      %p258 = por %p256, %p257
      %s259 = ssub.s32 %s39, %s46
      %p260 = scmp.eq.s32.totalorder %s259, 0
      %s262 = sadd.s32 %s261, 1
      %s263 = scalar_select %p260, %s261, %s262
      %p266 = pneg %p260
      %p267 = scmp.eq.s32.totalorder %s31, 3
      %p268 = por %p266, %p267
      %p269 = scmp.ne.s32.totalorder %s261, %s264
      %p270 = scmp.eq.s32.totalorder %s31, 0
      %p271 = por %p269, %p270
      %p272 = scmp.ne.s32.totalorder %s261, %s264
      %p273 = scmp.eq.s32.totalorder %s36, 3
      %p274 = por %p272, %p273
      %p275 = scmp.ne.s32.totalorder %s264, %s265
      %p276 = scmp.eq.s32.totalorder %s36, 0
      %p277 = por %p275, %p276
      %p278 = scmp.ne.s32.totalorder %s264, %s265
      %p279 = scmp.eq.s32.totalorder %s37, 3
      %p280 = por %p278, %p279
      %p282 = scmp.ne.s32.totalorder %s265, %s281
      %p283 = scmp.eq.s32.totalorder %s37, 0
      %p284 = por %p282, %p283
      %s285 = ssub.s32 %s39, %s46
      %p286 = scmp.eq.s32.totalorder %s285, 0
      %s288 = sadd.s32 %s287, 1
      %s289 = scalar_select %p286, %s287, %s288
      %p292 = pneg %p286
      %p293 = scmp.eq.s32.totalorder %s31, 3
      %p294 = por %p292, %p293
      %p295 = scmp.ne.s32.totalorder %s287, %s290
      %p296 = scmp.eq.s32.totalorder %s31, 0
      %p297 = por %p295, %p296
      %p298 = scmp.ne.s32.totalorder %s287, %s290
      %p299 = scmp.eq.s32.totalorder %s36, 3
      %p300 = por %p298, %p299
      %p301 = scmp.ne.s32.totalorder %s290, %s291
      %p302 = scmp.eq.s32.totalorder %s36, 0
      %p303 = por %p301, %p302
      %p304 = scmp.ne.s32.totalorder %s290, %s291
      %p305 = scmp.eq.s32.totalorder %s37, 3
      %p306 = por %p304, %p305
      %p308 = scmp.ne.s32.totalorder %s291, %s307
      %p309 = scmp.eq.s32.totalorder %s37, 0
      %p310 = por %p308, %p309
      %s311 = ssub.s32 %s39, %s46
      %p312 = scmp.eq.s32.totalorder %s311, 0
      %s314 = sadd.s32 %s313, 1
      %s315 = scalar_select %p312, %s313, %s314
      %p318 = pneg %p312
      %p319 = scmp.eq.s32.totalorder %s31, 3
      %p320 = por %p318, %p319
      %p321 = scmp.ne.s32.totalorder %s313, %s316
      %p322 = scmp.eq.s32.totalorder %s31, 0
      %p323 = por %p321, %p322
      %p324 = scmp.ne.s32.totalorder %s313, %s316
      %p325 = scmp.eq.s32.totalorder %s36, 3
      %p326 = por %p324, %p325
      %p327 = scmp.ne.s32.totalorder %s316, %s317
      %p328 = scmp.eq.s32.totalorder %s36, 0
      %p329 = por %p327, %p328
      %p330 = scmp.ne.s32.totalorder %s316, %s317
      %p331 = scmp.eq.s32.totalorder %s37, 3
      %p332 = por %p330, %p331
      %p334 = scmp.ne.s32.totalorder %s317, %s333
      %p335 = scmp.eq.s32.totalorder %s37, 0
      %p336 = por %p334, %p335
      %s337 = ssub.s32 %s39, %s46
      %p338 = scmp.eq.s32.totalorder %s337, 0
      %s340 = sadd.s32 %s339, 1
      %s341 = scalar_select %p338, %s339, %s340
      %p344 = pneg %p338
      %p345 = scmp.eq.s32.totalorder %s31, 3
      %p346 = por %p344, %p345
      %p347 = scmp.ne.s32.totalorder %s339, %s342
      %p348 = scmp.eq.s32.totalorder %s31, 0
      %p349 = por %p347, %p348
      %p350 = scmp.ne.s32.totalorder %s339, %s342
      %p351 = scmp.eq.s32.totalorder %s36, 3
      %p352 = por %p350, %p351
      %p353 = scmp.ne.s32.totalorder %s342, %s343
      %p354 = scmp.eq.s32.totalorder %s36, 0
      %p355 = por %p353, %p354
      %p356 = scmp.ne.s32.totalorder %s342, %s343
      %p357 = scmp.eq.s32.totalorder %s37, 3
      %p358 = por %p356, %p357
      %p360 = scmp.ne.s32.totalorder %s343, %s359
      %p361 = scmp.eq.s32.totalorder %s37, 0
      %p362 = por %p360, %p361
      %s363 = ssub.s32 %s39, %s46
      %p364 = scmp.eq.s32.totalorder %s363, 0
      %s366 = sadd.s32 %s365, 1
      %s367 = scalar_select %p364, %s365, %s366
      %p370 = pneg %p364
      %p371 = scmp.eq.s32.totalorder %s31, 3
      %p372 = por %p370, %p371
      %p373 = scmp.ne.s32.totalorder %s365, %s368
      %p374 = scmp.eq.s32.totalorder %s31, 0
      %p375 = por %p373, %p374
      %p376 = scmp.ne.s32.totalorder %s365, %s368
      %p377 = scmp.eq.s32.totalorder %s36, 3
      %p378 = por %p376, %p377
      %p379 = scmp.ne.s32.totalorder %s368, %s369
      %p380 = scmp.eq.s32.totalorder %s36, 0
      %p381 = por %p379, %p380
      %p382 = scmp.ne.s32.totalorder %s368, %s369
      %p383 = scmp.eq.s32.totalorder %s37, 3
      %p384 = por %p382, %p383
      %p386 = scmp.ne.s32.totalorder %s369, %s385
      %p387 = scmp.eq.s32.totalorder %s37, 0
      %p388 = por %p386, %p387
      %s389 = ssub.s32 %s39, %s46
      %p390 = scmp.eq.s32.totalorder %s389, 0
      %s392 = sadd.s32 %s391, 1
      %s393 = scalar_select %p390, %s391, %s392
      %p396 = pneg %p390
      %p397 = scmp.eq.s32.totalorder %s31, 3
      %p398 = por %p396, %p397
      %p399 = scmp.ne.s32.totalorder %s391, %s394
      %p400 = scmp.eq.s32.totalorder %s31, 0
      %p401 = por %p399, %p400
      %p402 = scmp.ne.s32.totalorder %s391, %s394
      %p403 = scmp.eq.s32.totalorder %s36, 3
      %p404 = por %p402, %p403
      %p405 = scmp.ne.s32.totalorder %s394, %s395
      %p406 = scmp.eq.s32.totalorder %s36, 0
      %p407 = por %p405, %p406
      %p408 = scmp.ne.s32.totalorder %s394, %s395
      %p409 = scmp.eq.s32.totalorder %s37, 3
      %p410 = por %p408, %p409
      %p412 = scmp.ne.s32.totalorder %s395, %s411
      %p413 = scmp.eq.s32.totalorder %s37, 0
      %p414 = por %p412, %p413
      %s415 = ssub.s32 %s39, %s46
      %p416 = scmp.eq.s32.totalorder %s415, 0
      %s418 = sadd.s32 %s417, 1
      %s419 = scalar_select %p416, %s417, %s418
      %p422 = pneg %p416
      %p423 = scmp.eq.s32.totalorder %s31, 3
      %p424 = por %p422, %p423
      %p425 = scmp.ne.s32.totalorder %s417, %s420
      %p426 = scmp.eq.s32.totalorder %s31, 0
      %p427 = por %p425, %p426
      %p428 = scmp.ne.s32.totalorder %s417, %s420
      %p429 = scmp.eq.s32.totalorder %s36, 3
      %p430 = por %p428, %p429
      %p431 = scmp.ne.s32.totalorder %s420, %s421
      %p432 = scmp.eq.s32.totalorder %s36, 0
      %p433 = por %p431, %p432
      %p434 = scmp.ne.s32.totalorder %s420, %s421
      %p435 = scmp.eq.s32.totalorder %s37, 3
      %p436 = por %p434, %p435
      %p438 = scmp.ne.s32.totalorder %s421, %s437
      %p439 = scmp.eq.s32.totalorder %s37, 0
      %p440 = por %p438, %p439
      %s441 = ssub.s32 %s39, %s46
      %p442 = scmp.eq.s32.totalorder %s441, 0
      %s444 = sadd.s32 %s443, 1
      %s445 = scalar_select %p442, %s443, %s444
      %p448 = pneg %p442
      %p449 = scmp.eq.s32.totalorder %s31, 3
      %p450 = por %p448, %p449
      %p451 = scmp.ne.s32.totalorder %s443, %s446
      %p452 = scmp.eq.s32.totalorder %s31, 0
      %p453 = por %p451, %p452
      %p454 = scmp.ne.s32.totalorder %s443, %s446
      %p455 = scmp.eq.s32.totalorder %s36, 3
      %p456 = por %p454, %p455
      %p457 = scmp.ne.s32.totalorder %s446, %s447
      %p458 = scmp.eq.s32.totalorder %s36, 0
      %p459 = por %p457, %p458
      %p460 = scmp.ne.s32.totalorder %s446, %s447
      %p461 = scmp.eq.s32.totalorder %s37, 3
      %p462 = por %p460, %p461
      %p464 = scmp.ne.s32.totalorder %s447, %s463
      %p465 = scmp.eq.s32.totalorder %s37, 0
      %p466 = por %p464, %p465
      %s467 = ssub.s32 %s39, %s46
      %p468 = scmp.eq.s32.totalorder %s467, 0
      %s470 = sadd.s32 %s469, 1
      %s471 = scalar_select %p468, %s469, %s470
      %p474 = pneg %p468
      %p475 = scmp.eq.s32.totalorder %s31, 3
      %p476 = por %p474, %p475
      %p477 = scmp.ne.s32.totalorder %s469, %s472
      %p478 = scmp.eq.s32.totalorder %s31, 0
      %p479 = por %p477, %p478
      %p480 = scmp.ne.s32.totalorder %s469, %s472
      %p481 = scmp.eq.s32.totalorder %s36, 3
      %p482 = por %p480, %p481
      %p483 = scmp.ne.s32.totalorder %s472, %s473
      %p484 = scmp.eq.s32.totalorder %s36, 0
      %p485 = por %p483, %p484
      %p486 = scmp.ne.s32.totalorder %s472, %s473
      %p487 = scmp.eq.s32.totalorder %s37, 3
      %p488 = por %p486, %p487
      %p490 = scmp.ne.s32.totalorder %s473, %s489
      %p491 = scmp.eq.s32.totalorder %s37, 0
      %p492 = por %p490, %p491
      %s493 = ssub.s32 %s39, %s46
      %p494 = scmp.eq.s32.totalorder %s493, 0
      %s496 = sadd.s32 %s495, 1
      %s497 = scalar_select %p494, %s495, %s496
      %p500 = pneg %p494
      %p501 = scmp.eq.s32.totalorder %s31, 3
      %p502 = por %p500, %p501
      %p503 = scmp.ne.s32.totalorder %s495, %s498
      %p504 = scmp.eq.s32.totalorder %s31, 0
      %p505 = por %p503, %p504
      %p506 = scmp.ne.s32.totalorder %s495, %s498
      %p507 = scmp.eq.s32.totalorder %s36, 3
      %p508 = por %p506, %p507
      %p509 = scmp.ne.s32.totalorder %s498, %s499
      %p510 = scmp.eq.s32.totalorder %s36, 0
      %p511 = por %p509, %p510
      %p512 = scmp.ne.s32.totalorder %s498, %s499
      %p513 = scmp.eq.s32.totalorder %s37, 3
      %p514 = por %p512, %p513
      %p516 = scmp.ne.s32.totalorder %s499, %s515
      %p517 = scmp.eq.s32.totalorder %s37, 0
      %p518 = por %p516, %p517
      %s519 = ssub.s32 %s39, %s46
      %p520 = scmp.eq.s32.totalorder %s519, 0
      %s522 = sadd.s32 %s521, 1
      %s523 = scalar_select %p520, %s521, %s522
      %p526 = pneg %p520
      %p527 = scmp.eq.s32.totalorder %s31, 3
      %p528 = por %p526, %p527
      %p529 = scmp.ne.s32.totalorder %s521, %s524
      %p530 = scmp.eq.s32.totalorder %s31, 0
      %p531 = por %p529, %p530
      %p532 = scmp.ne.s32.totalorder %s521, %s524
      %p533 = scmp.eq.s32.totalorder %s36, 3
      %p534 = por %p532, %p533
      %p535 = scmp.ne.s32.totalorder %s524, %s525
      %p536 = scmp.eq.s32.totalorder %s36, 0
      %p537 = por %p535, %p536
      %p538 = scmp.ne.s32.totalorder %s524, %s525
      %p539 = scmp.eq.s32.totalorder %s37, 3
      %p540 = por %p538, %p539
      %p542 = scmp.ne.s32.totalorder %s525, %s541
      %p543 = scmp.eq.s32.totalorder %s37, 0
      %p544 = por %p542, %p543
      %s545 = ssub.s32 %s39, %s46
      %p546 = scmp.eq.s32.totalorder %s545, 0
      %s548 = sadd.s32 %s547, 1
      %s549 = scalar_select %p546, %s547, %s548
      %p552 = pneg %p546
      %p553 = scmp.eq.s32.totalorder %s31, 3
      %p554 = por %p552, %p553
      %p555 = scmp.ne.s32.totalorder %s547, %s550
      %p556 = scmp.eq.s32.totalorder %s31, 0
      %p557 = por %p555, %p556
      %p558 = scmp.ne.s32.totalorder %s547, %s550
      %p559 = scmp.eq.s32.totalorder %s36, 3
      %p560 = por %p558, %p559
      %p561 = scmp.ne.s32.totalorder %s550, %s551
      %p562 = scmp.eq.s32.totalorder %s36, 0
      %p563 = por %p561, %p562
      %p564 = scmp.ne.s32.totalorder %s550, %s551
      %p565 = scmp.eq.s32.totalorder %s37, 3
      %p566 = por %p564, %p565
      %p568 = scmp.ne.s32.totalorder %s551, %s567
      %p569 = scmp.eq.s32.totalorder %s37, 0
      %p570 = por %p568, %p569
      %s571 = ssub.s32 %s39, %s46
      %p572 = scmp.eq.s32.totalorder %s571, 0
      %s574 = sadd.s32 %s573, 1
      %s575 = scalar_select %p572, %s573, %s574
      %p578 = pneg %p572
      %p579 = scmp.eq.s32.totalorder %s31, 3
      %p580 = por %p578, %p579
      %p581 = scmp.ne.s32.totalorder %s573, %s576
      %p582 = scmp.eq.s32.totalorder %s31, 0
      %p583 = por %p581, %p582
      %p584 = scmp.ne.s32.totalorder %s573, %s576
      %p585 = scmp.eq.s32.totalorder %s36, 3
      %p586 = por %p584, %p585
      %p587 = scmp.ne.s32.totalorder %s576, %s577
      %p588 = scmp.eq.s32.totalorder %s36, 0
      %p589 = por %p587, %p588
      %p590 = scmp.ne.s32.totalorder %s576, %s577
      %p591 = scmp.eq.s32.totalorder %s37, 3
      %p592 = por %p590, %p591
      %p594 = scmp.ne.s32.totalorder %s577, %s593
      %p595 = scmp.eq.s32.totalorder %s37, 0
      %p596 = por %p594, %p595
      %s597 = ssub.s32 %s39, %s46
      %p598 = scmp.eq.s32.totalorder %s597, 0
      %s600 = sadd.s32 %s599, 1
      %s601 = scalar_select %p598, %s599, %s600
      %p604 = pneg %p598
      %p605 = scmp.eq.s32.totalorder %s31, 3
      %p606 = por %p604, %p605
      %p607 = scmp.ne.s32.totalorder %s599, %s602
      %p608 = scmp.eq.s32.totalorder %s31, 0
      %p609 = por %p607, %p608
      %p610 = scmp.ne.s32.totalorder %s599, %s602
      %p611 = scmp.eq.s32.totalorder %s36, 3
      %p612 = por %p610, %p611
      %p613 = scmp.ne.s32.totalorder %s602, %s603
      %p614 = scmp.eq.s32.totalorder %s36, 0
      %p615 = por %p613, %p614
      %p616 = scmp.ne.s32.totalorder %s602, %s603
      %p617 = scmp.eq.s32.totalorder %s37, 3
      %p618 = por %p616, %p617
      %p620 = scmp.ne.s32.totalorder %s603, %s619
      %p621 = scmp.eq.s32.totalorder %s37, 0
      %p622 = por %p620, %p621
      %s623 = ssub.s32 %s38, %s50
      %p624 = scmp.eq.s32.totalorder %s623, 0
      %s626 = sadd.s32 %s625, 1
      %s627 = scalar_select %p624, %s625, %s626
      %p630 = pneg %p624
      %p631 = scmp.eq.s32.totalorder %s31, 3
      %p632 = por %p630, %p631
      %p633 = scmp.ne.s32.totalorder %s625, %s628
      %p634 = scmp.eq.s32.totalorder %s31, 0
      %p635 = por %p633, %p634
      %p636 = scmp.ne.s32.totalorder %s625, %s628
      %p637 = scmp.eq.s32.totalorder %s36, 3
      %p638 = por %p636, %p637
      %p639 = scmp.ne.s32.totalorder %s628, %s629
      %p640 = scmp.eq.s32.totalorder %s36, 0
      %p641 = por %p639, %p640
      %p642 = scmp.ne.s32.totalorder %s628, %s629
      %p643 = scmp.eq.s32.totalorder %s37, 3
      %p644 = por %p642, %p643
      %p646 = scmp.ne.s32.totalorder %s629, %s645
      %p647 = scmp.eq.s32.totalorder %s37, 0
      %p648 = por %p646, %p647
      %p649 = scmp.le.s32.totalorder 1, %s31
      %p650 = scmp.lt.s32.totalorder %s31, 5
      %p651 = pnand %p649, %p650
      %p652 = pneg %p651
      // Predicated region
      $region9: #{transformer_decoder.1} parent=5 // pred_check
        _
      $region10: #{transformer_decoder.1} parent=5 // pred_check_branch
        %654 = sbr.rel (%p651) target = $region12
      $region11: #{transformer_decoder.1} parent=5 // pred_region
        %s655 = ssub.s32 %s31, 1
      $region12: #{transformer_decoder.1} parent=5 // pred_fallthru
        _
      %p656 = scmp.lt.s32.totalorder %s31, 4
      // Predicated region
      $region13: #{transformer_decoder.1} parent=5 // pred_check
        %p657 = pneg %p656
      $region14: #{transformer_decoder.1} parent=5 // pred_check_branch
        %659 = sbr.rel (%p657) target = $region16
      $region15: #{transformer_decoder.1} parent=5 // pred_region
        // Predicated region
        $region17: #{transformer_decoder.1} parent=15 // pred_check
          %p660 = pneg %p63
        $region18: #{transformer_decoder.1} parent=15 // pred_check_branch
          %662 = sbr.rel (%p660) target = $region20
        $region19: #{transformer_decoder.1} parent=15 // pred_region
          %p663 = scmp.lt.s32.totalorder %s38, 1
          %s664 = scalar_select %p663, %s38, 1
          %s665 = smul.addr %s664, 8
          %s666 = scalar_lea.vmem %s0, %s665
        $region20: #{transformer_decoder.1} parent=15 // pred_fallthru
          _
        // Predicated region
        $region21: #{transformer_decoder.1} parent=15 // pred_check
          %p667 = pneg %p89
        $region22: #{transformer_decoder.1} parent=15 // pred_check_branch
          %669 = sbr.rel (%p667) target = $region24
        $region23: #{transformer_decoder.1} parent=15 // pred_region
          %p670 = scmp.lt.s32.totalorder %s38, 1
          %s671 = scalar_select %p670, %s38, 1
          %s672 = smul.addr %s671, 2
          %s673 = smul.addr %s672, 8
          %s674 = scalar_lea.vmem %s1, %s673
        $region24: #{transformer_decoder.1} parent=15 // pred_fallthru
          _
        // Predicated region
        $region25: #{transformer_decoder.1} parent=15 // pred_check
          %p675 = pneg %p115
        $region26: #{transformer_decoder.1} parent=15 // pred_check_branch
          %677 = sbr.rel (%p675) target = $region28
        $region27: #{transformer_decoder.1} parent=15 // pred_region
          %p678 = scmp.lt.s32.totalorder %s39, 1
          %s679 = scalar_select %p678, %s39, 1
          %s680 = scalar_lea.vmem %s2, %s679
        $region28: #{transformer_decoder.1} parent=15 // pred_fallthru
          _
        // Predicated region
        $region29: #{transformer_decoder.1} parent=15 // pred_check
          %p681 = pneg %p141
        $region30: #{transformer_decoder.1} parent=15 // pred_check_branch
          %683 = sbr.rel (%p681) target = $region32
        $region31: #{transformer_decoder.1} parent=15 // pred_region
          %p684 = scmp.lt.s32.totalorder %s39, 1
          %s685 = scalar_select %p684, %s39, 1
          %s686 = scalar_lea.vmem %s3, %s685
        $region32: #{transformer_decoder.1} parent=15 // pred_fallthru
          _
        // Predicated region
        $region33: #{transformer_decoder.1} parent=15 // pred_check
          %p687 = pneg %p167
        $region34: #{transformer_decoder.1} parent=15 // pred_check_branch
          %689 = sbr.rel (%p687) target = $region36
        $region35: #{transformer_decoder.1} parent=15 // pred_region
          %p690 = scmp.lt.s32.totalorder %s39, 1
          %s691 = scalar_select %p690, %s39, 1
          %s692 = smul.addr %s691, 12
          %s693 = smul.addr %s692, 4
          %s694 = scalar_lea.vmem %s4, %s693
        $region36: #{transformer_decoder.1} parent=15 // pred_fallthru
          _
        // Predicated region
        $region37: #{transformer_decoder.1} parent=15 // pred_check
          %p695 = pneg %p193
        $region38: #{transformer_decoder.1} parent=15 // pred_check_branch
          %697 = sbr.rel (%p695) target = $region40
        $region39: #{transformer_decoder.1} parent=15 // pred_region
          %p698 = scmp.lt.s32.totalorder %s39, 1
          %s699 = scalar_select %p698, %s39, 1
          %s700 = scalar_lea.vmem %s5, %s699
        $region40: #{transformer_decoder.1} parent=15 // pred_fallthru
          _
        // Predicated region
        $region41: #{transformer_decoder.1} parent=15 // pred_check
          %p701 = pneg %p219
        $region42: #{transformer_decoder.1} parent=15 // pred_check_branch
          %703 = sbr.rel (%p701) target = $region44
        $region43: #{transformer_decoder.1} parent=15 // pred_region
          %p704 = scmp.lt.s32.totalorder %s39, 1
          %s705 = scalar_select %p704, %s39, 1
          %s706 = smul.addr %s705, 4
          %s707 = smul.addr %s706, 4
          %s708 = scalar_lea.vmem %s6, %s707
        $region44: #{transformer_decoder.1} parent=15 // pred_fallthru
          _
        // Predicated region
        $region45: #{transformer_decoder.1} parent=15 // pred_check
          %p709 = pneg %p245
        $region46: #{transformer_decoder.1} parent=15 // pred_check_branch
          %711 = sbr.rel (%p709) target = $region48
        $region47: #{transformer_decoder.1} parent=15 // pred_region
          %p712 = scmp.lt.s32.totalorder %s39, 1
          %s713 = scalar_select %p712, %s39, 1
          %s714 = scalar_lea.vmem %s7, %s713
        $region48: #{transformer_decoder.1} parent=15 // pred_fallthru
          _
        // Predicated region
        $region49: #{transformer_decoder.1} parent=15 // pred_check
          %p715 = pneg %p271
        $region50: #{transformer_decoder.1} parent=15 // pred_check_branch
          %717 = sbr.rel (%p715) target = $region52
        $region51: #{transformer_decoder.1} parent=15 // pred_region
          %p718 = scmp.lt.s32.totalorder %s39, 1
          %s719 = scalar_select %p718, %s39, 1
          %s720 = scalar_lea.vmem %s8, %s719
        $region52: #{transformer_decoder.1} parent=15 // pred_fallthru
          _
        // Predicated region
        $region53: #{transformer_decoder.1} parent=15 // pred_check
          %p721 = pneg %p297
        $region54: #{transformer_decoder.1} parent=15 // pred_check_branch
          %723 = sbr.rel (%p721) target = $region56
        $region55: #{transformer_decoder.1} parent=15 // pred_region
          %p724 = scmp.lt.s32.totalorder %s39, 1
          %s725 = scalar_select %p724, %s39, 1
          %s726 = scalar_lea.vmem %s9, %s725
        $region56: #{transformer_decoder.1} parent=15 // pred_fallthru
          _
        // Predicated region
        $region57: #{transformer_decoder.1} parent=15 // pred_check
          %p727 = pneg %p323
        $region58: #{transformer_decoder.1} parent=15 // pred_check_branch
          %729 = sbr.rel (%p727) target = $region60
        $region59: #{transformer_decoder.1} parent=15 // pred_region
          %p730 = scmp.lt.s32.totalorder %s39, 1
          %s731 = scalar_select %p730, %s39, 1
          %s732 = smul.addr %s731, 4
          %s733 = smul.addr %s732, 4
          %s734 = scalar_lea.vmem %s10, %s733
        $region60: #{transformer_decoder.1} parent=15 // pred_fallthru
          _
        // Predicated region
        $region61: #{transformer_decoder.1} parent=15 // pred_check
          %p735 = pneg %p349
        $region62: #{transformer_decoder.1} parent=15 // pred_check_branch
          %737 = sbr.rel (%p735) target = $region64
        $region63: #{transformer_decoder.1} parent=15 // pred_region
          %p738 = scmp.lt.s32.totalorder %s39, 1
          %s739 = scalar_select %p738, %s39, 1
          %s740 = scalar_lea.vmem %s11, %s739
        $region64: #{transformer_decoder.1} parent=15 // pred_fallthru
          _
        // Predicated region
        $region65: #{transformer_decoder.1} parent=15 // pred_check
          %p741 = pneg %p375
        $region66: #{transformer_decoder.1} parent=15 // pred_check_branch
          %743 = sbr.rel (%p741) target = $region68
        $region67: #{transformer_decoder.1} parent=15 // pred_region
          %p744 = scmp.lt.s32.totalorder %s39, 1
          %s745 = scalar_select %p744, %s39, 1
          %s746 = smul.addr %s745, 8
          %s747 = smul.addr %s746, 4
          %s748 = scalar_lea.vmem %s12, %s747
        $region68: #{transformer_decoder.1} parent=15 // pred_fallthru
          _
        // Predicated region
        $region69: #{transformer_decoder.1} parent=15 // pred_check
          %p749 = pneg %p401
        $region70: #{transformer_decoder.1} parent=15 // pred_check_branch
          %751 = sbr.rel (%p749) target = $region72
        $region71: #{transformer_decoder.1} parent=15 // pred_region
          %p752 = scmp.lt.s32.totalorder %s39, 1
          %s753 = scalar_select %p752, %s39, 1
          %s754 = scalar_lea.vmem %s13, %s753
        $region72: #{transformer_decoder.1} parent=15 // pred_fallthru
          _
        // Predicated region
        $region73: #{transformer_decoder.1} parent=15 // pred_check
          %p755 = pneg %p427
        $region74: #{transformer_decoder.1} parent=15 // pred_check_branch
          %757 = sbr.rel (%p755) target = $region76
        $region75: #{transformer_decoder.1} parent=15 // pred_region
          %p758 = scmp.lt.s32.totalorder %s39, 1
          %s759 = scalar_select %p758, %s39, 1
          %s760 = smul.addr %s759, 4
          %s761 = smul.addr %s760, 4
          %s762 = scalar_lea.vmem %s14, %s761
        $region76: #{transformer_decoder.1} parent=15 // pred_fallthru
          _
        // Predicated region
        $region77: #{transformer_decoder.1} parent=15 // pred_check
          %p763 = pneg %p453
        $region78: #{transformer_decoder.1} parent=15 // pred_check_branch
          %765 = sbr.rel (%p763) target = $region80
        $region79: #{transformer_decoder.1} parent=15 // pred_region
          %p766 = scmp.lt.s32.totalorder %s39, 1
          %s767 = scalar_select %p766, %s39, 1
          %s768 = scalar_lea.vmem %s15, %s767
        $region80: #{transformer_decoder.1} parent=15 // pred_fallthru
          _
        // Predicated region
        $region81: #{transformer_decoder.1} parent=15 // pred_check
          %p769 = pneg %p479
        $region82: #{transformer_decoder.1} parent=15 // pred_check_branch
          %771 = sbr.rel (%p769) target = $region84
        $region83: #{transformer_decoder.1} parent=15 // pred_region
          %p772 = scmp.lt.s32.totalorder %s39, 1
          %s773 = scalar_select %p772, %s39, 1
          %s774 = scalar_lea.vmem %s16, %s773
        $region84: #{transformer_decoder.1} parent=15 // pred_fallthru
          _
        // Predicated region
        $region85: #{transformer_decoder.1} parent=15 // pred_check
          %p775 = pneg %p505
        $region86: #{transformer_decoder.1} parent=15 // pred_check_branch
          %777 = sbr.rel (%p775) target = $region88
        $region87: #{transformer_decoder.1} parent=15 // pred_region
          %p778 = scmp.lt.s32.totalorder %s39, 1
          %s779 = scalar_select %p778, %s39, 1
          %s780 = scalar_lea.vmem %s17, %s779
        $region88: #{transformer_decoder.1} parent=15 // pred_fallthru
          _
        // Predicated region
        $region89: #{transformer_decoder.1} parent=15 // pred_check
          %p781 = pneg %p531
        $region90: #{transformer_decoder.1} parent=15 // pred_check_branch
          %783 = sbr.rel (%p781) target = $region92
        $region91: #{transformer_decoder.1} parent=15 // pred_region
          %p784 = scmp.lt.s32.totalorder %s39, 1
          %s785 = scalar_select %p784, %s39, 1
          %s786 = smul.addr %s785, 8
          %s787 = smul.addr %s786, 4
          %s788 = scalar_lea.vmem %s18, %s787
        $region92: #{transformer_decoder.1} parent=15 // pred_fallthru
          _
        // Predicated region
        $region93: #{transformer_decoder.1} parent=15 // pred_check
          %p789 = pneg %p557
        $region94: #{transformer_decoder.1} parent=15 // pred_check_branch
          %791 = sbr.rel (%p789) target = $region96
        $region95: #{transformer_decoder.1} parent=15 // pred_region
          %p792 = scmp.lt.s32.totalorder %s39, 1
          %s793 = scalar_select %p792, %s39, 1
          %s794 = scalar_lea.vmem %s19, %s793
        $region96: #{transformer_decoder.1} parent=15 // pred_fallthru
          _
        // Predicated region
        $region97: #{transformer_decoder.1} parent=15 // pred_check
          %p795 = pneg %p583
        $region98: #{transformer_decoder.1} parent=15 // pred_check_branch
          %797 = sbr.rel (%p795) target = $region100
        $region99: #{transformer_decoder.1} parent=15 // pred_region
          %p798 = scmp.lt.s32.totalorder %s39, 1
          %s799 = scalar_select %p798, %s39, 1
          %s800 = smul.addr %s799, 4
          %s801 = smul.addr %s800, 4
          %s802 = scalar_lea.vmem %s20, %s801
        $region100: #{transformer_decoder.1} parent=15 // pred_fallthru
          _
        // Predicated region
        $region101: #{transformer_decoder.1} parent=15 // pred_check
          %p803 = pneg %p609
        $region102: #{transformer_decoder.1} parent=15 // pred_check_branch
          %805 = sbr.rel (%p803) target = $region104
        $region103: #{transformer_decoder.1} parent=15 // pred_region
          %p806 = scmp.lt.s32.totalorder %s39, 1
          %s807 = scalar_select %p806, %s39, 1
          %s808 = scalar_lea.vmem %s21, %s807
        $region104: #{transformer_decoder.1} parent=15 // pred_fallthru
          _
      $region16: #{transformer_decoder.1} parent=5 // pred_fallthru
        _
      %p809 = scmp.le.s32.totalorder 1, %s31
      %p810 = scmp.lt.s32.totalorder %s31, 5
      %p811 = pnand %p809, %p810
      %p812 = pneg %p811
      // Predicated region
      $region105: #{transformer_decoder.1} parent=5 // pred_check
        _
      $region106: #{transformer_decoder.1} parent=5 // pred_check_branch
        %814 = sbr.rel (%p811) target = $region108
      $region107: #{transformer_decoder.1} parent=5 // pred_region
        %s815 = ssub.s32 %s31, 1
        %p816 = scmp.lt.s32.totalorder %s40, 1
        %s817 = scalar_select %p816, %s40, 1
        %s818 = smul.addr %s817, 8
        %s819 = scalar_lea.vmem %s0, %s818
        %p820 = pneg %p69
        %p821 = pneg %p66
        %p822 = scmp.lt.s32.totalorder %s40, 1
        %s823 = scalar_select %p822, %s40, 1
        %s824 = smul.addr %s823, 2
        %s825 = smul.addr %s824, 8
        %s826 = scalar_lea.vmem %s1, %s825
        %p827 = pneg %p95
        %p828 = pneg %p92
        %p829 = scmp.lt.s32.totalorder %s41, 1
        %s830 = scalar_select %p829, %s41, 1
        %s831 = scalar_lea.vmem %s2, %s830
        %p832 = pneg %p121
        %p833 = pneg %p118
        %p834 = scmp.lt.s32.totalorder %s41, 1
        %s835 = scalar_select %p834, %s41, 1
        %s836 = scalar_lea.vmem %s3, %s835
        %p837 = pneg %p147
        %p838 = pneg %p144
        %p839 = scmp.lt.s32.totalorder %s41, 1
        %s840 = scalar_select %p839, %s41, 1
        %s841 = smul.addr %s840, 12
        %s842 = smul.addr %s841, 4
        %s843 = scalar_lea.vmem %s4, %s842
        %p844 = pneg %p173
        %p845 = pneg %p170
        %p846 = scmp.lt.s32.totalorder %s41, 1
        %s847 = scalar_select %p846, %s41, 1
        %s848 = scalar_lea.vmem %s5, %s847
        %p849 = pneg %p199
        %p850 = pneg %p196
        %p851 = scmp.lt.s32.totalorder %s41, 1
        %s852 = scalar_select %p851, %s41, 1
        %s853 = smul.addr %s852, 4
        %s854 = smul.addr %s853, 4
        %s855 = scalar_lea.vmem %s6, %s854
        %p856 = pneg %p225
        %p857 = pneg %p222
        %p858 = scmp.lt.s32.totalorder %s41, 1
        %s859 = scalar_select %p858, %s41, 1
        %s860 = scalar_lea.vmem %s7, %s859
        %p861 = pneg %p251
        %p862 = pneg %p248
        %p863 = scmp.lt.s32.totalorder %s41, 1
        %s864 = scalar_select %p863, %s41, 1
        %s865 = scalar_lea.vmem %s8, %s864
        %p866 = pneg %p277
        %p867 = pneg %p274
        %p868 = scmp.lt.s32.totalorder %s41, 1
        %s869 = scalar_select %p868, %s41, 1
        %s870 = scalar_lea.vmem %s9, %s869
        %p871 = pneg %p303
        %p872 = pneg %p300
        %p873 = scmp.lt.s32.totalorder %s41, 1
        %s874 = scalar_select %p873, %s41, 1
        %s875 = smul.addr %s874, 4
        %s876 = smul.addr %s875, 4
        %s877 = scalar_lea.vmem %s10, %s876
        %p878 = pneg %p329
        %p879 = pneg %p326
        %p880 = scmp.lt.s32.totalorder %s41, 1
        %s881 = scalar_select %p880, %s41, 1
        %s882 = scalar_lea.vmem %s11, %s881
        %p883 = pneg %p355
        %p884 = pneg %p352
        %p885 = scmp.lt.s32.totalorder %s41, 1
        %s886 = scalar_select %p885, %s41, 1
        %s887 = smul.addr %s886, 8
        %s888 = smul.addr %s887, 4
        %s889 = scalar_lea.vmem %s12, %s888
        %p890 = pneg %p381
        %p891 = pneg %p378
        %p892 = scmp.lt.s32.totalorder %s41, 1
        %s893 = scalar_select %p892, %s41, 1
        %s894 = scalar_lea.vmem %s13, %s893
        %p895 = pneg %p407
        %p896 = pneg %p404
        %p897 = scmp.lt.s32.totalorder %s41, 1
        %s898 = scalar_select %p897, %s41, 1
        %s899 = smul.addr %s898, 4
        %s900 = smul.addr %s899, 4
        %s901 = scalar_lea.vmem %s14, %s900
        %p902 = pneg %p433
        %p903 = pneg %p430
        %p904 = scmp.lt.s32.totalorder %s41, 1
        %s905 = scalar_select %p904, %s41, 1
        %s906 = scalar_lea.vmem %s15, %s905
        %p907 = pneg %p459
        %p908 = pneg %p456
        %p909 = scmp.lt.s32.totalorder %s41, 1
        %s910 = scalar_select %p909, %s41, 1
        %s911 = scalar_lea.vmem %s16, %s910
        %p912 = pneg %p485
        %p913 = pneg %p482
        %p914 = scmp.lt.s32.totalorder %s41, 1
        %s915 = scalar_select %p914, %s41, 1
        %s916 = scalar_lea.vmem %s17, %s915
        %p917 = pneg %p511
        %p918 = pneg %p508
        %p919 = scmp.lt.s32.totalorder %s41, 1
        %s920 = scalar_select %p919, %s41, 1
        %s921 = smul.addr %s920, 8
        %s922 = smul.addr %s921, 4
        %s923 = scalar_lea.vmem %s18, %s922
        %p924 = pneg %p537
        %p925 = pneg %p534
        %p926 = scmp.lt.s32.totalorder %s41, 1
        %s927 = scalar_select %p926, %s41, 1
        %s928 = scalar_lea.vmem %s19, %s927
        %p929 = pneg %p563
        %p930 = pneg %p560
        %p931 = scmp.lt.s32.totalorder %s41, 1
        %s932 = scalar_select %p931, %s41, 1
        %s933 = smul.addr %s932, 4
        %s934 = smul.addr %s933, 4
        %s935 = scalar_lea.vmem %s20, %s934
        %p936 = pneg %p589
        %p937 = pneg %p586
        %p938 = scmp.lt.s32.totalorder %s41, 1
        %s939 = scalar_select %p938, %s41, 1
        %s940 = scalar_lea.vmem %s21, %s939
        %p941 = pneg %p615
        %p942 = pneg %p612
        %p943 = pneg %p641
        %p944 = pneg %p638
        %s945 = sand.u32 %s628, 1
        %s946 = scalar_lea.sflag [#allocation4], %s945
        %s947 = sand.u32 %s628, 1
        %s948 = smul.addr %s947, 8
        %s949 = scalar_lea.vmem [#allocation3], %s948
        %p950 = scmp.lt.s32.totalorder %s40, 1
        %s951 = scalar_select %p950, %s40, 1
        %s952 = smul.addr %s951, 8
        %s953 = scalar_lea.vmem %s0, %s952
        %p954 = scmp.lt.s32.totalorder %s40, 1
        %s955 = scalar_select %p954, %s40, 1
        %s956 = smul.addr %s955, 2
        %s957 = smul.addr %s956, 8
        %s958 = scalar_lea.vmem %s1, %s957
        %p959 = scmp.lt.s32.totalorder %s41, 1
        %s960 = scalar_select %p959, %s41, 1
        %s961 = scalar_lea.vmem %s2, %s960
        %p962 = scmp.lt.s32.totalorder %s41, 1
        %s963 = scalar_select %p962, %s41, 1
        %s964 = scalar_lea.vmem %s3, %s963
        %p965 = scmp.lt.s32.totalorder %s41, 1
        %s966 = scalar_select %p965, %s41, 1
        %s967 = smul.addr %s966, 12
        %s968 = smul.addr %s967, 4
        %s969 = scalar_lea.vmem %s4, %s968
        %p970 = scmp.lt.s32.totalorder %s41, 1
        %s971 = scalar_select %p970, %s41, 1
        %s972 = scalar_lea.vmem %s5, %s971
        %p973 = scmp.lt.s32.totalorder %s41, 1
        %s974 = scalar_select %p973, %s41, 1
        %s975 = smul.addr %s974, 4
        %s976 = smul.addr %s975, 4
        %s977 = scalar_lea.vmem %s6, %s976
        %p978 = scmp.lt.s32.totalorder %s41, 1
        %s979 = scalar_select %p978, %s41, 1
        %s980 = scalar_lea.vmem %s7, %s979
        %p981 = scmp.lt.s32.totalorder %s41, 1
        %s982 = scalar_select %p981, %s41, 1
        %s983 = scalar_lea.vmem %s8, %s982
        %p984 = scmp.lt.s32.totalorder %s41, 1
        %s985 = scalar_select %p984, %s41, 1
        %s986 = scalar_lea.vmem %s9, %s985
        %p987 = scmp.lt.s32.totalorder %s41, 1
        %s988 = scalar_select %p987, %s41, 1
        %s989 = smul.addr %s988, 4
        %s990 = smul.addr %s989, 4
        %s991 = scalar_lea.vmem %s10, %s990
        %p992 = scmp.lt.s32.totalorder %s41, 1
        %s993 = scalar_select %p992, %s41, 1
        %s994 = scalar_lea.vmem %s11, %s993
        %p995 = scmp.lt.s32.totalorder %s41, 1
        %s996 = scalar_select %p995, %s41, 1
        %s997 = smul.addr %s996, 8
        %s998 = smul.addr %s997, 4
        %s999 = scalar_lea.vmem %s12, %s998
        %p1000 = scmp.lt.s32.totalorder %s41, 1
        %s1001 = scalar_select %p1000, %s41, 1
        %s1002 = scalar_lea.vmem %s13, %s1001
        %p1003 = scmp.lt.s32.totalorder %s41, 1
        %s1004 = scalar_select %p1003, %s41, 1
        %s1005 = smul.addr %s1004, 4
        %s1006 = smul.addr %s1005, 4
        %s1007 = scalar_lea.vmem %s14, %s1006
        %p1008 = scmp.lt.s32.totalorder %s41, 1
        %s1009 = scalar_select %p1008, %s41, 1
        %s1010 = scalar_lea.vmem %s15, %s1009
        %p1011 = scmp.lt.s32.totalorder %s41, 1
        %s1012 = scalar_select %p1011, %s41, 1
        %s1013 = scalar_lea.vmem %s16, %s1012
        %p1014 = scmp.lt.s32.totalorder %s41, 1
        %s1015 = scalar_select %p1014, %s41, 1
        %s1016 = scalar_lea.vmem %s17, %s1015
        %p1017 = scmp.lt.s32.totalorder %s41, 1
        %s1018 = scalar_select %p1017, %s41, 1
        %s1019 = smul.addr %s1018, 8
        %s1020 = smul.addr %s1019, 4
        %s1021 = scalar_lea.vmem %s18, %s1020
        %p1022 = scmp.lt.s32.totalorder %s41, 1
        %s1023 = scalar_select %p1022, %s41, 1
        %s1024 = scalar_lea.vmem %s19, %s1023
        %p1025 = scmp.lt.s32.totalorder %s41, 1
        %s1026 = scalar_select %p1025, %s41, 1
        %s1027 = smul.addr %s1026, 4
        %s1028 = smul.addr %s1027, 4
        %s1029 = scalar_lea.vmem %s20, %s1028
        %p1030 = scmp.lt.s32.totalorder %s41, 1
        %s1031 = scalar_select %p1030, %s41, 1
        %s1032 = scalar_lea.vmem %s21, %s1031
        %p1034 = scmp.eq.s32.totalorder %s41, 0
        // Predicated region
        $region109: #{transformer_decoder.1} parent=107 // pred_check
          %p1035 = pneg %p1034
        $region110: #{transformer_decoder.1} parent=107 // pred_check_branch
          %1037 = sbr.rel (%p1035) target = $region112
        $region111: #{transformer_decoder.1} parent=107 // pred_region
          %v1038 = vld [vmem:[%s953] sm:$0xff]
          %vm1039 = vcmask 261120
          %1040 = vst.msk [vmem:[#allocation2] sm:$0xff] %vm1039, %v1038
        $region112: #{transformer_decoder.1} parent=107 // pred_fallthru
          _
        %v1041 = vld [vmem:[#allocation2] sm:$0xff]
        %v1042 = vld [vmem:[%s961] sm:$0x1]
        %v1043 = vld [vmem:[%s964] sm:$0x1]
        %vm1044 = vcmask 261120
        %v1045 = vsel %vm1044, %v1041, 0.0
        %1046 = vadd.xlane.f32.xlu0 %v1045
        %v1047 = vpop.xlane.xlu0 %1046
        %v1048 = vrcp.pop 32.0
        %v1049 = vmul.f32 %v1047, %v1048
        %v1050 = vsub.f32 %v1041, %v1049
        %v1051 = vmul.f32 %v1050, %v1050
        %v1052 = vsel %vm1044, %v1051, 0.0
        %1053 = vadd.xlane.f32.xlu0 %v1052
        %v1054 = vpop.xlane.xlu0 %1053
        %v1055 = vmul.f32 %v1054, %v1048
        %v1056 = vadd.f32 %v1055, 1e-05
        %v1057 = vrsqrt.pop %v1056
        %v1058 = vmul.f32 %v1050, %v1057
        %v1060 = vlaneseq
        %v1061 = vshrl.u32 %v1060, 7
        %v1062 = vsub.s32 0, %v1061
        %v1063 = vrot.slane %v1042, %v1062
        %v1065 = vmul.f32 %v1058, %v1063
        %v1067 = vlaneseq
        %v1068 = vshrl.u32 %v1067, 7
        %v1069 = vsub.s32 0, %v1068
        %v1070 = vrot.slane %v1043, %v1069
        %v1072 = vadd.f32 %v1065, %v1070
        %v1073 = vld [vmem:[%s969] sm:$0xf]
        %v1074 = vld [vmem:[%s969 + $0x4] sm:$0xf]
        %v1075 = vld [vmem:[%s969 + $0x8] sm:$0xf]
        %v1076 = vld [vmem:[%s969 + $0xc] sm:$0xf]
        %v1077 = vld [vmem:[%s969 + $0x10] sm:$0xf]
        %v1078 = vld [vmem:[%s969 + $0x14] sm:$0xf]
        %v1079 = vld [vmem:[%s969 + $0x18] sm:$0xf]
        %v1080 = vld [vmem:[%s969 + $0x1c] sm:$0xf]
        %v1081 = vld [vmem:[%s969 + $0x20] sm:$0xf]
        %v1082 = vld [vmem:[%s969 + $0x24] sm:$0xf]
        %v1083 = vld [vmem:[%s969 + $0x28] sm:$0xf]
        %v1084 = vld [vmem:[%s969 + $0x2c] sm:$0xf]
        %v1085 = vld [vmem:[%s972] sm:$0x1]
        %v1086 = vpack.c.bf16 %v1072, %v1072
        %v1088 = vlaneseq
        %v1089 = vshrl.u32 %v1088, 7
        %v1090 = vsub.s32 0, %v1089
        %v1091 = vrot.slane %v1085, %v1090
        %v1105 = vunpack.c.l.b16 %v1073
        %v1106 = vunpack.c.l.b16 %v1074
        %v1107 = vunpack.c.l.b16 %v1075
        %v1108 = vunpack.c.l.b16 %v1076
        %v1109 = vunpack.c.l.b16 %v1077
        %v1110 = vunpack.c.l.b16 %v1078
        %v1111 = vunpack.c.l.b16 %v1079
        %v1112 = vunpack.c.l.b16 %v1080
        %v1113 = vunpack.c.l.b16 %v1081
        %v1114 = vunpack.c.l.b16 %v1082
        %v1115 = vunpack.c.l.b16 %v1083
        %v1116 = vunpack.c.l.b16 %v1084
        %v1117 = vpack.c.b16 %v1106, %v1105
        %v1118 = vpack.c.b16 %v1108, %v1107
        %v1119 = vpack.c.b16 %v1110, %v1109
        %v1120 = vpack.c.b16 %v1112, %v1111
        %v1121 = vpack.c.b16 %v1114, %v1113
        %v1122 = vpack.c.b16 %v1116, %v1115
        %v1124 = vsel %vm1044, %v1086, 0
        %v1127 = vsel %vm1044, %v1117, 0
        %v1130 = vsel %vm1044, %v1118, 0
        %v1133 = vsel %vm1044, %v1119, 0
        %v1136 = vsel %vm1044, %v1120, 0
        %v1139 = vsel %vm1044, %v1121, 0
        %v1142 = vsel %vm1044, %v1122, 0
        %1144 = vmatprep.subr.bf16.mxu0 0
        %1145 = vmatpush1.bf16.xpose.msra.mxu0 %v1127
        %1146 = vmatprep.subr.bf16.mxu0 0
        %1147 = vmatpush1.bf16.xpose.msra.mxu0 %v1130
        %1148 = vmatprep.subr.bf16.mxu0 0
        %1149 = vmatpush1.bf16.xpose.msra.mxu0 %v1133
        %1150 = vmatprep.subr.bf16.mxu0 0
        %1151 = vmatpush1.bf16.xpose.msra.mxu0 %v1136
        %1152 = vmatprep.subr.bf16.mxu0 0
        %1153 = vmatpush1.bf16.xpose.msra.mxu0 %v1139
        %1154 = vmatprep.subr.bf16.mxu0 0
        %1155 = vmatpush1.bf16.xpose.msra.mxu0 %v1142
        %1156 = vmatprep.subr.bf16.mxu0 0
        %1157 = vmatpush1.bf16.xpose.msra.mxu0 0
        %1158 = vmatprep.subr.bf16.mxu0 0
        %1159 = vmatpush1.bf16.xpose.msra.mxu0 0
        %1160 = vmatprep.subr.bf16.mxu0 0
        %1161 = vmatpush1.bf16.xpose.msra.mxu0 0
        %1162 = vmatprep.subr.bf16.mxu0 0
        %1163 = vmatpush1.bf16.xpose.msra.mxu0 0
        %1164 = vmatprep.subr.bf16.mxu0 0
        %1165 = vmatpush1.bf16.xpose.msra.mxu0 0
        %1166 = vmatprep.subr.bf16.mxu0 0
        %1167 = vmatpush1.bf16.xpose.msra.mxu0 0
        %1168 = vmatprep.subr.bf16.mxu0 0
        %1169 = vmatpush1.bf16.xpose.msra.mxu0 0
        %1170 = vmatprep.subr.bf16.mxu0 0
        %1171 = vmatpush1.bf16.xpose.msra.mxu0 0
        %1172 = vmatprep.subr.bf16.mxu0 0
        %1173 = vmatpush1.bf16.xpose.msra.mxu0 0
        %1174 = vmatprep.subr.bf16.mxu0 0
        %1175 = vmatpush1.bf16.xpose.msra.mxu0 0
        %1176 = vmatprep.mubr.bf16.mxu0 0
        %1177 = vmatmul.mubr.bf16.gmra.mrb[0].mxu0 %v1124
        %v1178 = vpop.f32.mrb[0].mxu0
        %v1179 = vadd.f32 %v1091, %v1178
        %v1180 = vpop.f32.mrb[0].mxu0
        %v1181 = vpop.f32.mrb[0].mxu0
        %v1182 = vpop.f32.mrb[0].mxu0
        %1183 = vdwg.mxu0
        %v1184 = vld [vmem:[%s977] sm:$0xf]
        %v1185 = vld [vmem:[%s977 + $0x4] sm:$0xf]
        %v1186 = vld [vmem:[%s977 + $0x8] sm:$0xf]
        %v1187 = vld [vmem:[%s977 + $0xc] sm:$0xf]
        %v1188 = vld [vmem:[%s980] sm:$0x1]
        %v1189 = vpack.c.bf16 %v1179, %v1179
        %1191 = vrot.lane.b32.xlu0 %v1189, 96
        %v1192 = vpop.permute.xlu0 %1191
        %vm1193 = vcmask 64512
        %v1195 = vsel %vm1193, %v1189, 0
        %v1198 = vsel %vm1193, %v1192, 0
        %1200 = vmatprep.subr.bf16.mxu0 0
        %1201 = vmatpush1.bf16.xpose.msra.mxu0 %v1198
        %1202 = vmatprep.subr.bf16.mxu0 0
        %1203 = vmatpush1.bf16.xpose.msra.mxu0 0
        %1204 = vmatprep.subr.bf16.mxu0 0
        %1205 = vmatpush1.bf16.xpose.msra.mxu0 0
        %1206 = vmatprep.subr.bf16.mxu0 0
        %1207 = vmatpush1.bf16.xpose.msra.mxu0 0
        %1208 = vmatprep.subr.bf16.mxu0 0
        %1209 = vmatpush1.bf16.xpose.msra.mxu0 0
        %1210 = vmatprep.subr.bf16.mxu0 0
        %1211 = vmatpush1.bf16.xpose.msra.mxu0 0
        %1212 = vmatprep.subr.bf16.mxu0 0
        %1213 = vmatpush1.bf16.xpose.msra.mxu0 0
        %1214 = vmatprep.subr.bf16.mxu0 0
        %1215 = vmatpush1.bf16.xpose.msra.mxu0 0
        %1216 = vmatprep.subr.bf16.mxu0 0
        %1217 = vmatpush1.bf16.xpose.msra.mxu0 0
        %1218 = vmatprep.subr.bf16.mxu0 0
        %1219 = vmatpush1.bf16.xpose.msra.mxu0 0
        %1220 = vmatprep.subr.bf16.mxu0 0
        %1221 = vmatpush1.bf16.xpose.msra.mxu0 0
        %1222 = vmatprep.subr.bf16.mxu0 0
        %1223 = vmatpush1.bf16.xpose.msra.mxu0 0
        %1224 = vmatprep.subr.bf16.mxu0 0
        %1225 = vmatpush1.bf16.xpose.msra.mxu0 0
        %1226 = vmatprep.subr.bf16.mxu0 0
        %1227 = vmatpush1.bf16.xpose.msra.mxu0 0
        %1228 = vmatprep.subr.bf16.mxu0 0
        %1229 = vmatpush1.bf16.xpose.msra.mxu0 0
        %1230 = vmatprep.subr.bf16.mxu0 0
        %1231 = vmatpush1.bf16.xpose.msra.mxu0 0
        %1232 = vmatprep.mubr.bf16.mxu0 0
        %1233 = vmatmul.mubr.bf16.gmra.mrb[0].mxu0 %v1195
        %v1234 = vpop.f32.mrb[0].mxu0
        %v1235 = vadd.f32 0.0, %v1234
        %v1236 = vpop.f32.mrb[0].mxu0
        %v1237 = vpop.f32.mrb[0].mxu0
        %v1238 = vpop.f32.mrb[0].mxu0
        %1239 = vdwg.mxu0
        %v1240 = vsel %vm1193, %v1235, -inf
        %1241 = vmax.xlane.f32.xlu0 %v1240
        %v1242 = vpop.xlane.xlu0 %1241
        %v1243 = vsub.f32 %v1235, %v1242
        %v1244 = vmul.f32 %v1243, 1.442695
        %v1245 = vpow.pop %v1244
        %v1246 = vsel %vm1193, %v1245, 0.0
        %1247 = vadd.xlane.f32.xlu0 %v1246
        %v1248 = vpop.xlane.xlu0 %1247
        %v1249 = vrcp.pop %v1248
        %v1250 = vmul.f32 %v1245, %v1249
        %v1251 = vpack.c.bf16 %v1250, %v1250
        %1252 = vrot.lane.b32.xlu0 %v1189, 64
        %v1253 = vpop.permute.xlu0 %1252
        %v1255 = vsel %vm1193, %v1251, 0
        %vm1257 = vcmask 1043456
        %v1259 = vsel %vm1257, %v1253, 0
        %1261 = vmatprep.subr.bf16.mxu0 0
        %1262 = vmatpush1.bf16.msra.mxu0 %v1259
        %1263 = vmatprep.subr.bf16.mxu0 0
        %1264 = vmatpush1.bf16.msra.mxu0 0
        %1265 = vmatprep.subr.bf16.mxu0 0
        %1266 = vmatpush1.bf16.msra.mxu0 0
        %1267 = vmatprep.subr.bf16.mxu0 0
        %1268 = vmatpush1.bf16.msra.mxu0 0
        %1269 = vmatprep.subr.bf16.mxu0 0
        %1270 = vmatpush1.bf16.msra.mxu0 0
        %1271 = vmatprep.subr.bf16.mxu0 0
        %1272 = vmatpush1.bf16.msra.mxu0 0
        %1273 = vmatprep.subr.bf16.mxu0 0
        %1274 = vmatpush1.bf16.msra.mxu0 0
        %1275 = vmatprep.subr.bf16.mxu0 0
        %1276 = vmatpush1.bf16.msra.mxu0 0
        %1277 = vmatprep.subr.bf16.mxu0 0
        %1278 = vmatpush1.bf16.msra.mxu0 0
        %1279 = vmatprep.subr.bf16.mxu0 0
        %1280 = vmatpush1.bf16.msra.mxu0 0
        %1281 = vmatprep.subr.bf16.mxu0 0
        %1282 = vmatpush1.bf16.msra.mxu0 0
        %1283 = vmatprep.subr.bf16.mxu0 0
        %1284 = vmatpush1.bf16.msra.mxu0 0
        %1285 = vmatprep.subr.bf16.mxu0 0
        %1286 = vmatpush1.bf16.msra.mxu0 0
        %1287 = vmatprep.subr.bf16.mxu0 0
        %1288 = vmatpush1.bf16.msra.mxu0 0
        %1289 = vmatprep.subr.bf16.mxu0 0
        %1290 = vmatpush1.bf16.msra.mxu0 0
        %1291 = vmatprep.subr.bf16.mxu0 0
        %1292 = vmatpush1.bf16.msra.mxu0 0
        %1293 = vmatprep.mubr.bf16.mxu0 0
        %1294 = vmatmul.mubr.bf16.gmra.mrb[0].mxu0 %v1255
        %v1295 = vpop.f32.mrb[0].mxu0
        %v1296 = vadd.f32 0.0, %v1295
        %v1297 = vpop.f32.mrb[0].mxu0
        %v1298 = vpop.f32.mrb[0].mxu0
        %v1299 = vpop.f32.mrb[0].mxu0
        %1300 = vdwg.mxu0
        %v1301 = vpack.c.bf16 %v1296, %v1296
        %1302 = vrot.lane.b32.xlu0 %v1189, 120
        %v1303 = vpop.permute.xlu0 %1302
        %1304 = vrot.lane.b32.xlu0 %v1189, 88
        %v1305 = vpop.permute.xlu0 %1304
        %v1307 = vsel %vm1193, %v1303, 0
        %v1310 = vsel %vm1193, %v1305, 0
        %1312 = vmatprep.subr.bf16.mxu0 0
        %1313 = vmatpush1.bf16.xpose.msra.mxu0 %v1310
        %1314 = vmatprep.subr.bf16.mxu0 0
        %1315 = vmatpush1.bf16.xpose.msra.mxu0 0
        %1316 = vmatprep.subr.bf16.mxu0 0
        %1317 = vmatpush1.bf16.xpose.msra.mxu0 0
        %1318 = vmatprep.subr.bf16.mxu0 0
        %1319 = vmatpush1.bf16.xpose.msra.mxu0 0
        %1320 = vmatprep.subr.bf16.mxu0 0
        %1321 = vmatpush1.bf16.xpose.msra.mxu0 0
        %1322 = vmatprep.subr.bf16.mxu0 0
        %1323 = vmatpush1.bf16.xpose.msra.mxu0 0
        %1324 = vmatprep.subr.bf16.mxu0 0
        %1325 = vmatpush1.bf16.xpose.msra.mxu0 0
        %1326 = vmatprep.subr.bf16.mxu0 0
        %1327 = vmatpush1.bf16.xpose.msra.mxu0 0
        %1328 = vmatprep.subr.bf16.mxu0 0
        %1329 = vmatpush1.bf16.xpose.msra.mxu0 0
        %1330 = vmatprep.subr.bf16.mxu0 0
        %1331 = vmatpush1.bf16.xpose.msra.mxu0 0
        %1332 = vmatprep.subr.bf16.mxu0 0
        %1333 = vmatpush1.bf16.xpose.msra.mxu0 0
        %1334 = vmatprep.subr.bf16.mxu0 0
        %1335 = vmatpush1.bf16.xpose.msra.mxu0 0
        %1336 = vmatprep.subr.bf16.mxu0 0
        %1337 = vmatpush1.bf16.xpose.msra.mxu0 0
        %1338 = vmatprep.subr.bf16.mxu0 0
        %1339 = vmatpush1.bf16.xpose.msra.mxu0 0
        %1340 = vmatprep.subr.bf16.mxu0 0
        %1341 = vmatpush1.bf16.xpose.msra.mxu0 0
        %1342 = vmatprep.subr.bf16.mxu0 0
        %1343 = vmatpush1.bf16.xpose.msra.mxu0 0
        %1344 = vmatprep.mubr.bf16.mxu0 0
        %1345 = vmatmul.mubr.bf16.gmra.mrb[0].mxu0 %v1307
        %v1346 = vpop.f32.mrb[0].mxu0
        %v1347 = vadd.f32 0.0, %v1346
        %v1348 = vpop.f32.mrb[0].mxu0
        %v1349 = vpop.f32.mrb[0].mxu0
        %v1350 = vpop.f32.mrb[0].mxu0
        %1351 = vdwg.mxu0
        %v1352 = vsel %vm1193, %v1347, -inf
        %1353 = vmax.xlane.f32.xlu0 %v1352
        %v1354 = vpop.xlane.xlu0 %1353
        %v1355 = vsub.f32 %v1347, %v1354
        %v1356 = vmul.f32 %v1355, 1.442695
        %v1357 = vpow.pop %v1356
        %v1358 = vsel %vm1193, %v1357, 0.0
        %1359 = vadd.xlane.f32.xlu0 %v1358
        %v1360 = vpop.xlane.xlu0 %1359
        %v1361 = vrcp.pop %v1360
        %v1362 = vmul.f32 %v1357, %v1361
        %v1363 = vpack.c.bf16 %v1362, %v1362
        %1364 = vrot.lane.b32.xlu0 %v1189, 56
        %v1365 = vpop.permute.xlu0 %1364
        %v1367 = vsel %vm1193, %v1363, 0
        %v1370 = vsel %vm1257, %v1365, 0
        %1372 = vmatprep.subr.bf16.mxu0 0
        %1373 = vmatpush1.bf16.msra.mxu0 %v1370
        %1374 = vmatprep.subr.bf16.mxu0 0
        %1375 = vmatpush1.bf16.msra.mxu0 0
        %1376 = vmatprep.subr.bf16.mxu0 0
        %1377 = vmatpush1.bf16.msra.mxu0 0
        %1378 = vmatprep.subr.bf16.mxu0 0
        %1379 = vmatpush1.bf16.msra.mxu0 0
        %1380 = vmatprep.subr.bf16.mxu0 0
        %1381 = vmatpush1.bf16.msra.mxu0 0
        %1382 = vmatprep.subr.bf16.mxu0 0
        %1383 = vmatpush1.bf16.msra.mxu0 0
        %1384 = vmatprep.subr.bf16.mxu0 0
        %1385 = vmatpush1.bf16.msra.mxu0 0
        %1386 = vmatprep.subr.bf16.mxu0 0
        %1387 = vmatpush1.bf16.msra.mxu0 0
        %1388 = vmatprep.subr.bf16.mxu0 0
        %1389 = vmatpush1.bf16.msra.mxu0 0
        %1390 = vmatprep.subr.bf16.mxu0 0
        %1391 = vmatpush1.bf16.msra.mxu0 0
        %1392 = vmatprep.subr.bf16.mxu0 0
        %1393 = vmatpush1.bf16.msra.mxu0 0
        %1394 = vmatprep.subr.bf16.mxu0 0
        %1395 = vmatpush1.bf16.msra.mxu0 0
        %1396 = vmatprep.subr.bf16.mxu0 0
        %1397 = vmatpush1.bf16.msra.mxu0 0
        %1398 = vmatprep.subr.bf16.mxu0 0
        %1399 = vmatpush1.bf16.msra.mxu0 0
        %1400 = vmatprep.subr.bf16.mxu0 0
        %1401 = vmatpush1.bf16.msra.mxu0 0
        %1402 = vmatprep.subr.bf16.mxu0 0
        %1403 = vmatpush1.bf16.msra.mxu0 0
        %1404 = vmatprep.mubr.bf16.mxu0 0
        %1405 = vmatmul.mubr.bf16.gmra.mrb[0].mxu0 %v1367
        %v1406 = vpop.f32.mrb[0].mxu0
        %v1407 = vadd.f32 0.0, %v1406
        %v1408 = vpop.f32.mrb[0].mxu0
        %v1409 = vpop.f32.mrb[0].mxu0
        %v1410 = vpop.f32.mrb[0].mxu0
        %1411 = vdwg.mxu0
        %v1412 = vpack.c.bf16 %v1407, %v1407
        %v1417 = vunpack.c.l.b16 %v1184
        %v1418 = vunpack.c.l.b16 %v1185
        %v1419 = vunpack.c.l.b16 %v1186
        %v1420 = vunpack.c.l.b16 %v1187
        %v1421 = vpack.c.b16 %v1418, %v1417
        %v1422 = vpack.c.b16 %v1420, %v1419
        %1423 = vrot.lane.b32.xlu0 %v1421, 120
        %v1424 = vpop.permute.xlu0 %1423
        %1425 = vrot.lane.b32.xlu0 %v1422, 120
        %v1426 = vpop.permute.xlu0 %1425
        %v1428 = vsel %vm1193, %v1412, 0
        %v1431 = vsel %vm1193, %v1424, 0
        %v1434 = vsel %vm1193, %v1426, 0
        %1436 = vmatprep.subr.bf16.mxu0 0
        %1437 = vmatpush1.bf16.xpose.msra.mxu0 %v1431
        %1438 = vmatprep.subr.bf16.mxu0 0
        %1439 = vmatpush1.bf16.xpose.msra.mxu0 %v1434
        %1440 = vmatprep.subr.bf16.mxu0 0
        %1441 = vmatpush1.bf16.xpose.msra.mxu0 0
        %1442 = vmatprep.subr.bf16.mxu0 0
        %1443 = vmatpush1.bf16.xpose.msra.mxu0 0
        %1444 = vmatprep.subr.bf16.mxu0 0
        %1445 = vmatpush1.bf16.xpose.msra.mxu0 0
        %1446 = vmatprep.subr.bf16.mxu0 0
        %1447 = vmatpush1.bf16.xpose.msra.mxu0 0
        %1448 = vmatprep.subr.bf16.mxu0 0
        %1449 = vmatpush1.bf16.xpose.msra.mxu0 0
        %1450 = vmatprep.subr.bf16.mxu0 0
        %1451 = vmatpush1.bf16.xpose.msra.mxu0 0
        %1452 = vmatprep.subr.bf16.mxu0 0
        %1453 = vmatpush1.bf16.xpose.msra.mxu0 0
        %1454 = vmatprep.subr.bf16.mxu0 0
        %1455 = vmatpush1.bf16.xpose.msra.mxu0 0
        %1456 = vmatprep.subr.bf16.mxu0 0
        %1457 = vmatpush1.bf16.xpose.msra.mxu0 0
        %1458 = vmatprep.subr.bf16.mxu0 0
        %1459 = vmatpush1.bf16.xpose.msra.mxu0 0
        %1460 = vmatprep.subr.bf16.mxu0 0
        %1461 = vmatpush1.bf16.xpose.msra.mxu0 0
        %1462 = vmatprep.subr.bf16.mxu0 0
        %1463 = vmatpush1.bf16.xpose.msra.mxu0 0
        %1464 = vmatprep.subr.bf16.mxu0 0
        %1465 = vmatpush1.bf16.xpose.msra.mxu0 0
        %1466 = vmatprep.subr.bf16.mxu0 0
        %1467 = vmatpush1.bf16.xpose.msra.mxu0 0
        %1468 = vmatprep.mubr.bf16.mxu0 0
        %1469 = vmatmul.mubr.bf16.gmra.mrb[0].mxu0 %v1428
        %v1470 = vpop.f32.mrb[0].mxu0
        %v1471 = vadd.f32 0.0, %v1470
        %v1472 = vpop.f32.mrb[0].mxu0
        %v1473 = vpop.f32.mrb[0].mxu0
        %v1474 = vpop.f32.mrb[0].mxu0
        %1475 = vdwg.mxu0
        %v1477 = vsel %vm1193, %v1301, 0
        %v1480 = vsel %vm1193, %v1421, 0
        %v1483 = vsel %vm1193, %v1422, 0
        %1485 = vmatprep.subr.bf16.mxu0 0
        %1486 = vmatpush1.bf16.xpose.msra.mxu0 %v1480
        %1487 = vmatprep.subr.bf16.mxu0 0
        %1488 = vmatpush1.bf16.xpose.msra.mxu0 %v1483
        %1489 = vmatprep.subr.bf16.mxu0 0
        %1490 = vmatpush1.bf16.xpose.msra.mxu0 0
        %1491 = vmatprep.subr.bf16.mxu0 0
        %1492 = vmatpush1.bf16.xpose.msra.mxu0 0
        %1493 = vmatprep.subr.bf16.mxu0 0
        %1494 = vmatpush1.bf16.xpose.msra.mxu0 0
        %1495 = vmatprep.subr.bf16.mxu0 0
        %1496 = vmatpush1.bf16.xpose.msra.mxu0 0
        %1497 = vmatprep.subr.bf16.mxu0 0
        %1498 = vmatpush1.bf16.xpose.msra.mxu0 0
        %1499 = vmatprep.subr.bf16.mxu0 0
        %1500 = vmatpush1.bf16.xpose.msra.mxu0 0
        %1501 = vmatprep.subr.bf16.mxu0 0
        %1502 = vmatpush1.bf16.xpose.msra.mxu0 0
        %1503 = vmatprep.subr.bf16.mxu0 0
        %1504 = vmatpush1.bf16.xpose.msra.mxu0 0
        %1505 = vmatprep.subr.bf16.mxu0 0
        %1506 = vmatpush1.bf16.xpose.msra.mxu0 0
        %1507 = vmatprep.subr.bf16.mxu0 0
        %1508 = vmatpush1.bf16.xpose.msra.mxu0 0
        %1509 = vmatprep.subr.bf16.mxu0 0
        %1510 = vmatpush1.bf16.xpose.msra.mxu0 0
        %1511 = vmatprep.subr.bf16.mxu0 0
        %1512 = vmatpush1.bf16.xpose.msra.mxu0 0
        %1513 = vmatprep.subr.bf16.mxu0 0
        %1514 = vmatpush1.bf16.xpose.msra.mxu0 0
        %1515 = vmatprep.subr.bf16.mxu0 0
        %1516 = vmatpush1.bf16.xpose.msra.mxu0 0
        %1517 = vmatprep.mubr.bf16.mxu0 0
        %1518 = vmatmul.mubr.bf16.gmra.mrb[0].mxu0 %v1477
        %v1519 = vpop.f32.mrb[0].mxu0
        %v1520 = vadd.f32 %v1471, %v1519
        %v1521 = vpop.f32.mrb[0].mxu0
        %v1522 = vpop.f32.mrb[0].mxu0
        %v1523 = vpop.f32.mrb[0].mxu0
        %1524 = vdwg.mxu0
        %1525 = vrot.lane.b32.xlu0 %v1189, 112
        %v1526 = vpop.permute.xlu0 %1525
        %1527 = vrot.lane.b32.xlu0 %v1189, 80
        %v1528 = vpop.permute.xlu0 %1527
        %v1530 = vsel %vm1193, %v1526, 0
        %v1533 = vsel %vm1193, %v1528, 0
        %1535 = vmatprep.subr.bf16.mxu0 0
        %1536 = vmatpush1.bf16.xpose.msra.mxu0 %v1533
        %1537 = vmatprep.subr.bf16.mxu0 0
        %1538 = vmatpush1.bf16.xpose.msra.mxu0 0
        %1539 = vmatprep.subr.bf16.mxu0 0
        %1540 = vmatpush1.bf16.xpose.msra.mxu0 0
        %1541 = vmatprep.subr.bf16.mxu0 0
        %1542 = vmatpush1.bf16.xpose.msra.mxu0 0
        %1543 = vmatprep.subr.bf16.mxu0 0
        %1544 = vmatpush1.bf16.xpose.msra.mxu0 0
        %1545 = vmatprep.subr.bf16.mxu0 0
        %1546 = vmatpush1.bf16.xpose.msra.mxu0 0
        %1547 = vmatprep.subr.bf16.mxu0 0
        %1548 = vmatpush1.bf16.xpose.msra.mxu0 0
        %1549 = vmatprep.subr.bf16.mxu0 0
        %1550 = vmatpush1.bf16.xpose.msra.mxu0 0
        %1551 = vmatprep.subr.bf16.mxu0 0
        %1552 = vmatpush1.bf16.xpose.msra.mxu0 0
        %1553 = vmatprep.subr.bf16.mxu0 0
        %1554 = vmatpush1.bf16.xpose.msra.mxu0 0
        %1555 = vmatprep.subr.bf16.mxu0 0
        %1556 = vmatpush1.bf16.xpose.msra.mxu0 0
        %1557 = vmatprep.subr.bf16.mxu0 0
        %1558 = vmatpush1.bf16.xpose.msra.mxu0 0
        %1559 = vmatprep.subr.bf16.mxu0 0
        %1560 = vmatpush1.bf16.xpose.msra.mxu0 0
        %1561 = vmatprep.subr.bf16.mxu0 0
        %1562 = vmatpush1.bf16.xpose.msra.mxu0 0
        %1563 = vmatprep.subr.bf16.mxu0 0
        %1564 = vmatpush1.bf16.xpose.msra.mxu0 0
        %1565 = vmatprep.subr.bf16.mxu0 0
        %1566 = vmatpush1.bf16.xpose.msra.mxu0 0
        %1567 = vmatprep.mubr.bf16.mxu0 0
        %1568 = vmatmul.mubr.bf16.gmra.mrb[0].mxu0 %v1530
        %v1569 = vpop.f32.mrb[0].mxu0
        %v1570 = vadd.f32 0.0, %v1569
        %v1571 = vpop.f32.mrb[0].mxu0
        %v1572 = vpop.f32.mrb[0].mxu0
        %v1573 = vpop.f32.mrb[0].mxu0
        %1574 = vdwg.mxu0
        %v1575 = vsel %vm1193, %v1570, -inf
        %1576 = vmax.xlane.f32.xlu0 %v1575
        %v1577 = vpop.xlane.xlu0 %1576
        %v1578 = vsub.f32 %v1570, %v1577
        %v1579 = vmul.f32 %v1578, 1.442695
        %v1580 = vpow.pop %v1579
        %v1581 = vsel %vm1193, %v1580, 0.0
        %1582 = vadd.xlane.f32.xlu0 %v1581
        %v1583 = vpop.xlane.xlu0 %1582
        %v1584 = vrcp.pop %v1583
        %v1585 = vmul.f32 %v1580, %v1584
        %v1586 = vpack.c.bf16 %v1585, %v1585
        %1587 = vrot.lane.b32.xlu0 %v1189, 48
        %v1588 = vpop.permute.xlu0 %1587
        %v1590 = vsel %vm1193, %v1586, 0
        %v1593 = vsel %vm1257, %v1588, 0
        %1595 = vmatprep.subr.bf16.mxu0 0
        %1596 = vmatpush1.bf16.msra.mxu0 %v1593
        %1597 = vmatprep.subr.bf16.mxu0 0
        %1598 = vmatpush1.bf16.msra.mxu0 0
        %1599 = vmatprep.subr.bf16.mxu0 0
        %1600 = vmatpush1.bf16.msra.mxu0 0
        %1601 = vmatprep.subr.bf16.mxu0 0
        %1602 = vmatpush1.bf16.msra.mxu0 0
        %1603 = vmatprep.subr.bf16.mxu0 0
        %1604 = vmatpush1.bf16.msra.mxu0 0
        %1605 = vmatprep.subr.bf16.mxu0 0
        %1606 = vmatpush1.bf16.msra.mxu0 0
        %1607 = vmatprep.subr.bf16.mxu0 0
        %1608 = vmatpush1.bf16.msra.mxu0 0
        %1609 = vmatprep.subr.bf16.mxu0 0
        %1610 = vmatpush1.bf16.msra.mxu0 0
        %1611 = vmatprep.subr.bf16.mxu0 0
        %1612 = vmatpush1.bf16.msra.mxu0 0
        %1613 = vmatprep.subr.bf16.mxu0 0
        %1614 = vmatpush1.bf16.msra.mxu0 0
        %1615 = vmatprep.subr.bf16.mxu0 0
        %1616 = vmatpush1.bf16.msra.mxu0 0
        %1617 = vmatprep.subr.bf16.mxu0 0
        %1618 = vmatpush1.bf16.msra.mxu0 0
        %1619 = vmatprep.subr.bf16.mxu0 0
        %1620 = vmatpush1.bf16.msra.mxu0 0
        %1621 = vmatprep.subr.bf16.mxu0 0
        %1622 = vmatpush1.bf16.msra.mxu0 0
        %1623 = vmatprep.subr.bf16.mxu0 0
        %1624 = vmatpush1.bf16.msra.mxu0 0
        %1625 = vmatprep.subr.bf16.mxu0 0
        %1626 = vmatpush1.bf16.msra.mxu0 0
        %1627 = vmatprep.mubr.bf16.mxu0 0
        %1628 = vmatmul.mubr.bf16.gmra.mrb[0].mxu0 %v1590
        %v1629 = vpop.f32.mrb[0].mxu0
        %v1630 = vadd.f32 0.0, %v1629
        %v1631 = vpop.f32.mrb[0].mxu0
        %v1632 = vpop.f32.mrb[0].mxu0
        %v1633 = vpop.f32.mrb[0].mxu0
        %1634 = vdwg.mxu0
        %v1635 = vpack.c.bf16 %v1630, %v1630
        %1636 = vrot.lane.b32.xlu0 %v1421, 112
        %v1637 = vpop.permute.xlu0 %1636
        %1638 = vrot.lane.b32.xlu0 %v1422, 112
        %v1639 = vpop.permute.xlu0 %1638
        %v1641 = vsel %vm1193, %v1635, 0
        %v1644 = vsel %vm1193, %v1637, 0
        %v1647 = vsel %vm1193, %v1639, 0
        %1649 = vmatprep.subr.bf16.mxu0 0
        %1650 = vmatpush1.bf16.xpose.msra.mxu0 %v1644
        %1651 = vmatprep.subr.bf16.mxu0 0
        %1652 = vmatpush1.bf16.xpose.msra.mxu0 %v1647
        %1653 = vmatprep.subr.bf16.mxu0 0
        %1654 = vmatpush1.bf16.xpose.msra.mxu0 0
        %1655 = vmatprep.subr.bf16.mxu0 0
        %1656 = vmatpush1.bf16.xpose.msra.mxu0 0
        %1657 = vmatprep.subr.bf16.mxu0 0
        %1658 = vmatpush1.bf16.xpose.msra.mxu0 0
        %1659 = vmatprep.subr.bf16.mxu0 0
        %1660 = vmatpush1.bf16.xpose.msra.mxu0 0
        %1661 = vmatprep.subr.bf16.mxu0 0
        %1662 = vmatpush1.bf16.xpose.msra.mxu0 0
        %1663 = vmatprep.subr.bf16.mxu0 0
        %1664 = vmatpush1.bf16.xpose.msra.mxu0 0
        %1665 = vmatprep.subr.bf16.mxu0 0
        %1666 = vmatpush1.bf16.xpose.msra.mxu0 0
        %1667 = vmatprep.subr.bf16.mxu0 0
        %1668 = vmatpush1.bf16.xpose.msra.mxu0 0
        %1669 = vmatprep.subr.bf16.mxu0 0
        %1670 = vmatpush1.bf16.xpose.msra.mxu0 0
        %1671 = vmatprep.subr.bf16.mxu0 0
        %1672 = vmatpush1.bf16.xpose.msra.mxu0 0
        %1673 = vmatprep.subr.bf16.mxu0 0
        %1674 = vmatpush1.bf16.xpose.msra.mxu0 0
        %1675 = vmatprep.subr.bf16.mxu0 0
        %1676 = vmatpush1.bf16.xpose.msra.mxu0 0
        %1677 = vmatprep.subr.bf16.mxu0 0
        %1678 = vmatpush1.bf16.xpose.msra.mxu0 0
        %1679 = vmatprep.subr.bf16.mxu0 0
        %1680 = vmatpush1.bf16.xpose.msra.mxu0 0
        %1681 = vmatprep.mubr.bf16.mxu0 0
        %1682 = vmatmul.mubr.bf16.gmra.mrb[0].mxu0 %v1641
        %v1683 = vpop.f32.mrb[0].mxu0
        %v1684 = vadd.f32 0.0, %v1683
        %v1685 = vpop.f32.mrb[0].mxu0
        %v1686 = vpop.f32.mrb[0].mxu0
        %v1687 = vpop.f32.mrb[0].mxu0
        %1688 = vdwg.mxu0
        %v1689 = vadd.f32 %v1520, %v1684
        %1690 = vrot.lane.b32.xlu0 %v1189, 104
        %v1691 = vpop.permute.xlu0 %1690
        %1692 = vrot.lane.b32.xlu0 %v1189, 72
        %v1693 = vpop.permute.xlu0 %1692
        %v1695 = vsel %vm1193, %v1691, 0
        %v1698 = vsel %vm1193, %v1693, 0
        %1700 = vmatprep.subr.bf16.mxu0 0
        %1701 = vmatpush1.bf16.xpose.msra.mxu0 %v1698
        %1702 = vmatprep.subr.bf16.mxu0 0
        %1703 = vmatpush1.bf16.xpose.msra.mxu0 0
        %1704 = vmatprep.subr.bf16.mxu0 0
        %1705 = vmatpush1.bf16.xpose.msra.mxu0 0
        %1706 = vmatprep.subr.bf16.mxu0 0
        %1707 = vmatpush1.bf16.xpose.msra.mxu0 0
        %1708 = vmatprep.subr.bf16.mxu0 0
        %1709 = vmatpush1.bf16.xpose.msra.mxu0 0
        %1710 = vmatprep.subr.bf16.mxu0 0
        %1711 = vmatpush1.bf16.xpose.msra.mxu0 0
        %1712 = vmatprep.subr.bf16.mxu0 0
        %1713 = vmatpush1.bf16.xpose.msra.mxu0 0
        %1714 = vmatprep.subr.bf16.mxu0 0
        %1715 = vmatpush1.bf16.xpose.msra.mxu0 0
        %1716 = vmatprep.subr.bf16.mxu0 0
        %1717 = vmatpush1.bf16.xpose.msra.mxu0 0
        %1718 = vmatprep.subr.bf16.mxu0 0
        %1719 = vmatpush1.bf16.xpose.msra.mxu0 0
        %1720 = vmatprep.subr.bf16.mxu0 0
        %1721 = vmatpush1.bf16.xpose.msra.mxu0 0
        %1722 = vmatprep.subr.bf16.mxu0 0
        %1723 = vmatpush1.bf16.xpose.msra.mxu0 0
        %1724 = vmatprep.subr.bf16.mxu0 0
        %1725 = vmatpush1.bf16.xpose.msra.mxu0 0
        %1726 = vmatprep.subr.bf16.mxu0 0
        %1727 = vmatpush1.bf16.xpose.msra.mxu0 0
        %1728 = vmatprep.subr.bf16.mxu0 0
        %1729 = vmatpush1.bf16.xpose.msra.mxu0 0
        %1730 = vmatprep.subr.bf16.mxu0 0
        %1731 = vmatpush1.bf16.xpose.msra.mxu0 0
        %1732 = vmatprep.mubr.bf16.mxu0 0
        %1733 = vmatmul.mubr.bf16.gmra.mrb[0].mxu0 %v1695
        %v1734 = vpop.f32.mrb[0].mxu0
        %v1735 = vadd.f32 0.0, %v1734
        %v1736 = vpop.f32.mrb[0].mxu0
        %v1737 = vpop.f32.mrb[0].mxu0
        %v1738 = vpop.f32.mrb[0].mxu0
        %1739 = vdwg.mxu0
        %v1740 = vsel %vm1193, %v1735, -inf
        %1741 = vmax.xlane.f32.xlu0 %v1740
        %v1742 = vpop.xlane.xlu0 %1741
        %v1743 = vsub.f32 %v1735, %v1742
        %v1744 = vmul.f32 %v1743, 1.442695
        %v1745 = vpow.pop %v1744
        %v1746 = vsel %vm1193, %v1745, 0.0
        %1747 = vadd.xlane.f32.xlu0 %v1746
        %v1748 = vpop.xlane.xlu0 %1747
        %v1749 = vrcp.pop %v1748
        %v1750 = vmul.f32 %v1745, %v1749
        %v1751 = vpack.c.bf16 %v1750, %v1750
        %1752 = vrot.lane.b32.xlu0 %v1189, 40
        %v1753 = vpop.permute.xlu0 %1752
        %v1755 = vsel %vm1193, %v1751, 0
        %v1758 = vsel %vm1257, %v1753, 0
        %1760 = vmatprep.subr.bf16.mxu0 0
        %1761 = vmatpush1.bf16.msra.mxu0 %v1758
        %1762 = vmatprep.subr.bf16.mxu0 0
        %1763 = vmatpush1.bf16.msra.mxu0 0
        %1764 = vmatprep.subr.bf16.mxu0 0
        %1765 = vmatpush1.bf16.msra.mxu0 0
        %1766 = vmatprep.subr.bf16.mxu0 0
        %1767 = vmatpush1.bf16.msra.mxu0 0
        %1768 = vmatprep.subr.bf16.mxu0 0
        %1769 = vmatpush1.bf16.msra.mxu0 0
        %1770 = vmatprep.subr.bf16.mxu0 0
        %1771 = vmatpush1.bf16.msra.mxu0 0
        %1772 = vmatprep.subr.bf16.mxu0 0
        %1773 = vmatpush1.bf16.msra.mxu0 0
        %1774 = vmatprep.subr.bf16.mxu0 0
        %1775 = vmatpush1.bf16.msra.mxu0 0
        %1776 = vmatprep.subr.bf16.mxu0 0
        %1777 = vmatpush1.bf16.msra.mxu0 0
        %1778 = vmatprep.subr.bf16.mxu0 0
        %1779 = vmatpush1.bf16.msra.mxu0 0
        %1780 = vmatprep.subr.bf16.mxu0 0
        %1781 = vmatpush1.bf16.msra.mxu0 0
        %1782 = vmatprep.subr.bf16.mxu0 0
        %1783 = vmatpush1.bf16.msra.mxu0 0
        %1784 = vmatprep.subr.bf16.mxu0 0
        %1785 = vmatpush1.bf16.msra.mxu0 0
        %1786 = vmatprep.subr.bf16.mxu0 0
        %1787 = vmatpush1.bf16.msra.mxu0 0
        %1788 = vmatprep.subr.bf16.mxu0 0
        %1789 = vmatpush1.bf16.msra.mxu0 0
        %1790 = vmatprep.subr.bf16.mxu0 0
        %1791 = vmatpush1.bf16.msra.mxu0 0
        %1792 = vmatprep.mubr.bf16.mxu0 0
        %1793 = vmatmul.mubr.bf16.gmra.mrb[0].mxu0 %v1755
        %v1794 = vpop.f32.mrb[0].mxu0
        %v1795 = vadd.f32 0.0, %v1794
        %v1796 = vpop.f32.mrb[0].mxu0
        %v1797 = vpop.f32.mrb[0].mxu0
        %v1798 = vpop.f32.mrb[0].mxu0
        %1799 = vdwg.mxu0
        %v1800 = vpack.c.bf16 %v1795, %v1795
        %1801 = vrot.lane.b32.xlu0 %v1421, 104
        %v1802 = vpop.permute.xlu0 %1801
        %1803 = vrot.lane.b32.xlu0 %v1422, 104
        %v1804 = vpop.permute.xlu0 %1803
        %v1806 = vsel %vm1193, %v1800, 0
        %v1809 = vsel %vm1193, %v1802, 0
        %v1812 = vsel %vm1193, %v1804, 0
        %1814 = vmatprep.subr.bf16.mxu0 0
        %1815 = vmatpush1.bf16.xpose.msra.mxu0 %v1809
        %1816 = vmatprep.subr.bf16.mxu0 0
        %1817 = vmatpush1.bf16.xpose.msra.mxu0 %v1812
        %1818 = vmatprep.subr.bf16.mxu0 0
        %1819 = vmatpush1.bf16.xpose.msra.mxu0 0
        %1820 = vmatprep.subr.bf16.mxu0 0
        %1821 = vmatpush1.bf16.xpose.msra.mxu0 0
        %1822 = vmatprep.subr.bf16.mxu0 0
        %1823 = vmatpush1.bf16.xpose.msra.mxu0 0
        %1824 = vmatprep.subr.bf16.mxu0 0
        %1825 = vmatpush1.bf16.xpose.msra.mxu0 0
        %1826 = vmatprep.subr.bf16.mxu0 0
        %1827 = vmatpush1.bf16.xpose.msra.mxu0 0
        %1828 = vmatprep.subr.bf16.mxu0 0
        %1829 = vmatpush1.bf16.xpose.msra.mxu0 0
        %1830 = vmatprep.subr.bf16.mxu0 0
        %1831 = vmatpush1.bf16.xpose.msra.mxu0 0
        %1832 = vmatprep.subr.bf16.mxu0 0
        %1833 = vmatpush1.bf16.xpose.msra.mxu0 0
        %1834 = vmatprep.subr.bf16.mxu0 0
        %1835 = vmatpush1.bf16.xpose.msra.mxu0 0
        %1836 = vmatprep.subr.bf16.mxu0 0
        %1837 = vmatpush1.bf16.xpose.msra.mxu0 0
        %1838 = vmatprep.subr.bf16.mxu0 0
        %1839 = vmatpush1.bf16.xpose.msra.mxu0 0
        %1840 = vmatprep.subr.bf16.mxu0 0
        %1841 = vmatpush1.bf16.xpose.msra.mxu0 0
        %1842 = vmatprep.subr.bf16.mxu0 0
        %1843 = vmatpush1.bf16.xpose.msra.mxu0 0
        %1844 = vmatprep.subr.bf16.mxu0 0
        %1845 = vmatpush1.bf16.xpose.msra.mxu0 0
        %1846 = vmatprep.mubr.bf16.mxu0 0
        %1847 = vmatmul.mubr.bf16.gmra.mrb[0].mxu0 %v1806
        %v1848 = vpop.f32.mrb[0].mxu0
        %v1849 = vadd.f32 0.0, %v1848
        %v1850 = vpop.f32.mrb[0].mxu0
        %v1851 = vpop.f32.mrb[0].mxu0
        %v1852 = vpop.f32.mrb[0].mxu0
        %1853 = vdwg.mxu0
        %v1854 = vadd.f32 %v1689, %v1849
        %v1856 = vlaneseq
        %v1857 = vshrl.u32 %v1856, 7
        %v1858 = vsub.s32 0, %v1857
        %v1859 = vrot.slane %v1188, %v1858
        %v1861 = vadd.f32 %v1854, %v1859
        %v1862 = vadd.f32 %v1041, %v1861
        %v1863 = vld [vmem:[%s983] sm:$0x1]
        %v1864 = vld [vmem:[%s986] sm:$0x1]
        %v1865 = vsel %vm1044, %v1862, 0.0
        %1866 = vadd.xlane.f32.xlu0 %v1865
        %v1867 = vpop.xlane.xlu0 %1866
        %v1868 = vmul.f32 %v1867, %v1048
        %v1869 = vsub.f32 %v1862, %v1868
        %v1870 = vmul.f32 %v1869, %v1869
        %v1871 = vsel %vm1044, %v1870, 0.0
        %1872 = vadd.xlane.f32.xlu0 %v1871
        %v1873 = vpop.xlane.xlu0 %1872
        %v1874 = vmul.f32 %v1873, %v1048
        %v1875 = vadd.f32 %v1874, 1e-05
        %v1876 = vrsqrt.pop %v1875
        %v1877 = vmul.f32 %v1869, %v1876
        %v1879 = vlaneseq
        %v1880 = vshrl.u32 %v1879, 7
        %v1881 = vsub.s32 0, %v1880
        %v1882 = vrot.slane %v1863, %v1881
        %v1884 = vmul.f32 %v1877, %v1882
        %v1886 = vlaneseq
        %v1887 = vshrl.u32 %v1886, 7
        %v1888 = vsub.s32 0, %v1887
        %v1889 = vrot.slane %v1864, %v1888
        %v1891 = vadd.f32 %v1884, %v1889
        %v1892 = vld [vmem:[%s991] sm:$0xf]
        %v1893 = vld [vmem:[%s991 + $0x4] sm:$0xf]
        %v1894 = vld [vmem:[%s991 + $0x8] sm:$0xf]
        %v1895 = vld [vmem:[%s991 + $0xc] sm:$0xf]
        %v1896 = vld [vmem:[%s994] sm:$0x1]
        %v1897 = vpack.c.bf16 %v1891, %v1891
        %v1899 = vlaneseq
        %v1900 = vshrl.u32 %v1899, 7
        %v1901 = vsub.s32 0, %v1900
        %v1902 = vrot.slane %v1896, %v1901
        %v1908 = vunpack.c.l.b16 %v1892
        %v1909 = vunpack.c.l.b16 %v1893
        %v1910 = vunpack.c.l.b16 %v1894
        %v1911 = vunpack.c.l.b16 %v1895
        %v1912 = vpack.c.b16 %v1909, %v1908
        %v1913 = vpack.c.b16 %v1911, %v1910
        %v1915 = vsel %vm1044, %v1897, 0
        %v1918 = vsel %vm1044, %v1912, 0
        %v1921 = vsel %vm1044, %v1913, 0
        %1923 = vmatprep.subr.bf16.mxu0 0
        %1924 = vmatpush1.bf16.xpose.msra.mxu0 %v1918
        %1925 = vmatprep.subr.bf16.mxu0 0
        %1926 = vmatpush1.bf16.xpose.msra.mxu0 %v1921
        %1927 = vmatprep.subr.bf16.mxu0 0
        %1928 = vmatpush1.bf16.xpose.msra.mxu0 0
        %1929 = vmatprep.subr.bf16.mxu0 0
        %1930 = vmatpush1.bf16.xpose.msra.mxu0 0
        %1931 = vmatprep.subr.bf16.mxu0 0
        %1932 = vmatpush1.bf16.xpose.msra.mxu0 0
        %1933 = vmatprep.subr.bf16.mxu0 0
        %1934 = vmatpush1.bf16.xpose.msra.mxu0 0
        %1935 = vmatprep.subr.bf16.mxu0 0
        %1936 = vmatpush1.bf16.xpose.msra.mxu0 0
        %1937 = vmatprep.subr.bf16.mxu0 0
        %1938 = vmatpush1.bf16.xpose.msra.mxu0 0
        %1939 = vmatprep.subr.bf16.mxu0 0
        %1940 = vmatpush1.bf16.xpose.msra.mxu0 0
        %1941 = vmatprep.subr.bf16.mxu0 0
        %1942 = vmatpush1.bf16.xpose.msra.mxu0 0
        %1943 = vmatprep.subr.bf16.mxu0 0
        %1944 = vmatpush1.bf16.xpose.msra.mxu0 0
        %1945 = vmatprep.subr.bf16.mxu0 0
        %1946 = vmatpush1.bf16.xpose.msra.mxu0 0
        %1947 = vmatprep.subr.bf16.mxu0 0
        %1948 = vmatpush1.bf16.xpose.msra.mxu0 0
        %1949 = vmatprep.subr.bf16.mxu0 0
        %1950 = vmatpush1.bf16.xpose.msra.mxu0 0
        %1951 = vmatprep.subr.bf16.mxu0 0
        %1952 = vmatpush1.bf16.xpose.msra.mxu0 0
        %1953 = vmatprep.subr.bf16.mxu0 0
        %1954 = vmatpush1.bf16.xpose.msra.mxu0 0
        %1955 = vmatprep.mubr.bf16.mxu0 0
        %1956 = vmatmul.mubr.bf16.gmra.mrb[0].mxu0 %v1915
        %v1957 = vpop.f32.mrb[0].mxu0
        %v1958 = vadd.f32 %v1902, %v1957
        %v1959 = vpop.f32.mrb[0].mxu0
        %v1960 = vpop.f32.mrb[0].mxu0
        %v1961 = vpop.f32.mrb[0].mxu0
        %1962 = vdwg.mxu0
        %v1963 = vld [vmem:[%s958] sm:$0xff]
        %v1964 = vld [vmem:[%s958 + $0x8] sm:$0xff]
        %v1965 = vld [vmem:[%s999] sm:$0xf]
        %v1966 = vld [vmem:[%s999 + $0x4] sm:$0xf]
        %v1967 = vld [vmem:[%s999 + $0x8] sm:$0xf]
        %v1968 = vld [vmem:[%s999 + $0xc] sm:$0xf]
        %v1969 = vld [vmem:[%s999 + $0x10] sm:$0xf]
        %v1970 = vld [vmem:[%s999 + $0x14] sm:$0xf]
        %v1971 = vld [vmem:[%s999 + $0x18] sm:$0xf]
        %v1972 = vld [vmem:[%s999 + $0x1c] sm:$0xf]
        %v1973 = vld [vmem:[%s1002] sm:$0x1]
        %v1974 = vpack.c.bf16 %v1964, %v1963
        %v1976 = vlaneseq
        %v1977 = vshrl.u32 %v1976, 7
        %v1978 = vsub.s32 0, %v1977
        %v1979 = vrot.slane %v1973, %v1978
        %v1989 = vunpack.c.l.b16 %v1965
        %v1990 = vunpack.c.l.b16 %v1966
        %v1991 = vunpack.c.l.b16 %v1967
        %v1992 = vunpack.c.l.b16 %v1968
        %v1993 = vunpack.c.l.b16 %v1969
        %v1994 = vunpack.c.l.b16 %v1970
        %v1995 = vunpack.c.l.b16 %v1971
        %v1996 = vunpack.c.l.b16 %v1972
        %v1997 = vpack.c.b16 %v1990, %v1989
        %v1998 = vpack.c.b16 %v1992, %v1991
        %v1999 = vpack.c.b16 %v1994, %v1993
        %v2000 = vpack.c.b16 %v1996, %v1995
        %v2002 = vsel %vm1044, %v1974, 0
        %v2005 = vsel %vm1044, %v1997, 0
        %v2008 = vsel %vm1044, %v1998, 0
        %v2011 = vsel %vm1044, %v1999, 0
        %v2014 = vsel %vm1044, %v2000, 0
        %2016 = vmatprep.subr.bf16.mxu0 0
        %2017 = vmatpush1.bf16.xpose.msra.mxu0 %v2005
        %2018 = vmatprep.subr.bf16.mxu0 0
        %2019 = vmatpush1.bf16.xpose.msra.mxu0 %v2008
        %2020 = vmatprep.subr.bf16.mxu0 0
        %2021 = vmatpush1.bf16.xpose.msra.mxu0 %v2011
        %2022 = vmatprep.subr.bf16.mxu0 0
        %2023 = vmatpush1.bf16.xpose.msra.mxu0 %v2014
        %2024 = vmatprep.subr.bf16.mxu0 0
        %2025 = vmatpush1.bf16.xpose.msra.mxu0 0
        %2026 = vmatprep.subr.bf16.mxu0 0
        %2027 = vmatpush1.bf16.xpose.msra.mxu0 0
        %2028 = vmatprep.subr.bf16.mxu0 0
        %2029 = vmatpush1.bf16.xpose.msra.mxu0 0
        %2030 = vmatprep.subr.bf16.mxu0 0
        %2031 = vmatpush1.bf16.xpose.msra.mxu0 0
        %2032 = vmatprep.subr.bf16.mxu0 0
        %2033 = vmatpush1.bf16.xpose.msra.mxu0 0
        %2034 = vmatprep.subr.bf16.mxu0 0
        %2035 = vmatpush1.bf16.xpose.msra.mxu0 0
        %2036 = vmatprep.subr.bf16.mxu0 0
        %2037 = vmatpush1.bf16.xpose.msra.mxu0 0
        %2038 = vmatprep.subr.bf16.mxu0 0
        %2039 = vmatpush1.bf16.xpose.msra.mxu0 0
        %2040 = vmatprep.subr.bf16.mxu0 0
        %2041 = vmatpush1.bf16.xpose.msra.mxu0 0
        %2042 = vmatprep.subr.bf16.mxu0 0
        %2043 = vmatpush1.bf16.xpose.msra.mxu0 0
        %2044 = vmatprep.subr.bf16.mxu0 0
        %2045 = vmatpush1.bf16.xpose.msra.mxu0 0
        %2046 = vmatprep.subr.bf16.mxu0 0
        %2047 = vmatpush1.bf16.xpose.msra.mxu0 0
        %2048 = vmatprep.mubr.bf16.mxu0 0
        %2049 = vmatmul.mubr.bf16.gmra.mrb[0].mxu0 %v2002
        %v2050 = vpop.f32.mrb[0].mxu0
        %v2051 = vadd.f32 %v1979, %v2050
        %v2052 = vpop.f32.mrb[0].mxu0
        %v2053 = vpop.f32.mrb[0].mxu0
        %v2054 = vadd.f32 %v1979, %v2053
        %v2055 = vpop.f32.mrb[0].mxu0
        %2056 = vdwg.mxu0
        %v2057 = vld [vmem:[%s1007] sm:$0xf]
        %v2058 = vld [vmem:[%s1007 + $0x4] sm:$0xf]
        %v2059 = vld [vmem:[%s1007 + $0x8] sm:$0xf]
        %v2060 = vld [vmem:[%s1007 + $0xc] sm:$0xf]
        %v2061 = vld [vmem:[%s1010] sm:$0x1]
        %v2062 = vpack.c.bf16 %v1958, %v1958
        %v2063 = vpack.c.bf16 %v2054, %v2051
        %v2065 = vsel %vm1193, %v2062, 0
        %v2068 = vsel %vm1193, %v2063, 0
        %2070 = vmatprep.subr.bf16.mxu0 0
        %2071 = vmatpush1.bf16.xpose.msra.mxu0 %v2068
        %2072 = vmatprep.subr.bf16.mxu0 0
        %2073 = vmatpush1.bf16.xpose.msra.mxu0 0
        %2074 = vmatprep.subr.bf16.mxu0 0
        %2075 = vmatpush1.bf16.xpose.msra.mxu0 0
        %2076 = vmatprep.subr.bf16.mxu0 0
        %2077 = vmatpush1.bf16.xpose.msra.mxu0 0
        %2078 = vmatprep.subr.bf16.mxu0 0
        %2079 = vmatpush1.bf16.xpose.msra.mxu0 0
        %2080 = vmatprep.subr.bf16.mxu0 0
        %2081 = vmatpush1.bf16.xpose.msra.mxu0 0
        %2082 = vmatprep.subr.bf16.mxu0 0
        %2083 = vmatpush1.bf16.xpose.msra.mxu0 0
        %2084 = vmatprep.subr.bf16.mxu0 0
        %2085 = vmatpush1.bf16.xpose.msra.mxu0 0
        %2086 = vmatprep.subr.bf16.mxu0 0
        %2087 = vmatpush1.bf16.xpose.msra.mxu0 0
        %2088 = vmatprep.subr.bf16.mxu0 0
        %2089 = vmatpush1.bf16.xpose.msra.mxu0 0
        %2090 = vmatprep.subr.bf16.mxu0 0
        %2091 = vmatpush1.bf16.xpose.msra.mxu0 0
        %2092 = vmatprep.subr.bf16.mxu0 0
        %2093 = vmatpush1.bf16.xpose.msra.mxu0 0
        %2094 = vmatprep.subr.bf16.mxu0 0
        %2095 = vmatpush1.bf16.xpose.msra.mxu0 0
        %2096 = vmatprep.subr.bf16.mxu0 0
        %2097 = vmatpush1.bf16.xpose.msra.mxu0 0
        %2098 = vmatprep.subr.bf16.mxu0 0
        %2099 = vmatpush1.bf16.xpose.msra.mxu0 0
        %2100 = vmatprep.subr.bf16.mxu0 0
        %2101 = vmatpush1.bf16.xpose.msra.mxu0 0
        %2102 = vmatprep.mubr.bf16.mxu0 0
        %2103 = vmatmul.mubr.bf16.gmra.mrb[0].mxu0 %v2065
        %v2104 = vpop.f32.mrb[0].mxu0
        %v2105 = vadd.f32 0.0, %v2104
        %v2106 = vpop.f32.mrb[0].mxu0
        %v2107 = vpop.f32.mrb[0].mxu0
        %v2108 = vpop.f32.mrb[0].mxu0
        %2109 = vdwg.mxu0
        %vm2110 = vcmask 130048
        %v2111 = vsel %vm2110, %v2105, -inf
        %2112 = vmax.xlane.f32.xlu0 %v2111
        %v2113 = vpop.xlane.xlu0 %2112
        %v2114 = vsub.f32 %v2105, %v2113
        %v2115 = vmul.f32 %v2114, 1.442695
        %v2116 = vpow.pop %v2115
        %v2117 = vsel %vm2110, %v2116, 0.0
        %2118 = vadd.xlane.f32.xlu0 %v2117
        %v2119 = vpop.xlane.xlu0 %2118
        %v2120 = vrcp.pop %v2119
        %v2121 = vmul.f32 %v2116, %v2120
        %v2122 = vpack.c.bf16 %v2121, %v2121
        %2124 = vrot.lane.b32.xlu0 %v2063, 96
        %v2125 = vpop.permute.xlu0 %2124
        %v2128 = vsel %vm2110, %v2122, 0
        %2130 = vmatprep.subr.bf16.mxu0 0
        %2131 = vmatpush1.bf16.msra.mxu0 %v2125
        %2132 = vmatprep.subr.bf16.mxu0 0
        %2133 = vmatpush1.bf16.msra.mxu0 0
        %2134 = vmatprep.subr.bf16.mxu0 0
        %2135 = vmatpush1.bf16.msra.mxu0 0
        %2136 = vmatprep.subr.bf16.mxu0 0
        %2137 = vmatpush1.bf16.msra.mxu0 0
        %2138 = vmatprep.subr.bf16.mxu0 0
        %2139 = vmatpush1.bf16.msra.mxu0 0
        %2140 = vmatprep.subr.bf16.mxu0 0
        %2141 = vmatpush1.bf16.msra.mxu0 0
        %2142 = vmatprep.subr.bf16.mxu0 0
        %2143 = vmatpush1.bf16.msra.mxu0 0
        %2144 = vmatprep.subr.bf16.mxu0 0
        %2145 = vmatpush1.bf16.msra.mxu0 0
        %2146 = vmatprep.subr.bf16.mxu0 0
        %2147 = vmatpush1.bf16.msra.mxu0 0
        %2148 = vmatprep.subr.bf16.mxu0 0
        %2149 = vmatpush1.bf16.msra.mxu0 0
        %2150 = vmatprep.subr.bf16.mxu0 0
        %2151 = vmatpush1.bf16.msra.mxu0 0
        %2152 = vmatprep.subr.bf16.mxu0 0
        %2153 = vmatpush1.bf16.msra.mxu0 0
        %2154 = vmatprep.subr.bf16.mxu0 0
        %2155 = vmatpush1.bf16.msra.mxu0 0
        %2156 = vmatprep.subr.bf16.mxu0 0
        %2157 = vmatpush1.bf16.msra.mxu0 0
        %2158 = vmatprep.subr.bf16.mxu0 0
        %2159 = vmatpush1.bf16.msra.mxu0 0
        %2160 = vmatprep.subr.bf16.mxu0 0
        %2161 = vmatpush1.bf16.msra.mxu0 0
        %2162 = vmatprep.mubr.bf16.mxu0 0
        %2163 = vmatmul.mubr.bf16.gmra.mrb[0].mxu0 %v2128
        %v2164 = vpop.f32.mrb[0].mxu0
        %v2165 = vadd.f32 0.0, %v2164
        %v2166 = vpop.f32.mrb[0].mxu0
        %v2167 = vpop.f32.mrb[0].mxu0
        %v2168 = vpop.f32.mrb[0].mxu0
        %2169 = vdwg.mxu0
        %v2170 = vpack.c.bf16 %v2165, %v2165
        %2172 = vrot.lane.b32.xlu0 %v2062, 120
        %v2173 = vpop.permute.xlu0 %2172
        %2174 = vrot.lane.b32.xlu0 %v2063, 120
        %v2175 = vpop.permute.xlu0 %2174
        %v2177 = vsel %vm1193, %v2173, 0
        %v2180 = vsel %vm1193, %v2175, 0
        %2182 = vmatprep.subr.bf16.mxu0 0
        %2183 = vmatpush1.bf16.xpose.msra.mxu0 %v2180
        %2184 = vmatprep.subr.bf16.mxu0 0
        %2185 = vmatpush1.bf16.xpose.msra.mxu0 0
        %2186 = vmatprep.subr.bf16.mxu0 0
        %2187 = vmatpush1.bf16.xpose.msra.mxu0 0
        %2188 = vmatprep.subr.bf16.mxu0 0
        %2189 = vmatpush1.bf16.xpose.msra.mxu0 0
        %2190 = vmatprep.subr.bf16.mxu0 0
        %2191 = vmatpush1.bf16.xpose.msra.mxu0 0
        %2192 = vmatprep.subr.bf16.mxu0 0
        %2193 = vmatpush1.bf16.xpose.msra.mxu0 0
        %2194 = vmatprep.subr.bf16.mxu0 0
        %2195 = vmatpush1.bf16.xpose.msra.mxu0 0
        %2196 = vmatprep.subr.bf16.mxu0 0
        %2197 = vmatpush1.bf16.xpose.msra.mxu0 0
        %2198 = vmatprep.subr.bf16.mxu0 0
        %2199 = vmatpush1.bf16.xpose.msra.mxu0 0
        %2200 = vmatprep.subr.bf16.mxu0 0
        %2201 = vmatpush1.bf16.xpose.msra.mxu0 0
        %2202 = vmatprep.subr.bf16.mxu0 0
        %2203 = vmatpush1.bf16.xpose.msra.mxu0 0
        %2204 = vmatprep.subr.bf16.mxu0 0
        %2205 = vmatpush1.bf16.xpose.msra.mxu0 0
        %2206 = vmatprep.subr.bf16.mxu0 0
        %2207 = vmatpush1.bf16.xpose.msra.mxu0 0
        %2208 = vmatprep.subr.bf16.mxu0 0
        %2209 = vmatpush1.bf16.xpose.msra.mxu0 0
        %2210 = vmatprep.subr.bf16.mxu0 0
        %2211 = vmatpush1.bf16.xpose.msra.mxu0 0
        %2212 = vmatprep.subr.bf16.mxu0 0
        %2213 = vmatpush1.bf16.xpose.msra.mxu0 0
        %2214 = vmatprep.mubr.bf16.mxu0 0
        %2215 = vmatmul.mubr.bf16.gmra.mrb[0].mxu0 %v2177
        %v2216 = vpop.f32.mrb[0].mxu0
        %v2217 = vadd.f32 0.0, %v2216
        %v2218 = vpop.f32.mrb[0].mxu0
        %v2219 = vpop.f32.mrb[0].mxu0
        %v2220 = vpop.f32.mrb[0].mxu0
        %2221 = vdwg.mxu0
        %v2222 = vsel %vm2110, %v2217, -inf
        %2223 = vmax.xlane.f32.xlu0 %v2222
        %v2224 = vpop.xlane.xlu0 %2223
        %v2225 = vsub.f32 %v2217, %v2224
        %v2226 = vmul.f32 %v2225, 1.442695
        %v2227 = vpow.pop %v2226
        %v2228 = vsel %vm2110, %v2227, 0.0
        %2229 = vadd.xlane.f32.xlu0 %v2228
        %v2230 = vpop.xlane.xlu0 %2229
        %v2231 = vrcp.pop %v2230
        %v2232 = vmul.f32 %v2227, %v2231
        %v2233 = vpack.c.bf16 %v2232, %v2232
        %2234 = vrot.lane.b32.xlu0 %v2063, 88
        %v2235 = vpop.permute.xlu0 %2234
        %v2238 = vsel %vm2110, %v2233, 0
        %2240 = vmatprep.subr.bf16.mxu0 0
        %2241 = vmatpush1.bf16.msra.mxu0 %v2235
        %2242 = vmatprep.subr.bf16.mxu0 0
        %2243 = vmatpush1.bf16.msra.mxu0 0
        %2244 = vmatprep.subr.bf16.mxu0 0
        %2245 = vmatpush1.bf16.msra.mxu0 0
        %2246 = vmatprep.subr.bf16.mxu0 0
        %2247 = vmatpush1.bf16.msra.mxu0 0
        %2248 = vmatprep.subr.bf16.mxu0 0
        %2249 = vmatpush1.bf16.msra.mxu0 0
        %2250 = vmatprep.subr.bf16.mxu0 0
        %2251 = vmatpush1.bf16.msra.mxu0 0
        %2252 = vmatprep.subr.bf16.mxu0 0
        %2253 = vmatpush1.bf16.msra.mxu0 0
        %2254 = vmatprep.subr.bf16.mxu0 0
        %2255 = vmatpush1.bf16.msra.mxu0 0
        %2256 = vmatprep.subr.bf16.mxu0 0
        %2257 = vmatpush1.bf16.msra.mxu0 0
        %2258 = vmatprep.subr.bf16.mxu0 0
        %2259 = vmatpush1.bf16.msra.mxu0 0
        %2260 = vmatprep.subr.bf16.mxu0 0
        %2261 = vmatpush1.bf16.msra.mxu0 0
        %2262 = vmatprep.subr.bf16.mxu0 0
        %2263 = vmatpush1.bf16.msra.mxu0 0
        %2264 = vmatprep.subr.bf16.mxu0 0
        %2265 = vmatpush1.bf16.msra.mxu0 0
        %2266 = vmatprep.subr.bf16.mxu0 0
        %2267 = vmatpush1.bf16.msra.mxu0 0
        %2268 = vmatprep.subr.bf16.mxu0 0
        %2269 = vmatpush1.bf16.msra.mxu0 0
        %2270 = vmatprep.subr.bf16.mxu0 0
        %2271 = vmatpush1.bf16.msra.mxu0 0
        %2272 = vmatprep.mubr.bf16.mxu0 0
        %2273 = vmatmul.mubr.bf16.gmra.mrb[0].mxu0 %v2238
        %v2274 = vpop.f32.mrb[0].mxu0
        %v2275 = vadd.f32 0.0, %v2274
        %v2276 = vpop.f32.mrb[0].mxu0
        %v2277 = vpop.f32.mrb[0].mxu0
        %v2278 = vpop.f32.mrb[0].mxu0
        %2279 = vdwg.mxu0
        %v2280 = vpack.c.bf16 %v2275, %v2275
        %v2285 = vunpack.c.l.b16 %v2057
        %v2286 = vunpack.c.l.b16 %v2058
        %v2287 = vunpack.c.l.b16 %v2059
        %v2288 = vunpack.c.l.b16 %v2060
        %v2289 = vpack.c.b16 %v2286, %v2285
        %v2290 = vpack.c.b16 %v2288, %v2287
        %2291 = vrot.lane.b32.xlu0 %v2289, 120
        %v2292 = vpop.permute.xlu0 %2291
        %2293 = vrot.lane.b32.xlu0 %v2290, 120
        %v2294 = vpop.permute.xlu0 %2293
        %v2296 = vsel %vm1193, %v2280, 0
        %v2299 = vsel %vm1193, %v2292, 0
        %v2302 = vsel %vm1193, %v2294, 0
        %2304 = vmatprep.subr.bf16.mxu0 0
        %2305 = vmatpush1.bf16.xpose.msra.mxu0 %v2299
        %2306 = vmatprep.subr.bf16.mxu0 0
        %2307 = vmatpush1.bf16.xpose.msra.mxu0 %v2302
        %2308 = vmatprep.subr.bf16.mxu0 0
        %2309 = vmatpush1.bf16.xpose.msra.mxu0 0
        %2310 = vmatprep.subr.bf16.mxu0 0
        %2311 = vmatpush1.bf16.xpose.msra.mxu0 0
        %2312 = vmatprep.subr.bf16.mxu0 0
        %2313 = vmatpush1.bf16.xpose.msra.mxu0 0
        %2314 = vmatprep.subr.bf16.mxu0 0
        %2315 = vmatpush1.bf16.xpose.msra.mxu0 0
        %2316 = vmatprep.subr.bf16.mxu0 0
        %2317 = vmatpush1.bf16.xpose.msra.mxu0 0
        %2318 = vmatprep.subr.bf16.mxu0 0
        %2319 = vmatpush1.bf16.xpose.msra.mxu0 0
        %2320 = vmatprep.subr.bf16.mxu0 0
        %2321 = vmatpush1.bf16.xpose.msra.mxu0 0
        %2322 = vmatprep.subr.bf16.mxu0 0
        %2323 = vmatpush1.bf16.xpose.msra.mxu0 0
        %2324 = vmatprep.subr.bf16.mxu0 0
        %2325 = vmatpush1.bf16.xpose.msra.mxu0 0
        %2326 = vmatprep.subr.bf16.mxu0 0
        %2327 = vmatpush1.bf16.xpose.msra.mxu0 0
        %2328 = vmatprep.subr.bf16.mxu0 0
        %2329 = vmatpush1.bf16.xpose.msra.mxu0 0
        %2330 = vmatprep.subr.bf16.mxu0 0
        %2331 = vmatpush1.bf16.xpose.msra.mxu0 0
        %2332 = vmatprep.subr.bf16.mxu0 0
        %2333 = vmatpush1.bf16.xpose.msra.mxu0 0
        %2334 = vmatprep.subr.bf16.mxu0 0
        %2335 = vmatpush1.bf16.xpose.msra.mxu0 0
        %2336 = vmatprep.mubr.bf16.mxu0 0
        %2337 = vmatmul.mubr.bf16.gmra.mrb[0].mxu0 %v2296
        %v2338 = vpop.f32.mrb[0].mxu0
        %v2339 = vadd.f32 0.0, %v2338
        %v2340 = vpop.f32.mrb[0].mxu0
        %v2341 = vpop.f32.mrb[0].mxu0
        %v2342 = vpop.f32.mrb[0].mxu0
        %2343 = vdwg.mxu0
        %v2345 = vsel %vm1193, %v2170, 0
        %v2348 = vsel %vm1193, %v2289, 0
        %v2351 = vsel %vm1193, %v2290, 0
        %2353 = vmatprep.subr.bf16.mxu0 0
        %2354 = vmatpush1.bf16.xpose.msra.mxu0 %v2348
        %2355 = vmatprep.subr.bf16.mxu0 0
        %2356 = vmatpush1.bf16.xpose.msra.mxu0 %v2351
        %2357 = vmatprep.subr.bf16.mxu0 0
        %2358 = vmatpush1.bf16.xpose.msra.mxu0 0
        %2359 = vmatprep.subr.bf16.mxu0 0
        %2360 = vmatpush1.bf16.xpose.msra.mxu0 0
        %2361 = vmatprep.subr.bf16.mxu0 0
        %2362 = vmatpush1.bf16.xpose.msra.mxu0 0
        %2363 = vmatprep.subr.bf16.mxu0 0
        %2364 = vmatpush1.bf16.xpose.msra.mxu0 0
        %2365 = vmatprep.subr.bf16.mxu0 0
        %2366 = vmatpush1.bf16.xpose.msra.mxu0 0
        %2367 = vmatprep.subr.bf16.mxu0 0
        %2368 = vmatpush1.bf16.xpose.msra.mxu0 0
        %2369 = vmatprep.subr.bf16.mxu0 0
        %2370 = vmatpush1.bf16.xpose.msra.mxu0 0
        %2371 = vmatprep.subr.bf16.mxu0 0
        %2372 = vmatpush1.bf16.xpose.msra.mxu0 0
        %2373 = vmatprep.subr.bf16.mxu0 0
        %2374 = vmatpush1.bf16.xpose.msra.mxu0 0
        %2375 = vmatprep.subr.bf16.mxu0 0
        %2376 = vmatpush1.bf16.xpose.msra.mxu0 0
        %2377 = vmatprep.subr.bf16.mxu0 0
        %2378 = vmatpush1.bf16.xpose.msra.mxu0 0
        %2379 = vmatprep.subr.bf16.mxu0 0
        %2380 = vmatpush1.bf16.xpose.msra.mxu0 0
        %2381 = vmatprep.subr.bf16.mxu0 0
        %2382 = vmatpush1.bf16.xpose.msra.mxu0 0
        %2383 = vmatprep.subr.bf16.mxu0 0
        %2384 = vmatpush1.bf16.xpose.msra.mxu0 0
        %2385 = vmatprep.mubr.bf16.mxu0 0
        %2386 = vmatmul.mubr.bf16.gmra.mrb[0].mxu0 %v2345
        %v2387 = vpop.f32.mrb[0].mxu0
        %v2388 = vadd.f32 %v2339, %v2387
        %v2389 = vpop.f32.mrb[0].mxu0
        %v2390 = vpop.f32.mrb[0].mxu0
        %v2391 = vpop.f32.mrb[0].mxu0
        %2392 = vdwg.mxu0
        %2393 = vrot.lane.b32.xlu0 %v2062, 112
        %v2394 = vpop.permute.xlu0 %2393
        %2395 = vrot.lane.b32.xlu0 %v2063, 112
        %v2396 = vpop.permute.xlu0 %2395
        %v2398 = vsel %vm1193, %v2394, 0
        %v2401 = vsel %vm1193, %v2396, 0
        %2403 = vmatprep.subr.bf16.mxu0 0
        %2404 = vmatpush1.bf16.xpose.msra.mxu0 %v2401
        %2405 = vmatprep.subr.bf16.mxu0 0
        %2406 = vmatpush1.bf16.xpose.msra.mxu0 0
        %2407 = vmatprep.subr.bf16.mxu0 0
        %2408 = vmatpush1.bf16.xpose.msra.mxu0 0
        %2409 = vmatprep.subr.bf16.mxu0 0
        %2410 = vmatpush1.bf16.xpose.msra.mxu0 0
        %2411 = vmatprep.subr.bf16.mxu0 0
        %2412 = vmatpush1.bf16.xpose.msra.mxu0 0
        %2413 = vmatprep.subr.bf16.mxu0 0
        %2414 = vmatpush1.bf16.xpose.msra.mxu0 0
        %2415 = vmatprep.subr.bf16.mxu0 0
        %2416 = vmatpush1.bf16.xpose.msra.mxu0 0
        %2417 = vmatprep.subr.bf16.mxu0 0
        %2418 = vmatpush1.bf16.xpose.msra.mxu0 0
        %2419 = vmatprep.subr.bf16.mxu0 0
        %2420 = vmatpush1.bf16.xpose.msra.mxu0 0
        %2421 = vmatprep.subr.bf16.mxu0 0
        %2422 = vmatpush1.bf16.xpose.msra.mxu0 0
        %2423 = vmatprep.subr.bf16.mxu0 0
        %2424 = vmatpush1.bf16.xpose.msra.mxu0 0
        %2425 = vmatprep.subr.bf16.mxu0 0
        %2426 = vmatpush1.bf16.xpose.msra.mxu0 0
        %2427 = vmatprep.subr.bf16.mxu0 0
        %2428 = vmatpush1.bf16.xpose.msra.mxu0 0
        %2429 = vmatprep.subr.bf16.mxu0 0
        %2430 = vmatpush1.bf16.xpose.msra.mxu0 0
        %2431 = vmatprep.subr.bf16.mxu0 0
        %2432 = vmatpush1.bf16.xpose.msra.mxu0 0
        %2433 = vmatprep.subr.bf16.mxu0 0
        %2434 = vmatpush1.bf16.xpose.msra.mxu0 0
        %2435 = vmatprep.mubr.bf16.mxu0 0
        %2436 = vmatmul.mubr.bf16.gmra.mrb[0].mxu0 %v2398
        %v2437 = vpop.f32.mrb[0].mxu0
        %v2438 = vadd.f32 0.0, %v2437
        %v2439 = vpop.f32.mrb[0].mxu0
        %v2440 = vpop.f32.mrb[0].mxu0
        %v2441 = vpop.f32.mrb[0].mxu0
        %2442 = vdwg.mxu0
        %v2443 = vsel %vm2110, %v2438, -inf
        %2444 = vmax.xlane.f32.xlu0 %v2443
        %v2445 = vpop.xlane.xlu0 %2444
        %v2446 = vsub.f32 %v2438, %v2445
        %v2447 = vmul.f32 %v2446, 1.442695
        %v2448 = vpow.pop %v2447
        %v2449 = vsel %vm2110, %v2448, 0.0
        %2450 = vadd.xlane.f32.xlu0 %v2449
        %v2451 = vpop.xlane.xlu0 %2450
        %v2452 = vrcp.pop %v2451
        %v2453 = vmul.f32 %v2448, %v2452
        %v2454 = vpack.c.bf16 %v2453, %v2453
        %2455 = vrot.lane.b32.xlu0 %v2063, 80
        %v2456 = vpop.permute.xlu0 %2455
        %v2459 = vsel %vm2110, %v2454, 0
        %2461 = vmatprep.subr.bf16.mxu0 0
        %2462 = vmatpush1.bf16.msra.mxu0 %v2456
        %2463 = vmatprep.subr.bf16.mxu0 0
        %2464 = vmatpush1.bf16.msra.mxu0 0
        %2465 = vmatprep.subr.bf16.mxu0 0
        %2466 = vmatpush1.bf16.msra.mxu0 0
        %2467 = vmatprep.subr.bf16.mxu0 0
        %2468 = vmatpush1.bf16.msra.mxu0 0
        %2469 = vmatprep.subr.bf16.mxu0 0
        %2470 = vmatpush1.bf16.msra.mxu0 0
        %2471 = vmatprep.subr.bf16.mxu0 0
        %2472 = vmatpush1.bf16.msra.mxu0 0
        %2473 = vmatprep.subr.bf16.mxu0 0
        %2474 = vmatpush1.bf16.msra.mxu0 0
        %2475 = vmatprep.subr.bf16.mxu0 0
        %2476 = vmatpush1.bf16.msra.mxu0 0
        %2477 = vmatprep.subr.bf16.mxu0 0
        %2478 = vmatpush1.bf16.msra.mxu0 0
        %2479 = vmatprep.subr.bf16.mxu0 0
        %2480 = vmatpush1.bf16.msra.mxu0 0
        %2481 = vmatprep.subr.bf16.mxu0 0
        %2482 = vmatpush1.bf16.msra.mxu0 0
        %2483 = vmatprep.subr.bf16.mxu0 0
        %2484 = vmatpush1.bf16.msra.mxu0 0
        %2485 = vmatprep.subr.bf16.mxu0 0
        %2486 = vmatpush1.bf16.msra.mxu0 0
        %2487 = vmatprep.subr.bf16.mxu0 0
        %2488 = vmatpush1.bf16.msra.mxu0 0
        %2489 = vmatprep.subr.bf16.mxu0 0
        %2490 = vmatpush1.bf16.msra.mxu0 0
        %2491 = vmatprep.subr.bf16.mxu0 0
        %2492 = vmatpush1.bf16.msra.mxu0 0
        %2493 = vmatprep.mubr.bf16.mxu0 0
        %2494 = vmatmul.mubr.bf16.gmra.mrb[0].mxu0 %v2459
        %v2495 = vpop.f32.mrb[0].mxu0
        %v2496 = vadd.f32 0.0, %v2495
        %v2497 = vpop.f32.mrb[0].mxu0
        %v2498 = vpop.f32.mrb[0].mxu0
        %v2499 = vpop.f32.mrb[0].mxu0
        %2500 = vdwg.mxu0
        %v2501 = vpack.c.bf16 %v2496, %v2496
        %2502 = vrot.lane.b32.xlu0 %v2289, 112
        %v2503 = vpop.permute.xlu0 %2502
        %2504 = vrot.lane.b32.xlu0 %v2290, 112
        %v2505 = vpop.permute.xlu0 %2504
        %v2507 = vsel %vm1193, %v2501, 0
        %v2510 = vsel %vm1193, %v2503, 0
        %v2513 = vsel %vm1193, %v2505, 0
        %2515 = vmatprep.subr.bf16.mxu0 0
        %2516 = vmatpush1.bf16.xpose.msra.mxu0 %v2510
        %2517 = vmatprep.subr.bf16.mxu0 0
        %2518 = vmatpush1.bf16.xpose.msra.mxu0 %v2513
        %2519 = vmatprep.subr.bf16.mxu0 0
        %2520 = vmatpush1.bf16.xpose.msra.mxu0 0
        %2521 = vmatprep.subr.bf16.mxu0 0
        %2522 = vmatpush1.bf16.xpose.msra.mxu0 0
        %2523 = vmatprep.subr.bf16.mxu0 0
        %2524 = vmatpush1.bf16.xpose.msra.mxu0 0
        %2525 = vmatprep.subr.bf16.mxu0 0
        %2526 = vmatpush1.bf16.xpose.msra.mxu0 0
        %2527 = vmatprep.subr.bf16.mxu0 0
        %2528 = vmatpush1.bf16.xpose.msra.mxu0 0
        %2529 = vmatprep.subr.bf16.mxu0 0
        %2530 = vmatpush1.bf16.xpose.msra.mxu0 0
        %2531 = vmatprep.subr.bf16.mxu0 0
        %2532 = vmatpush1.bf16.xpose.msra.mxu0 0
        %2533 = vmatprep.subr.bf16.mxu0 0
        %2534 = vmatpush1.bf16.xpose.msra.mxu0 0
        %2535 = vmatprep.subr.bf16.mxu0 0
        %2536 = vmatpush1.bf16.xpose.msra.mxu0 0
        %2537 = vmatprep.subr.bf16.mxu0 0
        %2538 = vmatpush1.bf16.xpose.msra.mxu0 0
        %2539 = vmatprep.subr.bf16.mxu0 0
        %2540 = vmatpush1.bf16.xpose.msra.mxu0 0
        %2541 = vmatprep.subr.bf16.mxu0 0
        %2542 = vmatpush1.bf16.xpose.msra.mxu0 0
        %2543 = vmatprep.subr.bf16.mxu0 0
        %2544 = vmatpush1.bf16.xpose.msra.mxu0 0
        %2545 = vmatprep.subr.bf16.mxu0 0
        %2546 = vmatpush1.bf16.xpose.msra.mxu0 0
        %2547 = vmatprep.mubr.bf16.mxu0 0
        %2548 = vmatmul.mubr.bf16.gmra.mrb[0].mxu0 %v2507
        %v2549 = vpop.f32.mrb[0].mxu0
        %v2550 = vadd.f32 0.0, %v2549
        %v2551 = vpop.f32.mrb[0].mxu0
        %v2552 = vpop.f32.mrb[0].mxu0
        %v2553 = vpop.f32.mrb[0].mxu0
        %2554 = vdwg.mxu0
        %v2555 = vadd.f32 %v2388, %v2550
        %2556 = vrot.lane.b32.xlu0 %v2062, 104
        %v2557 = vpop.permute.xlu0 %2556
        %2558 = vrot.lane.b32.xlu0 %v2063, 104
        %v2559 = vpop.permute.xlu0 %2558
        %v2561 = vsel %vm1193, %v2557, 0
        %v2564 = vsel %vm1193, %v2559, 0
        %2566 = vmatprep.subr.bf16.mxu0 0
        %2567 = vmatpush1.bf16.xpose.msra.mxu0 %v2564
        %2568 = vmatprep.subr.bf16.mxu0 0
        %2569 = vmatpush1.bf16.xpose.msra.mxu0 0
        %2570 = vmatprep.subr.bf16.mxu0 0
        %2571 = vmatpush1.bf16.xpose.msra.mxu0 0
        %2572 = vmatprep.subr.bf16.mxu0 0
        %2573 = vmatpush1.bf16.xpose.msra.mxu0 0
        %2574 = vmatprep.subr.bf16.mxu0 0
        %2575 = vmatpush1.bf16.xpose.msra.mxu0 0
        %2576 = vmatprep.subr.bf16.mxu0 0
        %2577 = vmatpush1.bf16.xpose.msra.mxu0 0
        %2578 = vmatprep.subr.bf16.mxu0 0
        %2579 = vmatpush1.bf16.xpose.msra.mxu0 0
        %2580 = vmatprep.subr.bf16.mxu0 0
        %2581 = vmatpush1.bf16.xpose.msra.mxu0 0
        %2582 = vmatprep.subr.bf16.mxu0 0
        %2583 = vmatpush1.bf16.xpose.msra.mxu0 0
        %2584 = vmatprep.subr.bf16.mxu0 0
        %2585 = vmatpush1.bf16.xpose.msra.mxu0 0
        %2586 = vmatprep.subr.bf16.mxu0 0
        %2587 = vmatpush1.bf16.xpose.msra.mxu0 0
        %2588 = vmatprep.subr.bf16.mxu0 0
        %2589 = vmatpush1.bf16.xpose.msra.mxu0 0
        %2590 = vmatprep.subr.bf16.mxu0 0
        %2591 = vmatpush1.bf16.xpose.msra.mxu0 0
        %2592 = vmatprep.subr.bf16.mxu0 0
        %2593 = vmatpush1.bf16.xpose.msra.mxu0 0
        %2594 = vmatprep.subr.bf16.mxu0 0
        %2595 = vmatpush1.bf16.xpose.msra.mxu0 0
        %2596 = vmatprep.subr.bf16.mxu0 0
        %2597 = vmatpush1.bf16.xpose.msra.mxu0 0
        %2598 = vmatprep.mubr.bf16.mxu0 0
        %2599 = vmatmul.mubr.bf16.gmra.mrb[0].mxu0 %v2561
        %v2600 = vpop.f32.mrb[0].mxu0
        %v2601 = vadd.f32 0.0, %v2600
        %v2602 = vpop.f32.mrb[0].mxu0
        %v2603 = vpop.f32.mrb[0].mxu0
        %v2604 = vpop.f32.mrb[0].mxu0
        %2605 = vdwg.mxu0
        %v2606 = vsel %vm2110, %v2601, -inf
        %2607 = vmax.xlane.f32.xlu0 %v2606
        %v2608 = vpop.xlane.xlu0 %2607
        %v2609 = vsub.f32 %v2601, %v2608
        %v2610 = vmul.f32 %v2609, 1.442695
        %v2611 = vpow.pop %v2610
        %v2612 = vsel %vm2110, %v2611, 0.0
        %2613 = vadd.xlane.f32.xlu0 %v2612
        %v2614 = vpop.xlane.xlu0 %2613
        %v2615 = vrcp.pop %v2614
        %v2616 = vmul.f32 %v2611, %v2615
        %v2617 = vpack.c.bf16 %v2616, %v2616
        %2618 = vrot.lane.b32.xlu0 %v2063, 72
        %v2619 = vpop.permute.xlu0 %2618
        %v2622 = vsel %vm2110, %v2617, 0
        %2624 = vmatprep.subr.bf16.mxu0 0
        %2625 = vmatpush1.bf16.msra.mxu0 %v2619
        %2626 = vmatprep.subr.bf16.mxu0 0
        %2627 = vmatpush1.bf16.msra.mxu0 0
        %2628 = vmatprep.subr.bf16.mxu0 0
        %2629 = vmatpush1.bf16.msra.mxu0 0
        %2630 = vmatprep.subr.bf16.mxu0 0
        %2631 = vmatpush1.bf16.msra.mxu0 0
        %2632 = vmatprep.subr.bf16.mxu0 0
        %2633 = vmatpush1.bf16.msra.mxu0 0
        %2634 = vmatprep.subr.bf16.mxu0 0
        %2635 = vmatpush1.bf16.msra.mxu0 0
        %2636 = vmatprep.subr.bf16.mxu0 0
        %2637 = vmatpush1.bf16.msra.mxu0 0
        %2638 = vmatprep.subr.bf16.mxu0 0
        %2639 = vmatpush1.bf16.msra.mxu0 0
        %2640 = vmatprep.subr.bf16.mxu0 0
        %2641 = vmatpush1.bf16.msra.mxu0 0
        %2642 = vmatprep.subr.bf16.mxu0 0
        %2643 = vmatpush1.bf16.msra.mxu0 0
        %2644 = vmatprep.subr.bf16.mxu0 0
        %2645 = vmatpush1.bf16.msra.mxu0 0
        %2646 = vmatprep.subr.bf16.mxu0 0
        %2647 = vmatpush1.bf16.msra.mxu0 0
        %2648 = vmatprep.subr.bf16.mxu0 0
        %2649 = vmatpush1.bf16.msra.mxu0 0
        %2650 = vmatprep.subr.bf16.mxu0 0
        %2651 = vmatpush1.bf16.msra.mxu0 0
        %2652 = vmatprep.subr.bf16.mxu0 0
        %2653 = vmatpush1.bf16.msra.mxu0 0
        %2654 = vmatprep.subr.bf16.mxu0 0
        %2655 = vmatpush1.bf16.msra.mxu0 0
        %2656 = vmatprep.mubr.bf16.mxu0 0
        %2657 = vmatmul.mubr.bf16.gmra.mrb[0].mxu0 %v2622
        %v2658 = vpop.f32.mrb[0].mxu0
        %v2659 = vadd.f32 0.0, %v2658
        %v2660 = vpop.f32.mrb[0].mxu0
        %v2661 = vpop.f32.mrb[0].mxu0
        %v2662 = vpop.f32.mrb[0].mxu0
        %2663 = vdwg.mxu0
        %v2664 = vpack.c.bf16 %v2659, %v2659
        %2665 = vrot.lane.b32.xlu0 %v2289, 104
        %v2666 = vpop.permute.xlu0 %2665
        %2667 = vrot.lane.b32.xlu0 %v2290, 104
        %v2668 = vpop.permute.xlu0 %2667
        %v2670 = vsel %vm1193, %v2664, 0
        %v2673 = vsel %vm1193, %v2666, 0
        %v2676 = vsel %vm1193, %v2668, 0
        %2678 = vmatprep.subr.bf16.mxu0 0
        %2679 = vmatpush1.bf16.xpose.msra.mxu0 %v2673
        %2680 = vmatprep.subr.bf16.mxu0 0
        %2681 = vmatpush1.bf16.xpose.msra.mxu0 %v2676
        %2682 = vmatprep.subr.bf16.mxu0 0
        %2683 = vmatpush1.bf16.xpose.msra.mxu0 0
        %2684 = vmatprep.subr.bf16.mxu0 0
        %2685 = vmatpush1.bf16.xpose.msra.mxu0 0
        %2686 = vmatprep.subr.bf16.mxu0 0
        %2687 = vmatpush1.bf16.xpose.msra.mxu0 0
        %2688 = vmatprep.subr.bf16.mxu0 0
        %2689 = vmatpush1.bf16.xpose.msra.mxu0 0
        %2690 = vmatprep.subr.bf16.mxu0 0
        %2691 = vmatpush1.bf16.xpose.msra.mxu0 0
        %2692 = vmatprep.subr.bf16.mxu0 0
        %2693 = vmatpush1.bf16.xpose.msra.mxu0 0
        %2694 = vmatprep.subr.bf16.mxu0 0
        %2695 = vmatpush1.bf16.xpose.msra.mxu0 0
        %2696 = vmatprep.subr.bf16.mxu0 0
        %2697 = vmatpush1.bf16.xpose.msra.mxu0 0
        %2698 = vmatprep.subr.bf16.mxu0 0
        %2699 = vmatpush1.bf16.xpose.msra.mxu0 0
        %2700 = vmatprep.subr.bf16.mxu0 0
        %2701 = vmatpush1.bf16.xpose.msra.mxu0 0
        %2702 = vmatprep.subr.bf16.mxu0 0
        %2703 = vmatpush1.bf16.xpose.msra.mxu0 0
        %2704 = vmatprep.subr.bf16.mxu0 0
        %2705 = vmatpush1.bf16.xpose.msra.mxu0 0
        %2706 = vmatprep.subr.bf16.mxu0 0
        %2707 = vmatpush1.bf16.xpose.msra.mxu0 0
        %2708 = vmatprep.subr.bf16.mxu0 0
        %2709 = vmatpush1.bf16.xpose.msra.mxu0 0
        %2710 = vmatprep.mubr.bf16.mxu0 0
        %2711 = vmatmul.mubr.bf16.gmra.mrb[0].mxu0 %v2670
        %v2712 = vpop.f32.mrb[0].mxu0
        %v2713 = vadd.f32 0.0, %v2712
        %v2714 = vpop.f32.mrb[0].mxu0
        %v2715 = vpop.f32.mrb[0].mxu0
        %v2716 = vpop.f32.mrb[0].mxu0
        %2717 = vdwg.mxu0
        %v2718 = vadd.f32 %v2555, %v2713
        %v2720 = vlaneseq
        %v2721 = vshrl.u32 %v2720, 7
        %v2722 = vsub.s32 0, %v2721
        %v2723 = vrot.slane %v2061, %v2722
        %v2725 = vadd.f32 %v2718, %v2723
        %v2726 = vadd.f32 %v1862, %v2725
        %v2727 = vld [vmem:[%s1013] sm:$0x1]
        %v2728 = vld [vmem:[%s1016] sm:$0x1]
        %v2729 = vsel %vm1044, %v2726, 0.0
        %2730 = vadd.xlane.f32.xlu0 %v2729
        %v2731 = vpop.xlane.xlu0 %2730
        %v2732 = vmul.f32 %v2731, %v1048
        %v2733 = vsub.f32 %v2726, %v2732
        %v2734 = vmul.f32 %v2733, %v2733
        %v2735 = vsel %vm1044, %v2734, 0.0
        %2736 = vadd.xlane.f32.xlu0 %v2735
        %v2737 = vpop.xlane.xlu0 %2736
        %v2738 = vmul.f32 %v2737, %v1048
        %v2739 = vadd.f32 %v2738, 1e-05
        %v2740 = vrsqrt.pop %v2739
        %v2741 = vmul.f32 %v2733, %v2740
        %v2743 = vlaneseq
        %v2744 = vshrl.u32 %v2743, 7
        %v2745 = vsub.s32 0, %v2744
        %v2746 = vrot.slane %v2727, %v2745
        %v2748 = vmul.f32 %v2741, %v2746
        %v2750 = vlaneseq
        %v2751 = vshrl.u32 %v2750, 7
        %v2752 = vsub.s32 0, %v2751
        %v2753 = vrot.slane %v2728, %v2752
        %v2755 = vadd.f32 %v2748, %v2753
        %v2756 = vld [vmem:[%s1021] sm:$0xf]
        %v2757 = vld [vmem:[%s1021 + $0x4] sm:$0xf]
        %v2758 = vld [vmem:[%s1021 + $0x8] sm:$0xf]
        %v2759 = vld [vmem:[%s1021 + $0xc] sm:$0xf]
        %v2760 = vld [vmem:[%s1021 + $0x10] sm:$0xf]
        %v2761 = vld [vmem:[%s1021 + $0x14] sm:$0xf]
        %v2762 = vld [vmem:[%s1021 + $0x18] sm:$0xf]
        %v2763 = vld [vmem:[%s1021 + $0x1c] sm:$0xf]
        %v2764 = vld [vmem:[%s1024] sm:$0x1]
        %v2765 = vpack.c.bf16 %v2755, %v2755
        %v2767 = vlaneseq
        %v2768 = vshrl.u32 %v2767, 7
        %v2769 = vsub.s32 0, %v2768
        %v2770 = vrot.slane %v2764, %v2769
        %v2780 = vunpack.c.l.b16 %v2756
        %v2781 = vunpack.c.l.b16 %v2757
        %v2782 = vunpack.c.l.b16 %v2758
        %v2783 = vunpack.c.l.b16 %v2759
        %v2784 = vunpack.c.l.b16 %v2760
        %v2785 = vunpack.c.l.b16 %v2761
        %v2786 = vunpack.c.l.b16 %v2762
        %v2787 = vunpack.c.l.b16 %v2763
        %v2788 = vpack.c.b16 %v2781, %v2780
        %v2789 = vpack.c.b16 %v2783, %v2782
        %v2790 = vpack.c.b16 %v2785, %v2784
        %v2791 = vpack.c.b16 %v2787, %v2786
        %v2793 = vsel %vm1044, %v2765, 0
        %v2796 = vsel %vm1044, %v2788, 0
        %v2799 = vsel %vm1044, %v2789, 0
        %v2802 = vsel %vm1044, %v2790, 0
        %v2805 = vsel %vm1044, %v2791, 0
        %2807 = vmatprep.subr.bf16.mxu0 0
        %2808 = vmatpush1.bf16.xpose.msra.mxu0 %v2796
        %2809 = vmatprep.subr.bf16.mxu0 0
        %2810 = vmatpush1.bf16.xpose.msra.mxu0 %v2799
        %2811 = vmatprep.subr.bf16.mxu0 0
        %2812 = vmatpush1.bf16.xpose.msra.mxu0 %v2802
        %2813 = vmatprep.subr.bf16.mxu0 0
        %2814 = vmatpush1.bf16.xpose.msra.mxu0 %v2805
        %2815 = vmatprep.subr.bf16.mxu0 0
        %2816 = vmatpush1.bf16.xpose.msra.mxu0 0
        %2817 = vmatprep.subr.bf16.mxu0 0
        %2818 = vmatpush1.bf16.xpose.msra.mxu0 0
        %2819 = vmatprep.subr.bf16.mxu0 0
        %2820 = vmatpush1.bf16.xpose.msra.mxu0 0
        %2821 = vmatprep.subr.bf16.mxu0 0
        %2822 = vmatpush1.bf16.xpose.msra.mxu0 0
        %2823 = vmatprep.subr.bf16.mxu0 0
        %2824 = vmatpush1.bf16.xpose.msra.mxu0 0
        %2825 = vmatprep.subr.bf16.mxu0 0
        %2826 = vmatpush1.bf16.xpose.msra.mxu0 0
        %2827 = vmatprep.subr.bf16.mxu0 0
        %2828 = vmatpush1.bf16.xpose.msra.mxu0 0
        %2829 = vmatprep.subr.bf16.mxu0 0
        %2830 = vmatpush1.bf16.xpose.msra.mxu0 0
        %2831 = vmatprep.subr.bf16.mxu0 0
        %2832 = vmatpush1.bf16.xpose.msra.mxu0 0
        %2833 = vmatprep.subr.bf16.mxu0 0
        %2834 = vmatpush1.bf16.xpose.msra.mxu0 0
        %2835 = vmatprep.subr.bf16.mxu0 0
        %2836 = vmatpush1.bf16.xpose.msra.mxu0 0
        %2837 = vmatprep.subr.bf16.mxu0 0
        %2838 = vmatpush1.bf16.xpose.msra.mxu0 0
        %2839 = vmatprep.mubr.bf16.mxu0 0
        %2840 = vmatmul.mubr.bf16.gmra.mrb[0].mxu0 %v2793
        %v2841 = vpop.f32.mrb[0].mxu0
        %v2842 = vadd.f32 %v2770, %v2841
        %v2843 = vpop.f32.mrb[0].mxu0
        %v2844 = vpop.f32.mrb[0].mxu0
        %v2845 = vpop.f32.mrb[0].mxu0
        %2846 = vdwg.mxu0
        %v2847 = vmax.f32 %v2842, 0.0
        %v2848 = vld [vmem:[%s1029] sm:$0xf]
        %v2849 = vld [vmem:[%s1029 + $0x4] sm:$0xf]
        %v2850 = vld [vmem:[%s1029 + $0x8] sm:$0xf]
        %v2851 = vld [vmem:[%s1029 + $0xc] sm:$0xf]
        %v2852 = vld [vmem:[%s1032] sm:$0x1]
        %v2853 = vpack.c.bf16 %v2847, %v2847
        %v2855 = vlaneseq
        %v2856 = vshrl.u32 %v2855, 7
        %v2857 = vsub.s32 0, %v2856
        %v2858 = vrot.slane %v2852, %v2857
        %v2864 = vunpack.c.l.b16 %v2848
        %v2865 = vunpack.c.l.b16 %v2849
        %v2866 = vunpack.c.l.b16 %v2850
        %v2867 = vunpack.c.l.b16 %v2851
        %v2868 = vpack.c.b16 %v2865, %v2864
        %v2869 = vpack.c.b16 %v2867, %v2866
        %vm2870 = vcmask 523264
        %v2872 = vsel %vm2870, %v2853, 0
        %v2875 = vsel %vm2870, %v2868, 0
        %v2878 = vsel %vm2870, %v2869, 0
        %2880 = vmatprep.subr.bf16.mxu0 0
        %2881 = vmatpush1.bf16.xpose.msra.mxu0 %v2875
        %2882 = vmatprep.subr.bf16.mxu0 0
        %2883 = vmatpush1.bf16.xpose.msra.mxu0 %v2878
        %2884 = vmatprep.subr.bf16.mxu0 0
        %2885 = vmatpush1.bf16.xpose.msra.mxu0 0
        %2886 = vmatprep.subr.bf16.mxu0 0
        %2887 = vmatpush1.bf16.xpose.msra.mxu0 0
        %2888 = vmatprep.subr.bf16.mxu0 0
        %2889 = vmatpush1.bf16.xpose.msra.mxu0 0
        %2890 = vmatprep.subr.bf16.mxu0 0
        %2891 = vmatpush1.bf16.xpose.msra.mxu0 0
        %2892 = vmatprep.subr.bf16.mxu0 0
        %2893 = vmatpush1.bf16.xpose.msra.mxu0 0
        %2894 = vmatprep.subr.bf16.mxu0 0
        %2895 = vmatpush1.bf16.xpose.msra.mxu0 0
        %2896 = vmatprep.subr.bf16.mxu0 0
        %2897 = vmatpush1.bf16.xpose.msra.mxu0 0
        %2898 = vmatprep.subr.bf16.mxu0 0
        %2899 = vmatpush1.bf16.xpose.msra.mxu0 0
        %2900 = vmatprep.subr.bf16.mxu0 0
        %2901 = vmatpush1.bf16.xpose.msra.mxu0 0
        %2902 = vmatprep.subr.bf16.mxu0 0
        %2903 = vmatpush1.bf16.xpose.msra.mxu0 0
        %2904 = vmatprep.subr.bf16.mxu0 0
        %2905 = vmatpush1.bf16.xpose.msra.mxu0 0
        %2906 = vmatprep.subr.bf16.mxu0 0
        %2907 = vmatpush1.bf16.xpose.msra.mxu0 0
        %2908 = vmatprep.subr.bf16.mxu0 0
        %2909 = vmatpush1.bf16.xpose.msra.mxu0 0
        %2910 = vmatprep.subr.bf16.mxu0 0
        %2911 = vmatpush1.bf16.xpose.msra.mxu0 0
        %2912 = vmatprep.mubr.bf16.mxu0 0
        %2913 = vmatmul.mubr.bf16.gmra.mrb[0].mxu0 %v2872
        %v2914 = vpop.f32.mrb[0].mxu0
        %v2915 = vadd.f32 %v2858, %v2914
        %v2916 = vpop.f32.mrb[0].mxu0
        %v2917 = vpop.f32.mrb[0].mxu0
        %v2918 = vpop.f32.mrb[0].mxu0
        %2919 = vdwg.mxu0
        %v2920 = vadd.f32 %v2726, %v2915
        %2921 = vst.msk [vmem:[#allocation2] sm:$0xff] %vm1044, %v2920
        %p2922 = scmp.eq.s32.totalorder %s41, 1
        // Predicated region
        $region113: #{transformer_decoder.1} parent=107 // pred_check
          %p2923 = pneg %p2922
        $region114: #{transformer_decoder.1} parent=107 // pred_check_branch
          %2925 = sbr.rel (%p2923) target = $region116
        $region115: #{transformer_decoder.1} parent=107 // pred_region
          %2926 = vst.msk [vmem:[%s949] sm:$0xff] %vm1044, %v2920
        $region116: #{transformer_decoder.1} parent=107 // pred_fallthru
          _
        %s2927 = sand.u32 %s628, 1
        %s2928 = scalar_lea.sflag [#allocation4], %s2927
        %s2929 = sand.u32 %s628, 1
        %s2930 = smul.addr %s2929, 8
        %s2931 = scalar_lea.vmem [#allocation3], %s2930
        // Predicated region
        $region117: #{transformer_decoder.1} parent=107 // pred_check
          %p2932 = pneg %p638
        $region118: #{transformer_decoder.1} parent=107 // pred_check_branch
          %2934 = sbr.rel (%p2932) target = $region120
        $region119: #{transformer_decoder.1} parent=107 // pred_region
          %s2936 = ssub.s32 128, 128
          %2937 = vsyncadd %s2928, %s2936
          %s2938 = smul.addr %s40, 128
          %s2939 = scalar_lea.hbm %s22, %s2938
          %s2941 = sshll.u32 %s2931, 4
          %s2942 = int_to_ptr.vmem [resolvable:$true] %s2941
          %2944 = dma.vmem_to_hbm [thread:$0]  %s2942, 128, %s2939, %s2928
        $region120: #{transformer_decoder.1} parent=107 // pred_fallthru
          _
      $region108: #{transformer_decoder.1} parent=5 // pred_fallthru
        _
      %p2945 = scmp.le.s32.totalorder 2, %s31
      // Predicated region
      $region121: #{transformer_decoder.1} parent=5 // pred_check
        %p2946 = pneg %p2945
      $region122: #{transformer_decoder.1} parent=5 // pred_check_branch
        %2948 = sbr.rel (%p2946) target = $region124
      $region123: #{transformer_decoder.1} parent=5 // pred_region
        %s2949 = ssub.s32 %s31, 2
        // Predicated region
        $region125: #{transformer_decoder.1} parent=123 // pred_check
          %p2950 = pneg %p644
        $region126: #{transformer_decoder.1} parent=123 // pred_check_branch
          %2952 = sbr.rel (%p2950) target = $region128
        $region127: #{transformer_decoder.1} parent=123 // pred_region
          %s2953 = sand.u32 %s629, 1
          %s2954 = scalar_lea.sflag [#allocation4], %s2953
          %s2955 = sand.u32 %s629, 1
          %s2956 = smul.addr %s2955, 8
          %s2957 = scalar_lea.vmem [#allocation3], %s2956
          %2958 = dma.done %s2954, 128
        $region128: #{transformer_decoder.1} parent=123 // pred_fallthru
          _
      $region124: #{transformer_decoder.1} parent=5 // pred_fallthru
        _
    $region6: #{transformer_decoder.1} parent=1 // loop_footer
      %s35 = sadd.s32 1, %s31
    $region7: #{transformer_decoder.1} parent=1 // loop_footer_branch
      %30 = sbr.rel target = $region3
    $region8: #{transformer_decoder.1} parent=1 // loop_exit
      _
    %2959 = vsyncpa [#allocation4], 1
    %s2960 = scalar_lea.sflag [#allocation4], 1
    %2961 = vsyncpa %s2960, 1

</llo_original>
